<compile_context>
chip_gen: v7x
topology: tpu7x:2x2x1
jax: 0.10.0
libtpu: 0.0.40
codegen_flags: <defaults>
</compile_context>

<pallas_src>
import functools
import math

import jax
import jax.numpy as jnp
from jax import lax
from jax.experimental import pallas as pl
from jax.experimental.pallas import tpu as pltpu


def _fused_kernel(N, H, W, C, K, pad,
                  x_ref, y_ref, w1_ref, w2_ref, b1_ref, b2_ref,
                  out_ref, col_ref):
    """Fused forward pass, both batch elements stacked along rows.

    x_ref, y_ref : (N*H, W*C)        flattened NHWC inputs (lane-dense)
    w1_ref,w2_ref: (K*W*C, W*C)      banded conv weights, kh-major rows
    b1_ref,b2_ref: (1, W*C)          bias tiled along W
    out_ref      : (N*H, W*C)
    col_ref      : (N*H, K*W*C)      VMEM scratch: im2col over the K height taps
    """
    WC = W * C

    def build_col(a):
        # col[n*H + h, kh*WC + :] = a[n*H + h + kh - pad, :]  (zero if OOB).
        # Border (zero) rows are identical for every conv; they were zeroed
        # once below and are never rewritten.
        for n in range(N):
            for kh in range(K):
                d = kh - pad
                src_lo, src_hi = max(0, d), min(H, H + d)
                dst_lo, dst_hi = max(0, -d), min(H, H - d)
                col_ref[n * H + dst_lo:n * H + dst_hi,
                        kh * WC:(kh + 1) * WC] = a[n * H + src_lo:
                                                   n * H + src_hi, :]

    def conv(a, w_ref, b_ref):
        build_col(a)
        # Single (N*H, K*WC) @ (K*WC, WC) matmul: the 7-tap reduction is
        # accumulated inside the MXU.
        return jnp.dot(col_ref[...], w_ref[...],
                       preferred_element_type=jnp.float32) + b_ref[...]

    # Zero the im2col scratch once (the only rows that must be zero are the
    # 'same'-padding border rows; they stay zero for all three convs).
    col_ref[...] = jnp.zeros_like(col_ref)

    # v1 = conv1(x)
    v1 = conv(x_ref[...], w1_ref, b1_ref)                     # (N*H, WC)

    # v5 = relu(conv1(relu(v1)) + y)
    v5 = jnp.maximum(conv(jnp.maximum(v1, 0.0), w1_ref, b1_ref)
                     + y_ref[...], 0.0)

    # v7 = conv2(v5) + conv1(x)   (conv1(x) == v1, bias already included)
    out_ref[...] = (conv(v5, w2_ref, b2_ref) + v1).astype(out_ref.dtype)


def _band_weight(w_hwio, W):
    """(K, K, Cin, Cout) -> (K, W*Cin, W*Cout).

    band[kh, wi*Cin+ci, wo*Cout+co] = w[kh, wi-wo+pad, ci, co] when the kernel
    tap is in range, else 0.  Folds the 'same' W-padding of a stride-1 conv
    into a dense lane-aligned matmul.
    """
    K, _, Cin, Cout = w_hwio.shape
    pad = (K - 1) // 2
    wi = jnp.arange(W)[:, None]               # input column index
    wo = jnp.arange(W)[None, :]               # output column index
    kw = wi - wo + pad                        # (W, W)
    valid = (kw >= 0) & (kw < K)
    kw_c = jnp.clip(kw, 0, K - 1)
    band = w_hwio[:, kw_c]                    # (K, wi, wo, Cin, Cout)
    band = band * valid[None, :, :, None, None].astype(w_hwio.dtype)
    band = band.transpose(0, 1, 3, 2, 4)      # (K, wi, Cin, wo, Cout)
    return band.reshape(K, W * Cin, W * Cout)


def prepare_params(w1, b1, w2, b2, W):
    """One-time parameter prep (kept OUT of the per-call jitted forward).

    Returns the flattened banded weights (K*W*Cin, W*Cout) and tiled biases
    (1, W*Cout), ready to be fed straight into the Pallas kernel.
    """
    K, _, Cin, Cout = w1.shape
    w1_flat = _band_weight(w1, W).reshape(K * W * Cin, W * Cout)
    w2_flat = _band_weight(w2, W).reshape(K * W * Cin, W * Cout)
    b1_t = jnp.tile(b1, W).reshape(1, W * Cout)
    b2_t = jnp.tile(b2, W).reshape(1, W * Cout)
    return (jax.device_put(w1_flat), jax.device_put(w2_flat),
            jax.device_put(b1_t), jax.device_put(b2_t))


@jax.jit
def model_forward(x, y, w1_flat, w2_flat, b1_t, b2_t):
    """Pallas forward pass (NHWC activations, pre-banded weights)."""
    N, H, W, C = x.shape
    WC = W * C
    assert w1_flat.shape[1] == WC, "fused residual reuse assumes Cin == Cout"
    K = w1_flat.shape[0] // WC
    pad = (K - 1) // 2
    NH = N * H

    x_flat = x.reshape(NH, WC)
    y_flat = y.reshape(NH, WC)

    kernel = functools.partial(_fused_kernel, N, H, W, C, K, pad)

    out_flat = pl.pallas_call(
        kernel,
        out_shape=jax.ShapeDtypeStruct((NH, WC), jnp.float32),
        grid=(1,),                                   # single step, single TC
        in_specs=[
            pl.BlockSpec((NH, WC), lambda i: (0, 0)),          # x
            pl.BlockSpec((NH, WC), lambda i: (0, 0)),          # y
            pl.BlockSpec((K * WC, WC), lambda i: (0, 0)),      # w1 band (flat)
            pl.BlockSpec((K * WC, WC), lambda i: (0, 0)),      # w2 band (flat)
            pl.BlockSpec((1, WC), lambda i: (0, 0)),           # b1
            pl.BlockSpec((1, WC), lambda i: (0, 0)),           # b2
        ],
        out_specs=pl.BlockSpec((NH, WC), lambda i: (0, 0)),
        scratch_shapes=[pltpu.VMEM((NH, K * WC), jnp.float32)],  # im2col
        compiler_params=pltpu.CompilerParams(
            dimension_semantics=("arbitrary",)),
    )(x_flat, y_flat, w1_flat, w2_flat, b1_t, b2_t)

    return out_flat.reshape(N, H, W, C)


def reference_forward(x, y, w1, b1, w2, b2):
    def conv(a, w, b):
        return lax.conv_general_dilated(
            a, w, window_strides=(1, 1), padding="SAME",
            dimension_numbers=("NHWC", "HWIO", "NHWC")) + b
    v1 = conv(x, w1, b1)
    v2 = jnp.maximum(v1, 0.0)
    v3 = conv(v2, w1, b1)
    v4 = v3 + y
    v5 = jnp.maximum(v4, 0.0)
    v6 = conv(v5, w2, b2)
    return v6 + conv(x, w1, b1)


if __name__ == "__main__":
    key = jax.random.PRNGKey(0)
    k_x, k_y, k_w1, k_b1, k_w2, k_b2 = jax.random.split(key, 6)

    N, H, W, C, K = 2, 16, 16, 16, 7          # Conv2d(16, 16, 7, padding=3)
    fan_in = C * K * K
    bound = 1.0 / math.sqrt(fan_in)           # mimics PyTorch Conv2d init range

    # Parameters (HWIO layout), deterministic.
    w1 = jax.random.uniform(k_w1, (K, K, C, C), jnp.float32, -bound, bound)
    b1 = jax.random.uniform(k_b1, (C,), jnp.float32, -bound, bound)
    w2 = jax.random.uniform(k_w2, (K, K, C, C), jnp.float32, -bound, bound)
    b2 = jax.random.uniform(k_b2, (C,), jnp.float32, -bound, bound)

    # Inputs: x, y in NHWC (PyTorch would be NCHW [2, 16, 16, 16]).
    x = jax.random.normal(k_x, (N, H, W, C), jnp.float32)
    y = jax.random.normal(k_y, (N, H, W, C), jnp.float32)

    # One-time parameter prep (banded weights + tiled biases), outside jit.
    w1_flat, w2_flat, b1_t, b2_t = prepare_params(w1, b1, w2, b2, W)

    out = model_forward(x, y, w1_flat, w2_flat, b1_t, b2_t)
    out = jax.block_until_ready(out)

    ref = reference_forward(x, y, w1, b1, w2, b2)
    assert out.shape == (N, H, W, C)
    assert jnp.allclose(out, ref, atol=1e-3, rtol=1e-3), "mismatch vs lax conv"

    print("KERNEL_OK")
</pallas_src>

<mosaic_0001>
module attributes {stable_mosaic.version = 11 : i64} {
  func.func @_fused_kernel(%arg0: i32, %arg1: memref<32x256xf32, #tpu.memory_space<vmem>>, %arg2: memref<32x256xf32, #tpu.memory_space<vmem>>, %arg3: memref<1792x256xf32, #tpu.memory_space<vmem>>, %arg4: memref<1792x256xf32, #tpu.memory_space<vmem>>, %arg5: memref<1x256xf32, #tpu.memory_space<vmem>>, %arg6: memref<1x256xf32, #tpu.memory_space<vmem>>, %arg7: memref<32x256xf32, #tpu.memory_space<vmem>>, %arg8: memref<32x1792xf32, #tpu.memory_space<vmem>>) attributes {dimension_semantics = [#tpu.dimension_semantics<arbitrary>], iteration_bounds = array<i64: 1>, scalar_prefetch = 0 : i64, scratch_operands = 1 : i64, tpu.core_type = #tpu.core_type<tc>, window_params = [{pipeline_mode = #tpu.pipeline_mode<synchronous>, transform_indices = @transform_0, window_bounds = array<i64: 32, 256>}, {pipeline_mode = #tpu.pipeline_mode<synchronous>, transform_indices = @transform_1, window_bounds = array<i64: 32, 256>}, {pipeline_mode = #tpu.pipeline_mode<synchronous>, transform_indices = @transform_2, window_bounds = array<i64: 1792, 256>}, {pipeline_mode = #tpu.pipeline_mode<synchronous>, transform_indices = @transform_3, window_bounds = array<i64: 1792, 256>}, {pipeline_mode = #tpu.pipeline_mode<synchronous>, transform_indices = @transform_4, window_bounds = array<i64: 1, 256>}, {pipeline_mode = #tpu.pipeline_mode<synchronous>, transform_indices = @transform_5, window_bounds = array<i64: 1, 256>}, {pipeline_mode = #tpu.pipeline_mode<synchronous>, transform_indices = @transform_6, window_bounds = array<i64: 32, 256>}]} {
    %cst = arith.constant 0.000000e+00 : f32
    %0 = vector.broadcast %cst : f32 to vector<32x1792xf32>
    %c0 = arith.constant 0 : index
    %c0_0 = arith.constant 0 : index
    %1 = vector.load %arg8[%c0, %c0_0] : memref<32x1792xf32, #tpu.memory_space<vmem>>, vector<32x1792xf32>
    tpu.vector_store %arg8[%c0, %c0_0], %0 {strides = array<i32>} : memref<32x1792xf32, #tpu.memory_space<vmem>>, vector<32x1792xf32>,
    %c0_1 = arith.constant 0 : index
    %c0_2 = arith.constant 0 : index
    %2 = vector.load %arg1[%c0_1, %c0_2] : memref<32x256xf32, #tpu.memory_space<vmem>>, vector<32x256xf32>
    %3 = vector.extract_strided_slice %2 {offsets = [0, 0], sizes = [13, 256], strides = [1, 1]} : vector<32x256xf32> to vector<13x256xf32>
    %c3 = arith.constant 3 : index
    %c0_3 = arith.constant 0 : index
    %4 = vector.load %arg8[%c3, %c0_3] : memref<32x1792xf32, #tpu.memory_space<vmem>>, vector<13x256xf32>
    tpu.vector_store %arg8[%c3, %c0_3], %3 {strides = array<i32>} : memref<32x1792xf32, #tpu.memory_space<vmem>>, vector<13x256xf32>,
    %5 = vector.extract_strided_slice %2 {offsets = [0, 0], sizes = [14, 256], strides = [1, 1]} : vector<32x256xf32> to vector<14x256xf32>
    %c2 = arith.constant 2 : index
    %c256 = arith.constant 256 : index
    %6 = vector.load %arg8[%c2, %c256] : memref<32x1792xf32, #tpu.memory_space<vmem>>, vector<14x256xf32>
    tpu.vector_store %arg8[%c2, %c256], %5 {strides = array<i32>} : memref<32x1792xf32, #tpu.memory_space<vmem>>, vector<14x256xf32>,
    %7 = vector.extract_strided_slice %2 {offsets = [0, 0], sizes = [15, 256], strides = [1, 1]} : vector<32x256xf32> to vector<15x256xf32>
    %c1 = arith.constant 1 : index
    %c512 = arith.constant 512 : index
    %8 = vector.load %arg8[%c1, %c512] : memref<32x1792xf32, #tpu.memory_space<vmem>>, vector<15x256xf32>
    tpu.vector_store %arg8[%c1, %c512], %7 {strides = array<i32>} : memref<32x1792xf32, #tpu.memory_space<vmem>>, vector<15x256xf32>,
    %9 = vector.extract_strided_slice %2 {offsets = [0, 0], sizes = [16, 256], strides = [1, 1]} : vector<32x256xf32> to vector<16x256xf32>
    %c0_4 = arith.constant 0 : index
    %c768 = arith.constant 768 : index
    %10 = vector.load %arg8[%c0_4, %c768] : memref<32x1792xf32, #tpu.memory_space<vmem>>, vector<16x256xf32>
    tpu.vector_store %arg8[%c0_4, %c768], %9 {strides = array<i32>} : memref<32x1792xf32, #tpu.memory_space<vmem>>, vector<16x256xf32>,
    %11 = vector.extract_strided_slice %2 {offsets = [1, 0], sizes = [15, 256], strides = [1, 1]} : vector<32x256xf32> to vector<15x256xf32>
    %c0_5 = arith.constant 0 : index
    %c1024 = arith.constant 1024 : index
    %12 = vector.load %arg8[%c0_5, %c1024] : memref<32x1792xf32, #tpu.memory_space<vmem>>, vector<15x256xf32>
    tpu.vector_store %arg8[%c0_5, %c1024], %11 {strides = array<i32>} : memref<32x1792xf32, #tpu.memory_space<vmem>>, vector<15x256xf32>,
    %13 = vector.extract_strided_slice %2 {offsets = [2, 0], sizes = [14, 256], strides = [1, 1]} : vector<32x256xf32> to vector<14x256xf32>
    %c0_6 = arith.constant 0 : index
    %c1280 = arith.constant 1280 : index
    %14 = vector.load %arg8[%c0_6, %c1280] : memref<32x1792xf32, #tpu.memory_space<vmem>>, vector<14x256xf32>
    tpu.vector_store %arg8[%c0_6, %c1280], %13 {strides = array<i32>} : memref<32x1792xf32, #tpu.memory_space<vmem>>, vector<14x256xf32>,
    %15 = vector.extract_strided_slice %2 {offsets = [3, 0], sizes = [13, 256], strides = [1, 1]} : vector<32x256xf32> to vector<13x256xf32>
    %c0_7 = arith.constant 0 : index
    %c1536 = arith.constant 1536 : index
    %16 = vector.load %arg8[%c0_7, %c1536] : memref<32x1792xf32, #tpu.memory_space<vmem>>, vector<13x256xf32>
    tpu.vector_store %arg8[%c0_7, %c1536], %15 {strides = array<i32>} : memref<32x1792xf32, #tpu.memory_space<vmem>>, vector<13x256xf32>,
    %17 = vector.extract_strided_slice %2 {offsets = [16, 0], sizes = [13, 256], strides = [1, 1]} : vector<32x256xf32> to vector<13x256xf32>
    %c19 = arith.constant 19 : index
    %c0_8 = arith.constant 0 : index
    %18 = vector.load %arg8[%c19, %c0_8] : memref<32x1792xf32, #tpu.memory_space<vmem>>, vector<13x256xf32>
    tpu.vector_store %arg8[%c19, %c0_8], %17 {strides = array<i32>} : memref<32x1792xf32, #tpu.memory_space<vmem>>, vector<13x256xf32>,
    %19 = vector.extract_strided_slice %2 {offsets = [16, 0], sizes = [14, 256], strides = [1, 1]} : vector<32x256xf32> to vector<14x256xf32>
    %c18 = arith.constant 18 : index
    %c256_9 = arith.constant 256 : index
    %20 = vector.load %arg8[%c18, %c256_9] : memref<32x1792xf32, #tpu.memory_space<vmem>>, vector<14x256xf32>
    tpu.vector_store %arg8[%c18, %c256_9], %19 {strides = array<i32>} : memref<32x1792xf32, #tpu.memory_space<vmem>>, vector<14x256xf32>,
    %21 = vector.extract_strided_slice %2 {offsets = [16, 0], sizes = [15, 256], strides = [1, 1]} : vector<32x256xf32> to vector<15x256xf32>
    %c17 = arith.constant 17 : index
    %c512_10 = arith.constant 512 : index
    %22 = vector.load %arg8[%c17, %c512_10] : memref<32x1792xf32, #tpu.memory_space<vmem>>, vector<15x256xf32>
    tpu.vector_store %arg8[%c17, %c512_10], %21 {strides = array<i32>} : memref<32x1792xf32, #tpu.memory_space<vmem>>, vector<15x256xf32>,
    %23 = vector.extract_strided_slice %2 {offsets = [16, 0], sizes = [16, 256], strides = [1, 1]} : vector<32x256xf32> to vector<16x256xf32>
    %c16 = arith.constant 16 : index
    %c768_11 = arith.constant 768 : index
    %24 = vector.load %arg8[%c16, %c768_11] : memref<32x1792xf32, #tpu.memory_space<vmem>>, vector<16x256xf32>
    tpu.vector_store %arg8[%c16, %c768_11], %23 {strides = array<i32>} : memref<32x1792xf32, #tpu.memory_space<vmem>>, vector<16x256xf32>,
    %25 = vector.extract_strided_slice %2 {offsets = [17, 0], sizes = [15, 256], strides = [1, 1]} : vector<32x256xf32> to vector<15x256xf32>
    %c16_12 = arith.constant 16 : index
    %c1024_13 = arith.constant 1024 : index
    %26 = vector.load %arg8[%c16_12, %c1024_13] : memref<32x1792xf32, #tpu.memory_space<vmem>>, vector<15x256xf32>
    tpu.vector_store %arg8[%c16_12, %c1024_13], %25 {strides = array<i32>} : memref<32x1792xf32, #tpu.memory_space<vmem>>, vector<15x256xf32>,
    %27 = vector.extract_strided_slice %2 {offsets = [18, 0], sizes = [14, 256], strides = [1, 1]} : vector<32x256xf32> to vector<14x256xf32>
    %c16_14 = arith.constant 16 : index
    %c1280_15 = arith.constant 1280 : index
    %28 = vector.load %arg8[%c16_14, %c1280_15] : memref<32x1792xf32, #tpu.memory_space<vmem>>, vector<14x256xf32>
    tpu.vector_store %arg8[%c16_14, %c1280_15], %27 {strides = array<i32>} : memref<32x1792xf32, #tpu.memory_space<vmem>>, vector<14x256xf32>,
    %29 = vector.extract_strided_slice %2 {offsets = [19, 0], sizes = [13, 256], strides = [1, 1]} : vector<32x256xf32> to vector<13x256xf32>
    %c16_16 = arith.constant 16 : index
    %c1536_17 = arith.constant 1536 : index
    %30 = vector.load %arg8[%c16_16, %c1536_17] : memref<32x1792xf32, #tpu.memory_space<vmem>>, vector<13x256xf32>
    tpu.vector_store %arg8[%c16_16, %c1536_17], %29 {strides = array<i32>} : memref<32x1792xf32, #tpu.memory_space<vmem>>, vector<13x256xf32>,
    %c0_18 = arith.constant 0 : index
    %c0_19 = arith.constant 0 : index
    %31 = vector.load %arg8[%c0_18, %c0_19] : memref<32x1792xf32, #tpu.memory_space<vmem>>, vector<32x1792xf32>
    %c0_20 = arith.constant 0 : index
    %c0_21 = arith.constant 0 : index
    %32 = vector.load %arg3[%c0_20, %c0_21] : memref<1792x256xf32, #tpu.memory_space<vmem>>, vector<1792x256xf32>
    %cst_22 = arith.constant dense<0.000000e+00> : vector<32x256xf32>
    %33 = tpu.matmul %31, %32, %cst_22 {dimension_numbers = #tpu.dot_dimension_numbers<[1], [0], [0], [1], [0, 0, 1, 1], [], []>} : vector<32x1792xf32>, vector<1792x256xf32>, vector<32x256xf32> -> vector<32x256xf32>
    %c0_23 = arith.constant 0 : index
    %c0_24 = arith.constant 0 : index
    %34 = vector.load %arg5[%c0_23, %c0_24] : memref<1x256xf32, #tpu.memory_space<vmem>>, vector<1x256xf32>
    %35 = vector.broadcast %34 : vector<1x256xf32> to vector<32x256xf32>
    %36 = arith.addf %33, %35 : vector<32x256xf32>
    %cst_25 = arith.constant 0.000000e+00 : f32
    %37 = vector.broadcast %cst_25 : f32 to vector<32x256xf32>
    %38 = arith.maximumf %36, %37 : vector<32x256xf32>
    %39 = vector.extract_strided_slice %38 {offsets = [0, 0], sizes = [13, 256], strides = [1, 1]} : vector<32x256xf32> to vector<13x256xf32>
    %c3_26 = arith.constant 3 : index
    %c0_27 = arith.constant 0 : index
    %40 = vector.load %arg8[%c3_26, %c0_27] : memref<32x1792xf32, #tpu.memory_space<vmem>>, vector<13x256xf32>
    tpu.vector_store %arg8[%c3_26, %c0_27], %39 {strides = array<i32>} : memref<32x1792xf32, #tpu.memory_space<vmem>>, vector<13x256xf32>,
    %41 = vector.extract_strided_slice %38 {offsets = [0, 0], sizes = [14, 256], strides = [1, 1]} : vector<32x256xf32> to vector<14x256xf32>
    %c2_28 = arith.constant 2 : index
    %c256_29 = arith.constant 256 : index
    %42 = vector.load %arg8[%c2_28, %c256_29] : memref<32x1792xf32, #tpu.memory_space<vmem>>, vector<14x256xf32>
    tpu.vector_store %arg8[%c2_28, %c256_29], %41 {strides = array<i32>} : memref<32x1792xf32, #tpu.memory_space<vmem>>, vector<14x256xf32>,
    %43 = vector.extract_strided_slice %38 {offsets = [0, 0], sizes = [15, 256], strides = [1, 1]} : vector<32x256xf32> to vector<15x256xf32>
    %c1_30 = arith.constant 1 : index
    %c512_31 = arith.constant 512 : index
    %44 = vector.load %arg8[%c1_30, %c512_31] : memref<32x1792xf32, #tpu.memory_space<vmem>>, vector<15x256xf32>
    tpu.vector_store %arg8[%c1_30, %c512_31], %43 {strides = array<i32>} : memref<32x1792xf32, #tpu.memory_space<vmem>>, vector<15x256xf32>,
    %45 = vector.extract_strided_slice %38 {offsets = [0, 0], sizes = [16, 256], strides = [1, 1]} : vector<32x256xf32> to vector<16x256xf32>
    %c0_32 = arith.constant 0 : index
    %c768_33 = arith.constant 768 : index
    %46 = vector.load %arg8[%c0_32, %c768_33] : memref<32x1792xf32, #tpu.memory_space<vmem>>, vector<16x256xf32>
    tpu.vector_store %arg8[%c0_32, %c768_33], %45 {strides = array<i32>} : memref<32x1792xf32, #tpu.memory_space<vmem>>, vector<16x256xf32>,
    %47 = vector.extract_strided_slice %38 {offsets = [1, 0], sizes = [15, 256], strides = [1, 1]} : vector<32x256xf32> to vector<15x256xf32>
    %c0_34 = arith.constant 0 : index
    %c1024_35 = arith.constant 1024 : index
    %48 = vector.load %arg8[%c0_34, %c1024_35] : memref<32x1792xf32, #tpu.memory_space<vmem>>, vector<15x256xf32>
    tpu.vector_store %arg8[%c0_34, %c1024_35], %47 {strides = array<i32>} : memref<32x1792xf32, #tpu.memory_space<vmem>>, vector<15x256xf32>,
    %49 = vector.extract_strided_slice %38 {offsets = [2, 0], sizes = [14, 256], strides = [1, 1]} : vector<32x256xf32> to vector<14x256xf32>
    %c0_36 = arith.constant 0 : index
    %c1280_37 = arith.constant 1280 : index
    %50 = vector.load %arg8[%c0_36, %c1280_37] : memref<32x1792xf32, #tpu.memory_space<vmem>>, vector<14x256xf32>
    tpu.vector_store %arg8[%c0_36, %c1280_37], %49 {strides = array<i32>} : memref<32x1792xf32, #tpu.memory_space<vmem>>, vector<14x256xf32>,
    %51 = vector.extract_strided_slice %38 {offsets = [3, 0], sizes = [13, 256], strides = [1, 1]} : vector<32x256xf32> to vector<13x256xf32>
    %c0_38 = arith.constant 0 : index
    %c1536_39 = arith.constant 1536 : index
    %52 = vector.load %arg8[%c0_38, %c1536_39] : memref<32x1792xf32, #tpu.memory_space<vmem>>, vector<13x256xf32>
    tpu.vector_store %arg8[%c0_38, %c1536_39], %51 {strides = array<i32>} : memref<32x1792xf32, #tpu.memory_space<vmem>>, vector<13x256xf32>,
    %53 = vector.extract_strided_slice %38 {offsets = [16, 0], sizes = [13, 256], strides = [1, 1]} : vector<32x256xf32> to vector<13x256xf32>
    %c19_40 = arith.constant 19 : index
    %c0_41 = arith.constant 0 : index
    %54 = vector.load %arg8[%c19_40, %c0_41] : memref<32x1792xf32, #tpu.memory_space<vmem>>, vector<13x256xf32>
    tpu.vector_store %arg8[%c19_40, %c0_41], %53 {strides = array<i32>} : memref<32x1792xf32, #tpu.memory_space<vmem>>, vector<13x256xf32>,
    %55 = vector.extract_strided_slice %38 {offsets = [16, 0], sizes = [14, 256], strides = [1, 1]} : vector<32x256xf32> to vector<14x256xf32>
    %c18_42 = arith.constant 18 : index
    %c256_43 = arith.constant 256 : index
    %56 = vector.load %arg8[%c18_42, %c256_43] : memref<32x1792xf32, #tpu.memory_space<vmem>>, vector<14x256xf32>
    tpu.vector_store %arg8[%c18_42, %c256_43], %55 {strides = array<i32>} : memref<32x1792xf32, #tpu.memory_space<vmem>>, vector<14x256xf32>,
    %57 = vector.extract_strided_slice %38 {offsets = [16, 0], sizes = [15, 256], strides = [1, 1]} : vector<32x256xf32> to vector<15x256xf32>
    %c17_44 = arith.constant 17 : index
    %c512_45 = arith.constant 512 : index
    %58 = vector.load %arg8[%c17_44, %c512_45] : memref<32x1792xf32, #tpu.memory_space<vmem>>, vector<15x256xf32>
    tpu.vector_store %arg8[%c17_44, %c512_45], %57 {strides = array<i32>} : memref<32x1792xf32, #tpu.memory_space<vmem>>, vector<15x256xf32>,
    %59 = vector.extract_strided_slice %38 {offsets = [16, 0], sizes = [16, 256], strides = [1, 1]} : vector<32x256xf32> to vector<16x256xf32>
    %c16_46 = arith.constant 16 : index
    %c768_47 = arith.constant 768 : index
    %60 = vector.load %arg8[%c16_46, %c768_47] : memref<32x1792xf32, #tpu.memory_space<vmem>>, vector<16x256xf32>
    tpu.vector_store %arg8[%c16_46, %c768_47], %59 {strides = array<i32>} : memref<32x1792xf32, #tpu.memory_space<vmem>>, vector<16x256xf32>,
    %61 = vector.extract_strided_slice %38 {offsets = [17, 0], sizes = [15, 256], strides = [1, 1]} : vector<32x256xf32> to vector<15x256xf32>
    %c16_48 = arith.constant 16 : index
    %c1024_49 = arith.constant 1024 : index
    %62 = vector.load %arg8[%c16_48, %c1024_49] : memref<32x1792xf32, #tpu.memory_space<vmem>>, vector<15x256xf32>
    tpu.vector_store %arg8[%c16_48, %c1024_49], %61 {strides = array<i32>} : memref<32x1792xf32, #tpu.memory_space<vmem>>, vector<15x256xf32>,
    %63 = vector.extract_strided_slice %38 {offsets = [18, 0], sizes = [14, 256], strides = [1, 1]} : vector<32x256xf32> to vector<14x256xf32>
    %c16_50 = arith.constant 16 : index
    %c1280_51 = arith.constant 1280 : index
    %64 = vector.load %arg8[%c16_50, %c1280_51] : memref<32x1792xf32, #tpu.memory_space<vmem>>, vector<14x256xf32>
    tpu.vector_store %arg8[%c16_50, %c1280_51], %63 {strides = array<i32>} : memref<32x1792xf32, #tpu.memory_space<vmem>>, vector<14x256xf32>,
    %65 = vector.extract_strided_slice %38 {offsets = [19, 0], sizes = [13, 256], strides = [1, 1]} : vector<32x256xf32> to vector<13x256xf32>
    %c16_52 = arith.constant 16 : index
    %c1536_53 = arith.constant 1536 : index
    %66 = vector.load %arg8[%c16_52, %c1536_53] : memref<32x1792xf32, #tpu.memory_space<vmem>>, vector<13x256xf32>
    tpu.vector_store %arg8[%c16_52, %c1536_53], %65 {strides = array<i32>} : memref<32x1792xf32, #tpu.memory_space<vmem>>, vector<13x256xf32>,
    %c0_54 = arith.constant 0 : index
    %c0_55 = arith.constant 0 : index
    %67 = vector.load %arg8[%c0_54, %c0_55] : memref<32x1792xf32, #tpu.memory_space<vmem>>, vector<32x1792xf32>
    %c0_56 = arith.constant 0 : index
    %c0_57 = arith.constant 0 : index
    %68 = vector.load %arg3[%c0_56, %c0_57] : memref<1792x256xf32, #tpu.memory_space<vmem>>, vector<1792x256xf32>
    %cst_58 = arith.constant dense<0.000000e+00> : vector<32x256xf32>
    %69 = tpu.matmul %67, %68, %cst_58 {dimension_numbers = #tpu.dot_dimension_numbers<[1], [0], [0], [1], [0, 0, 1, 1], [], []>} : vector<32x1792xf32>, vector<1792x256xf32>, vector<32x256xf32> -> vector<32x256xf32>
    %c0_59 = arith.constant 0 : index
    %c0_60 = arith.constant 0 : index
    %70 = vector.load %arg5[%c0_59, %c0_60] : memref<1x256xf32, #tpu.memory_space<vmem>>, vector<1x256xf32>
    %71 = vector.broadcast %70 : vector<1x256xf32> to vector<32x256xf32>
    %72 = arith.addf %69, %71 : vector<32x256xf32>
    %c0_61 = arith.constant 0 : index
    %c0_62 = arith.constant 0 : index
    %73 = vector.load %arg2[%c0_61, %c0_62] : memref<32x256xf32, #tpu.memory_space<vmem>>, vector<32x256xf32>
    %74 = arith.addf %72, %73 : vector<32x256xf32>
    %cst_63 = arith.constant 0.000000e+00 : f32
    %75 = vector.broadcast %cst_63 : f32 to vector<32x256xf32>
    %76 = arith.maximumf %74, %75 : vector<32x256xf32>
    %77 = vector.extract_strided_slice %76 {offsets = [0, 0], sizes = [13, 256], strides = [1, 1]} : vector<32x256xf32> to vector<13x256xf32>
    %c3_64 = arith.constant 3 : index
    %c0_65 = arith.constant 0 : index
    %78 = vector.load %arg8[%c3_64, %c0_65] : memref<32x1792xf32, #tpu.memory_space<vmem>>, vector<13x256xf32>
    tpu.vector_store %arg8[%c3_64, %c0_65], %77 {strides = array<i32>} : memref<32x1792xf32, #tpu.memory_space<vmem>>, vector<13x256xf32>,
    %79 = vector.extract_strided_slice %76 {offsets = [0, 0], sizes = [14, 256], strides = [1, 1]} : vector<32x256xf32> to vector<14x256xf32>
    %c2_66 = arith.constant 2 : index
    %c256_67 = arith.constant 256 : index
    %80 = vector.load %arg8[%c2_66, %c256_67] : memref<32x1792xf32, #tpu.memory_space<vmem>>, vector<14x256xf32>
    tpu.vector_store %arg8[%c2_66, %c256_67], %79 {strides = array<i32>} : memref<32x1792xf32, #tpu.memory_space<vmem>>, vector<14x256xf32>,
    %81 = vector.extract_strided_slice %76 {offsets = [0, 0], sizes = [15, 256], strides = [1, 1]} : vector<32x256xf32> to vector<15x256xf32>
    %c1_68 = arith.constant 1 : index
    %c512_69 = arith.constant 512 : index
    %82 = vector.load %arg8[%c1_68, %c512_69] : memref<32x1792xf32, #tpu.memory_space<vmem>>, vector<15x256xf32>
    tpu.vector_store %arg8[%c1_68, %c512_69], %81 {strides = array<i32>} : memref<32x1792xf32, #tpu.memory_space<vmem>>, vector<15x256xf32>,
    %83 = vector.extract_strided_slice %76 {offsets = [0, 0], sizes = [16, 256], strides = [1, 1]} : vector<32x256xf32> to vector<16x256xf32>
    %c0_70 = arith.constant 0 : index
    %c768_71 = arith.constant 768 : index
    %84 = vector.load %arg8[%c0_70, %c768_71] : memref<32x1792xf32, #tpu.memory_space<vmem>>, vector<16x256xf32>
    tpu.vector_store %arg8[%c0_70, %c768_71], %83 {strides = array<i32>} : memref<32x1792xf32, #tpu.memory_space<vmem>>, vector<16x256xf32>,
    %85 = vector.extract_strided_slice %76 {offsets = [1, 0], sizes = [15, 256], strides = [1, 1]} : vector<32x256xf32> to vector<15x256xf32>
    %c0_72 = arith.constant 0 : index
    %c1024_73 = arith.constant 1024 : index
    %86 = vector.load %arg8[%c0_72, %c1024_73] : memref<32x1792xf32, #tpu.memory_space<vmem>>, vector<15x256xf32>
    tpu.vector_store %arg8[%c0_72, %c1024_73], %85 {strides = array<i32>} : memref<32x1792xf32, #tpu.memory_space<vmem>>, vector<15x256xf32>,
    %87 = vector.extract_strided_slice %76 {offsets = [2, 0], sizes = [14, 256], strides = [1, 1]} : vector<32x256xf32> to vector<14x256xf32>
    %c0_74 = arith.constant 0 : index
    %c1280_75 = arith.constant 1280 : index
    %88 = vector.load %arg8[%c0_74, %c1280_75] : memref<32x1792xf32, #tpu.memory_space<vmem>>, vector<14x256xf32>
    tpu.vector_store %arg8[%c0_74, %c1280_75], %87 {strides = array<i32>} : memref<32x1792xf32, #tpu.memory_space<vmem>>, vector<14x256xf32>,
    %89 = vector.extract_strided_slice %76 {offsets = [3, 0], sizes = [13, 256], strides = [1, 1]} : vector<32x256xf32> to vector<13x256xf32>
    %c0_76 = arith.constant 0 : index
    %c1536_77 = arith.constant 1536 : index
    %90 = vector.load %arg8[%c0_76, %c1536_77] : memref<32x1792xf32, #tpu.memory_space<vmem>>, vector<13x256xf32>
    tpu.vector_store %arg8[%c0_76, %c1536_77], %89 {strides = array<i32>} : memref<32x1792xf32, #tpu.memory_space<vmem>>, vector<13x256xf32>,
    %91 = vector.extract_strided_slice %76 {offsets = [16, 0], sizes = [13, 256], strides = [1, 1]} : vector<32x256xf32> to vector<13x256xf32>
    %c19_78 = arith.constant 19 : index
    %c0_79 = arith.constant 0 : index
    %92 = vector.load %arg8[%c19_78, %c0_79] : memref<32x1792xf32, #tpu.memory_space<vmem>>, vector<13x256xf32>
    tpu.vector_store %arg8[%c19_78, %c0_79], %91 {strides = array<i32>} : memref<32x1792xf32, #tpu.memory_space<vmem>>, vector<13x256xf32>,
    %93 = vector.extract_strided_slice %76 {offsets = [16, 0], sizes = [14, 256], strides = [1, 1]} : vector<32x256xf32> to vector<14x256xf32>
    %c18_80 = arith.constant 18 : index
    %c256_81 = arith.constant 256 : index
    %94 = vector.load %arg8[%c18_80, %c256_81] : memref<32x1792xf32, #tpu.memory_space<vmem>>, vector<14x256xf32>
    tpu.vector_store %arg8[%c18_80, %c256_81], %93 {strides = array<i32>} : memref<32x1792xf32, #tpu.memory_space<vmem>>, vector<14x256xf32>,
    %95 = vector.extract_strided_slice %76 {offsets = [16, 0], sizes = [15, 256], strides = [1, 1]} : vector<32x256xf32> to vector<15x256xf32>
    %c17_82 = arith.constant 17 : index
    %c512_83 = arith.constant 512 : index
    %96 = vector.load %arg8[%c17_82, %c512_83] : memref<32x1792xf32, #tpu.memory_space<vmem>>, vector<15x256xf32>
    tpu.vector_store %arg8[%c17_82, %c512_83], %95 {strides = array<i32>} : memref<32x1792xf32, #tpu.memory_space<vmem>>, vector<15x256xf32>,
    %97 = vector.extract_strided_slice %76 {offsets = [16, 0], sizes = [16, 256], strides = [1, 1]} : vector<32x256xf32> to vector<16x256xf32>
    %c16_84 = arith.constant 16 : index
    %c768_85 = arith.constant 768 : index
    %98 = vector.load %arg8[%c16_84, %c768_85] : memref<32x1792xf32, #tpu.memory_space<vmem>>, vector<16x256xf32>
    tpu.vector_store %arg8[%c16_84, %c768_85], %97 {strides = array<i32>} : memref<32x1792xf32, #tpu.memory_space<vmem>>, vector<16x256xf32>,
    %99 = vector.extract_strided_slice %76 {offsets = [17, 0], sizes = [15, 256], strides = [1, 1]} : vector<32x256xf32> to vector<15x256xf32>
    %c16_86 = arith.constant 16 : index
    %c1024_87 = arith.constant 1024 : index
    %100 = vector.load %arg8[%c16_86, %c1024_87] : memref<32x1792xf32, #tpu.memory_space<vmem>>, vector<15x256xf32>
    tpu.vector_store %arg8[%c16_86, %c1024_87], %99 {strides = array<i32>} : memref<32x1792xf32, #tpu.memory_space<vmem>>, vector<15x256xf32>,
    %101 = vector.extract_strided_slice %76 {offsets = [18, 0], sizes = [14, 256], strides = [1, 1]} : vector<32x256xf32> to vector<14x256xf32>
    %c16_88 = arith.constant 16 : index
    %c1280_89 = arith.constant 1280 : index
    %102 = vector.load %arg8[%c16_88, %c1280_89] : memref<32x1792xf32, #tpu.memory_space<vmem>>, vector<14x256xf32>
    tpu.vector_store %arg8[%c16_88, %c1280_89], %101 {strides = array<i32>} : memref<32x1792xf32, #tpu.memory_space<vmem>>, vector<14x256xf32>,
    %103 = vector.extract_strided_slice %76 {offsets = [19, 0], sizes = [13, 256], strides = [1, 1]} : vector<32x256xf32> to vector<13x256xf32>
    %c16_90 = arith.constant 16 : index
    %c1536_91 = arith.constant 1536 : index
    %104 = vector.load %arg8[%c16_90, %c1536_91] : memref<32x1792xf32, #tpu.memory_space<vmem>>, vector<13x256xf32>
    tpu.vector_store %arg8[%c16_90, %c1536_91], %103 {strides = array<i32>} : memref<32x1792xf32, #tpu.memory_space<vmem>>, vector<13x256xf32>,
    %c0_92 = arith.constant 0 : index
    %c0_93 = arith.constant 0 : index
    %105 = vector.load %arg8[%c0_92, %c0_93] : memref<32x1792xf32, #tpu.memory_space<vmem>>, vector<32x1792xf32>
    %c0_94 = arith.constant 0 : index
    %c0_95 = arith.constant 0 : index
    %106 = vector.load %arg4[%c0_94, %c0_95] : memref<1792x256xf32, #tpu.memory_space<vmem>>, vector<1792x256xf32>
    %cst_96 = arith.constant dense<0.000000e+00> : vector<32x256xf32>
    %107 = tpu.matmul %105, %106, %cst_96 {dimension_numbers = #tpu.dot_dimension_numbers<[1], [0], [0], [1], [0, 0, 1, 1], [], []>} : vector<32x1792xf32>, vector<1792x256xf32>, vector<32x256xf32> -> vector<32x256xf32>
    %c0_97 = arith.constant 0 : index
    %c0_98 = arith.constant 0 : index
    %108 = vector.load %arg6[%c0_97, %c0_98] : memref<1x256xf32, #tpu.memory_space<vmem>>, vector<1x256xf32>
    %109 = vector.broadcast %108 : vector<1x256xf32> to vector<32x256xf32>
    %110 = arith.addf %107, %109 : vector<32x256xf32>
    %111 = arith.addf %110, %36 : vector<32x256xf32>
    %c0_99 = arith.constant 0 : index
    %c0_100 = arith.constant 0 : index
    %112 = vector.load %arg7[%c0_99, %c0_100] : memref<32x256xf32, #tpu.memory_space<vmem>>, vector<32x256xf32>
    tpu.vector_store %arg7[%c0_99, %c0_100], %111 {strides = array<i32>} : memref<32x256xf32, #tpu.memory_space<vmem>>, vector<32x256xf32>,
    return
  }
  func.func @transform_0(%arg0: i32) -> (i32, i32) {
    %c0_i32 = arith.constant 0 : i32
    %c0_i32_0 = arith.constant 0 : i32
    %c0_i32_1 = arith.constant 0 : i32
    return %c0_i32, %c0_i32_0 : i32, i32
  }
  func.func @transform_1(%arg0: i32) -> (i32, i32) {
    %c0_i32 = arith.constant 0 : i32
    %c0_i32_0 = arith.constant 0 : i32
    %c0_i32_1 = arith.constant 0 : i32
    return %c0_i32, %c0_i32_0 : i32, i32
  }
  func.func @transform_2(%arg0: i32) -> (i32, i32) {
    %c0_i32 = arith.constant 0 : i32
    %c0_i32_0 = arith.constant 0 : i32
    %c0_i32_1 = arith.constant 0 : i32
    return %c0_i32, %c0_i32_0 : i32, i32
  }
  func.func @transform_3(%arg0: i32) -> (i32, i32) {
    %c0_i32 = arith.constant 0 : i32
    %c0_i32_0 = arith.constant 0 : i32
    %c0_i32_1 = arith.constant 0 : i32
    return %c0_i32, %c0_i32_0 : i32, i32
  }
  func.func @transform_4(%arg0: i32) -> (i32, i32) {
    %c0_i32 = arith.constant 0 : i32
    %c0_i32_0 = arith.constant 0 : i32
    %c0_i32_1 = arith.constant 0 : i32
    return %c0_i32, %c0_i32_0 : i32, i32
  }
  func.func @transform_5(%arg0: i32) -> (i32, i32) {
    %c0_i32 = arith.constant 0 : i32
    %c0_i32_0 = arith.constant 0 : i32
    %c0_i32_1 = arith.constant 0 : i32
    return %c0_i32, %c0_i32_0 : i32, i32
  }
  func.func @transform_6(%arg0: i32) -> (i32, i32) {
    %c0_i32 = arith.constant 0 : i32
    %c0_i32_0 = arith.constant 0 : i32
    %c0_i32_1 = arith.constant 0 : i32
    return %c0_i32, %c0_i32_0 : i32, i32
  }
}

</mosaic_0001>

<llo_original>
// kernel: model_forward.1
$region0: #{model_forward.1}
  #allocation0 [shape = 'u32[]', space=smem, size = 0x4, offset = 0x4, fixed_abs, tag = 'smem constant byte address 0x4 - core index']
  #allocation1 [shape = 'u32[144,128]{1,0:T(1,128)}', space=vmem, size = 0x12000, scoped, tag = 'internal scratch']
  #allocation2 [shape = 'f32[32,1792]{1,0:T(8,128)}', space=vmem, size = 0x38000, scoped, tag = 'scratch operand']
  %s0 = inlined_call_operand.vmem [shape: f32[32,256], index: 0, kind: input, shape index: {}]
  %s1 = inlined_call_operand.vmem [shape: f32[32,256], index: 1, kind: input, shape index: {}]
  %s2 = inlined_call_operand.hbm [shape: f32[1792,256], index: 2, kind: input, shape index: {}]
  %s3 = inlined_call_operand.hbm [shape: f32[1792,256], index: 3, kind: input, shape index: {}]
  %s4 = inlined_call_operand.hbm [shape: f32[1,256], index: 4, kind: input, shape index: {}]
  %s5 = inlined_call_operand.hbm [shape: f32[1,256], index: 5, kind: input, shape index: {}]
  %s6 = inlined_call_operand.vmem [shape: f32[32,256], index: 6, kind: output, shape index: {}]
  %s7 = sld [smem:[#allocation0]]
  $region50: #{model_forward.1} parent=0
    _
  %s9 = ssub.s32 1, %s7
  %s10 = scalar_select 0, %s9, %s7
  $region1: #{model_forward.1} parent=0
    #allocation3 [shape = 'u8[1835008]{0}', space=vmem, size = 0x1c0000, scoped, tag = 'input window, operand 2, single buffered']
    #allocation4 [shape = 's32[1]{0}', space=sflag, size = 0x4, scoped, tag = 'scoped memory for model_forward.1']
    #allocation5 [shape = 'u8[1835008]{0}', space=vmem, size = 0x1c0000, scoped, tag = 'input window, operand 3, single buffered']
    #allocation6 [shape = 's32[1]{0}', space=sflag, size = 0x4, scoped, tag = 'scoped memory for model_forward.1']
    #allocation7 [shape = 'u8[1024]{0}', space=vmem, size = 0x400, scoped, tag = 'input window, operand 4, single buffered']
    #allocation8 [shape = 'u8[1024]{0}', space=vmem, size = 0x400, scoped, tag = 'input window, operand 5, single buffered']
    #allocation9 [shape = 's32[1]{0}', space=sflag, size = 0x4, scoped, tag = 'scoped memory for model_forward.1']
    %11 = vsyncpa [#allocation4], 0
    %12 = vsyncpa [#allocation6], 0
    %13 = vsyncpa [#allocation9], 0
    // Predicated region
    $region2: #{model_forward.1} parent=1 // pred_check
      _
    $region3: #{model_forward.1} parent=1 // pred_check_branch
      %15 = sbr.rel (0) target = $region5
    $region4: #{model_forward.1} parent=1 // pred_region
      _
    $region5: #{model_forward.1} parent=1 // pred_fallthru
      _
    // Predicated region
    $region6: #{model_forward.1} parent=1 // pred_check
      _
    $region7: #{model_forward.1} parent=1 // pred_check_branch
      %17 = sbr.rel (0) target = $region9
    $region8: #{model_forward.1} parent=1 // pred_region
      _
    $region9: #{model_forward.1} parent=1 // pred_fallthru
      _
    // Predicated region
    $region10: #{model_forward.1} parent=1 // pred_check
      _
    $region11: #{model_forward.1} parent=1 // pred_check_branch
      %19 = sbr.rel (0) target = $region13
    $region12: #{model_forward.1} parent=1 // pred_region
      %s21 = ssub.s32 57344, 57344
      %22 = vsyncadd [#allocation4], %s21
      %s23 = sshll.u32 [#allocation3], 4
      %s24 = int_to_ptr.vmem [resolvable:$true] %s23
      %29 = dma.hbm_to_vmem [thread:$0]  %s2, 57344, %s24, [#allocation4], 256, 256, 16
    $region13: #{model_forward.1} parent=1 // pred_fallthru
      _
    // Predicated region
    $region14: #{model_forward.1} parent=1 // pred_check
      _
    $region15: #{model_forward.1} parent=1 // pred_check_branch
      %31 = sbr.rel (0) target = $region17
    $region16: #{model_forward.1} parent=1 // pred_region
      %s33 = ssub.s32 57344, 57344
      %34 = vsyncadd [#allocation6], %s33
      %s35 = sshll.u32 [#allocation5], 4
      %s36 = int_to_ptr.vmem [resolvable:$true] %s35
      %41 = dma.hbm_to_vmem [thread:$0]  %s3, 57344, %s36, [#allocation6], 256, 256, 16
    $region17: #{model_forward.1} parent=1 // pred_fallthru
      _
    // Predicated region
    $region18: #{model_forward.1} parent=1 // pred_check
      _
    $region19: #{model_forward.1} parent=1 // pred_check_branch
      %43 = sbr.rel (0) target = $region21
    $region20: #{model_forward.1} parent=1 // pred_region
      %s45 = ssub.s32 32, 32
      %46 = vsyncadd [#allocation6], %s45
      %s48 = sshll.u32 [#allocation7], 4
      %s49 = int_to_ptr.vmem [resolvable:$true] %s48
      %51 = dma.hbm_to_vmem [thread:$0]  %s4, 32, %s49, [#allocation6]
    $region21: #{model_forward.1} parent=1 // pred_fallthru
      _
    // Predicated region
    $region22: #{model_forward.1} parent=1 // pred_check
      _
    $region23: #{model_forward.1} parent=1 // pred_check_branch
      %53 = sbr.rel (0) target = $region25
    $region24: #{model_forward.1} parent=1 // pred_region
      %s55 = ssub.s32 32, 32
      %56 = vsyncadd [#allocation9], %s55
      %s58 = sshll.u32 [#allocation8], 4
      %s59 = int_to_ptr.vmem [resolvable:$true] %s58
      %61 = dma.hbm_to_vmem [thread:$0]  %s5, 32, %s59, [#allocation9]
    $region25: #{model_forward.1} parent=1 // pred_fallthru
      _
    // Predicated region
    $region26: #{model_forward.1} parent=1 // pred_check
      _
    $region27: #{model_forward.1} parent=1 // pred_check_branch
      %63 = sbr.rel (0) target = $region29
    $region28: #{model_forward.1} parent=1 // pred_region
      %64 = dma.done [#allocation4], 57344
    $region29: #{model_forward.1} parent=1 // pred_fallthru
      _
    // Predicated region
    $region30: #{model_forward.1} parent=1 // pred_check
      _
    $region31: #{model_forward.1} parent=1 // pred_check_branch
      %66 = sbr.rel (0) target = $region33
    $region32: #{model_forward.1} parent=1 // pred_region
      %67 = dma.done [#allocation6], 57344
    $region33: #{model_forward.1} parent=1 // pred_fallthru
      _
    // Predicated region
    $region34: #{model_forward.1} parent=1 // pred_check
      _
    $region35: #{model_forward.1} parent=1 // pred_check_branch
      %69 = sbr.rel (0) target = $region37
    $region36: #{model_forward.1} parent=1 // pred_region
      %70 = dma.done [#allocation6], 32
    $region37: #{model_forward.1} parent=1 // pred_fallthru
      _
    // Predicated region
    $region38: #{model_forward.1} parent=1 // pred_check
      _
    $region39: #{model_forward.1} parent=1 // pred_check_branch
      %72 = sbr.rel (0) target = $region41
    $region40: #{model_forward.1} parent=1 // pred_region
      %73 = dma.done [#allocation9], 32
    $region41: #{model_forward.1} parent=1 // pred_fallthru
      _
    %74 = vst [vmem:[#allocation2] sm:$0xff] 0.0
    %75 = vst [vmem:[#allocation2 + $0x8] sm:$0xff] 0.0
    %76 = vst [vmem:[#allocation2 + $0x10] sm:$0xff] 0.0
    %77 = vst [vmem:[#allocation2 + $0x18] sm:$0xff] 0.0
    %78 = vst [vmem:[#allocation2 + $0x20] sm:$0xff] 0.0
    %79 = vst [vmem:[#allocation2 + $0x28] sm:$0xff] 0.0
    %80 = vst [vmem:[#allocation2 + $0x30] sm:$0xff] 0.0
    %81 = vst [vmem:[#allocation2 + $0x38] sm:$0xff] 0.0
    %82 = vst [vmem:[#allocation2 + $0x40] sm:$0xff] 0.0
    %83 = vst [vmem:[#allocation2 + $0x48] sm:$0xff] 0.0
    %84 = vst [vmem:[#allocation2 + $0x50] sm:$0xff] 0.0
    %85 = vst [vmem:[#allocation2 + $0x58] sm:$0xff] 0.0
    %86 = vst [vmem:[#allocation2 + $0x60] sm:$0xff] 0.0
    %87 = vst [vmem:[#allocation2 + $0x68] sm:$0xff] 0.0
    %88 = vst [vmem:[#allocation2 + $0x70] sm:$0xff] 0.0
    %89 = vst [vmem:[#allocation2 + $0x78] sm:$0xff] 0.0
    %90 = vst [vmem:[#allocation2 + $0x80] sm:$0xff] 0.0
    %91 = vst [vmem:[#allocation2 + $0x88] sm:$0xff] 0.0
    %92 = vst [vmem:[#allocation2 + $0x90] sm:$0xff] 0.0
    %93 = vst [vmem:[#allocation2 + $0x98] sm:$0xff] 0.0
    %94 = vst [vmem:[#allocation2 + $0xa0] sm:$0xff] 0.0
    %95 = vst [vmem:[#allocation2 + $0xa8] sm:$0xff] 0.0
    %96 = vst [vmem:[#allocation2 + $0xb0] sm:$0xff] 0.0
    %97 = vst [vmem:[#allocation2 + $0xb8] sm:$0xff] 0.0
    %98 = vst [vmem:[#allocation2 + $0xc0] sm:$0xff] 0.0
    %99 = vst [vmem:[#allocation2 + $0xc8] sm:$0xff] 0.0
    %100 = vst [vmem:[#allocation2 + $0xd0] sm:$0xff] 0.0
    %101 = vst [vmem:[#allocation2 + $0xd8] sm:$0xff] 0.0
    %102 = vst [vmem:[#allocation2 + $0xe0] sm:$0xff] 0.0
    %103 = vst [vmem:[#allocation2 + $0xe8] sm:$0xff] 0.0
    %104 = vst [vmem:[#allocation2 + $0xf0] sm:$0xff] 0.0
    %105 = vst [vmem:[#allocation2 + $0xf8] sm:$0xff] 0.0
    %106 = vst [vmem:[#allocation2 + $0x100] sm:$0xff] 0.0
    %107 = vst [vmem:[#allocation2 + $0x108] sm:$0xff] 0.0
    %108 = vst [vmem:[#allocation2 + $0x110] sm:$0xff] 0.0
    %109 = vst [vmem:[#allocation2 + $0x118] sm:$0xff] 0.0
    %110 = vst [vmem:[#allocation2 + $0x120] sm:$0xff] 0.0
    %111 = vst [vmem:[#allocation2 + $0x128] sm:$0xff] 0.0
    %112 = vst [vmem:[#allocation2 + $0x130] sm:$0xff] 0.0
    %113 = vst [vmem:[#allocation2 + $0x138] sm:$0xff] 0.0
    %114 = vst [vmem:[#allocation2 + $0x140] sm:$0xff] 0.0
    %115 = vst [vmem:[#allocation2 + $0x148] sm:$0xff] 0.0
    %116 = vst [vmem:[#allocation2 + $0x150] sm:$0xff] 0.0
    %117 = vst [vmem:[#allocation2 + $0x158] sm:$0xff] 0.0
    %118 = vst [vmem:[#allocation2 + $0x160] sm:$0xff] 0.0
    %119 = vst [vmem:[#allocation2 + $0x168] sm:$0xff] 0.0
    %120 = vst [vmem:[#allocation2 + $0x170] sm:$0xff] 0.0
    %121 = vst [vmem:[#allocation2 + $0x178] sm:$0xff] 0.0
    %122 = vst [vmem:[#allocation2 + $0x180] sm:$0xff] 0.0
    %123 = vst [vmem:[#allocation2 + $0x188] sm:$0xff] 0.0
    %124 = vst [vmem:[#allocation2 + $0x190] sm:$0xff] 0.0
    %125 = vst [vmem:[#allocation2 + $0x198] sm:$0xff] 0.0
    %126 = vst [vmem:[#allocation2 + $0x1a0] sm:$0xff] 0.0
    %127 = vst [vmem:[#allocation2 + $0x1a8] sm:$0xff] 0.0
    %128 = vst [vmem:[#allocation2 + $0x1b0] sm:$0xff] 0.0
    %129 = vst [vmem:[#allocation2 + $0x1b8] sm:$0xff] 0.0
    %v130 = vld [vmem:[%s0] sm:$0xff]
    %v131 = vld [vmem:[%s0 + $0x8] sm:$0xff]
    %v132 = vld [vmem:[%s0 + $0x10] sm:$0xff]
    %v133 = vld [vmem:[%s0 + $0x18] sm:$0xff]
    %v134 = vld [vmem:[%s0 + $0x20] sm:$0xff]
    %v135 = vld [vmem:[%s0 + $0x28] sm:$0xff]
    %v136 = vld [vmem:[%s0 + $0x30] sm:$0xff]
    %v137 = vld [vmem:[%s0 + $0x38] sm:$0xff]
    %vm142 = vcmask 1042432
    %v143 = vrot.slane %v130, 5
    %v144 = vrot.slane %v131, 5
    %v145 = vrot.slane %v132, 5
    %v146 = vsel %vm142, %v143, %v145
    %v147 = vrot.slane %v133, 5
    %v148 = vsel %vm142, %v144, %v147
    %153 = vst [vmem:[#allocation2] sm:$0xf8] %v143
    %154 = vst [vmem:[#allocation2 + $0x8] sm:$0xf8] %v144
    %155 = vst [vmem:[#allocation2 + $0x70] sm:$0xff] %v146
    %156 = vst [vmem:[#allocation2 + $0x78] sm:$0xff] %v148
    %vm157 = vcmask 1041408
    %v158 = vrot.slane %v130, 6
    %v159 = vrot.slane %v131, 6
    %v160 = vrot.slane %v132, 6
    %v161 = vsel %vm157, %v158, %v160
    %v162 = vrot.slane %v133, 6
    %v163 = vsel %vm157, %v159, %v162
    %168 = vst [vmem:[#allocation2 + $0x10] sm:$0xfc] %v158
    %169 = vst [vmem:[#allocation2 + $0x18] sm:$0xfc] %v159
    %170 = vst [vmem:[#allocation2 + $0x80] sm:$0xff] %v161
    %171 = vst [vmem:[#allocation2 + $0x88] sm:$0xff] %v163
    %vm172 = vcmask 1040384
    %v173 = vrot.slane %v130, 7
    %v174 = vrot.slane %v131, 7
    %v175 = vrot.slane %v132, 7
    %v176 = vsel %vm172, %v173, %v175
    %v177 = vrot.slane %v133, 7
    %v178 = vsel %vm172, %v174, %v177
    %183 = vst [vmem:[#allocation2 + $0x20] sm:$0xfe] %v173
    %184 = vst [vmem:[#allocation2 + $0x28] sm:$0xfe] %v174
    %185 = vst [vmem:[#allocation2 + $0x90] sm:$0xff] %v176
    %186 = vst [vmem:[#allocation2 + $0x98] sm:$0xff] %v178
    %187 = vst [vmem:[#allocation2 + $0x30] sm:$0xff] %v130
    %188 = vst [vmem:[#allocation2 + $0x38] sm:$0xff] %v131
    %189 = vst [vmem:[#allocation2 + $0xa0] sm:$0xff] %v132
    %190 = vst [vmem:[#allocation2 + $0xa8] sm:$0xff] %v133
    %vm191 = vcmask 1046528
    %v192 = vrot.slane %v130, 1
    %v193 = vrot.slane %v132, 1
    %v194 = vsel %vm191, %v192, %v193
    %v195 = vrot.slane %v131, 1
    %v196 = vrot.slane %v133, 1
    %v197 = vsel %vm191, %v195, %v196
    %202 = vst [vmem:[#allocation2 + $0x40] sm:$0xff] %v194
    %203 = vst [vmem:[#allocation2 + $0x48] sm:$0xff] %v197
    %204 = vst [vmem:[#allocation2 + $0xb0] sm:$0x7f] %v193
    %205 = vst [vmem:[#allocation2 + $0xb8] sm:$0x7f] %v196
    %vm206 = vcmask 1045504
    %v207 = vrot.slane %v130, 2
    %v208 = vrot.slane %v132, 2
    %v209 = vsel %vm206, %v207, %v208
    %v210 = vrot.slane %v131, 2
    %v211 = vrot.slane %v133, 2
    %v212 = vsel %vm206, %v210, %v211
    %217 = vst [vmem:[#allocation2 + $0x50] sm:$0xff] %v209
    %218 = vst [vmem:[#allocation2 + $0x58] sm:$0xff] %v212
    %219 = vst [vmem:[#allocation2 + $0xc0] sm:$0x3f] %v208
    %220 = vst [vmem:[#allocation2 + $0xc8] sm:$0x3f] %v211
    %vm221 = vcmask 1044480
    %v222 = vrot.slane %v130, 3
    %v223 = vrot.slane %v132, 3
    %v224 = vsel %vm221, %v222, %v223
    %v225 = vrot.slane %v131, 3
    %v226 = vrot.slane %v133, 3
    %v227 = vsel %vm221, %v225, %v226
    %232 = vst [vmem:[#allocation2 + $0x60] sm:$0xff] %v224
    %233 = vst [vmem:[#allocation2 + $0x68] sm:$0xff] %v227
    %234 = vst [vmem:[#allocation2 + $0xd0] sm:$0x1f] %v223
    %235 = vst [vmem:[#allocation2 + $0xd8] sm:$0x1f] %v226
    %v240 = vrot.slane %v134, 5
    %v241 = vrot.slane %v135, 5
    %v242 = vrot.slane %v136, 5
    %v243 = vsel %vm142, %v240, %v242
    %v244 = vrot.slane %v137, 5
    %v245 = vsel %vm142, %v241, %v244
    %250 = vst [vmem:[#allocation2 + $0xe0] sm:$0xf8] %v240
    %251 = vst [vmem:[#allocation2 + $0xe8] sm:$0xf8] %v241
    %252 = vst [vmem:[#allocation2 + $0x150] sm:$0xff] %v243
    %253 = vst [vmem:[#allocation2 + $0x158] sm:$0xff] %v245
    %v254 = vrot.slane %v134, 6
    %v255 = vrot.slane %v135, 6
    %v256 = vrot.slane %v136, 6
    %v257 = vsel %vm157, %v254, %v256
    %v258 = vrot.slane %v137, 6
    %v259 = vsel %vm157, %v255, %v258
    %264 = vst [vmem:[#allocation2 + $0xf0] sm:$0xfc] %v254
    %265 = vst [vmem:[#allocation2 + $0xf8] sm:$0xfc] %v255
    %266 = vst [vmem:[#allocation2 + $0x160] sm:$0xff] %v257
    %267 = vst [vmem:[#allocation2 + $0x168] sm:$0xff] %v259
    %v268 = vrot.slane %v134, 7
    %v269 = vrot.slane %v135, 7
    %v270 = vrot.slane %v136, 7
    %v271 = vsel %vm172, %v268, %v270
    %v272 = vrot.slane %v137, 7
    %v273 = vsel %vm172, %v269, %v272
    %278 = vst [vmem:[#allocation2 + $0x100] sm:$0xfe] %v268
    %279 = vst [vmem:[#allocation2 + $0x108] sm:$0xfe] %v269
    %280 = vst [vmem:[#allocation2 + $0x170] sm:$0xff] %v271
    %281 = vst [vmem:[#allocation2 + $0x178] sm:$0xff] %v273
    %282 = vst [vmem:[#allocation2 + $0x110] sm:$0xff] %v134
    %283 = vst [vmem:[#allocation2 + $0x118] sm:$0xff] %v135
    %284 = vst [vmem:[#allocation2 + $0x180] sm:$0xff] %v136
    %285 = vst [vmem:[#allocation2 + $0x188] sm:$0xff] %v137
    %v286 = vrot.slane %v134, 1
    %v287 = vrot.slane %v136, 1
    %v288 = vsel %vm191, %v286, %v287
    %v289 = vrot.slane %v135, 1
    %v290 = vrot.slane %v137, 1
    %v291 = vsel %vm191, %v289, %v290
    %296 = vst [vmem:[#allocation2 + $0x120] sm:$0xff] %v288
    %297 = vst [vmem:[#allocation2 + $0x128] sm:$0xff] %v291
    %298 = vst [vmem:[#allocation2 + $0x190] sm:$0x7f] %v287
    %299 = vst [vmem:[#allocation2 + $0x198] sm:$0x7f] %v290
    %v300 = vrot.slane %v134, 2
    %v301 = vrot.slane %v136, 2
    %v302 = vsel %vm206, %v300, %v301
    %v303 = vrot.slane %v135, 2
    %v304 = vrot.slane %v137, 2
    %v305 = vsel %vm206, %v303, %v304
    %310 = vst [vmem:[#allocation2 + $0x130] sm:$0xff] %v302
    %311 = vst [vmem:[#allocation2 + $0x138] sm:$0xff] %v305
    %312 = vst [vmem:[#allocation2 + $0x1a0] sm:$0x3f] %v301
    %313 = vst [vmem:[#allocation2 + $0x1a8] sm:$0x3f] %v304
    %v314 = vrot.slane %v134, 3
    %v315 = vrot.slane %v136, 3
    %v316 = vsel %vm221, %v314, %v315
    %v317 = vrot.slane %v135, 3
    %v318 = vrot.slane %v137, 3
    %v319 = vsel %vm221, %v317, %v318
    %324 = vst [vmem:[#allocation2 + $0x140] sm:$0xff] %v316
    %325 = vst [vmem:[#allocation2 + $0x148] sm:$0xff] %v319
    %326 = vst [vmem:[#allocation2 + $0x1b0] sm:$0x1f] %v315
    %327 = vst [vmem:[#allocation2 + $0x1b8] sm:$0x1f] %v318
    %v328 = vld [vmem:[#allocation2] sm:$0xff]
    %v329 = vld [vmem:[#allocation2 + $0x8] sm:$0xff]
    %v330 = vld [vmem:[#allocation2 + $0x10] sm:$0xff]
    %v331 = vld [vmem:[#allocation2 + $0x18] sm:$0xff]
    %v332 = vld [vmem:[#allocation2 + $0x20] sm:$0xff]
    %v333 = vld [vmem:[#allocation2 + $0x28] sm:$0xff]
    %v334 = vld [vmem:[#allocation2 + $0x30] sm:$0xff]
    %v335 = vld [vmem:[#allocation2 + $0x38] sm:$0xff]
    %v336 = vld [vmem:[#allocation2 + $0x40] sm:$0xff]
    %v337 = vld [vmem:[#allocation2 + $0x48] sm:$0xff]
    %v338 = vld [vmem:[#allocation2 + $0x50] sm:$0xff]
    %v339 = vld [vmem:[#allocation2 + $0x58] sm:$0xff]
    %v340 = vld [vmem:[#allocation2 + $0x60] sm:$0xff]
    %v341 = vld [vmem:[#allocation2 + $0x68] sm:$0xff]
    %v342 = vld [vmem:[#allocation2 + $0x70] sm:$0xff]
    %v343 = vld [vmem:[#allocation2 + $0x78] sm:$0xff]
    %v344 = vld [vmem:[#allocation2 + $0x80] sm:$0xff]
    %v345 = vld [vmem:[#allocation2 + $0x88] sm:$0xff]
    %v346 = vld [vmem:[#allocation2 + $0x90] sm:$0xff]
    %v347 = vld [vmem:[#allocation2 + $0x98] sm:$0xff]
    %v348 = vld [vmem:[#allocation2 + $0xa0] sm:$0xff]
    %v349 = vld [vmem:[#allocation2 + $0xa8] sm:$0xff]
    %v350 = vld [vmem:[#allocation2 + $0xb0] sm:$0xff]
    %v351 = vld [vmem:[#allocation2 + $0xb8] sm:$0xff]
    %v352 = vld [vmem:[#allocation2 + $0xc0] sm:$0xff]
    %v353 = vld [vmem:[#allocation2 + $0xc8] sm:$0xff]
    %v354 = vld [vmem:[#allocation2 + $0xd0] sm:$0xff]
    %v355 = vld [vmem:[#allocation2 + $0xd8] sm:$0xff]
    %v356 = vld [vmem:[#allocation2 + $0xe0] sm:$0xff]
    %v357 = vld [vmem:[#allocation2 + $0xe8] sm:$0xff]
    %v358 = vld [vmem:[#allocation2 + $0xf0] sm:$0xff]
    %v359 = vld [vmem:[#allocation2 + $0xf8] sm:$0xff]
    %v360 = vld [vmem:[#allocation2 + $0x100] sm:$0xff]
    %v361 = vld [vmem:[#allocation2 + $0x108] sm:$0xff]
    %v362 = vld [vmem:[#allocation2 + $0x110] sm:$0xff]
    %v363 = vld [vmem:[#allocation2 + $0x118] sm:$0xff]
    %v364 = vld [vmem:[#allocation2 + $0x120] sm:$0xff]
    %v365 = vld [vmem:[#allocation2 + $0x128] sm:$0xff]
    %v366 = vld [vmem:[#allocation2 + $0x130] sm:$0xff]
    %v367 = vld [vmem:[#allocation2 + $0x138] sm:$0xff]
    %v368 = vld [vmem:[#allocation2 + $0x140] sm:$0xff]
    %v369 = vld [vmem:[#allocation2 + $0x148] sm:$0xff]
    %v370 = vld [vmem:[#allocation2 + $0x150] sm:$0xff]
    %v371 = vld [vmem:[#allocation2 + $0x158] sm:$0xff]
    %v372 = vld [vmem:[#allocation2 + $0x160] sm:$0xff]
    %v373 = vld [vmem:[#allocation2 + $0x168] sm:$0xff]
    %v374 = vld [vmem:[#allocation2 + $0x170] sm:$0xff]
    %v375 = vld [vmem:[#allocation2 + $0x178] sm:$0xff]
    %v376 = vld [vmem:[#allocation2 + $0x180] sm:$0xff]
    %v377 = vld [vmem:[#allocation2 + $0x188] sm:$0xff]
    %v378 = vld [vmem:[#allocation2 + $0x190] sm:$0xff]
    %v379 = vld [vmem:[#allocation2 + $0x198] sm:$0xff]
    %v380 = vld [vmem:[#allocation2 + $0x1a0] sm:$0xff]
    %v381 = vld [vmem:[#allocation2 + $0x1a8] sm:$0xff]
    %v382 = vld [vmem:[#allocation2 + $0x1b0] sm:$0xff]
    %v383 = vld [vmem:[#allocation2 + $0x1b8] sm:$0xff]
    %v384 = vld [vmem:[#allocation3] sm:$0xff]
    %v385 = vld [vmem:[#allocation3 + $0x8] sm:$0xff]
    %v386 = vld [vmem:[#allocation3 + $0x10] sm:$0xff]
    %v387 = vld [vmem:[#allocation3 + $0x18] sm:$0xff]
    %v388 = vld [vmem:[#allocation3 + $0x20] sm:$0xff]
    %v389 = vld [vmem:[#allocation3 + $0x28] sm:$0xff]
    %v390 = vld [vmem:[#allocation3 + $0x30] sm:$0xff]
    %v391 = vld [vmem:[#allocation3 + $0x38] sm:$0xff]
    %v392 = vld [vmem:[#allocation3 + $0x40] sm:$0xff]
    %v393 = vld [vmem:[#allocation3 + $0x48] sm:$0xff]
    %v394 = vld [vmem:[#allocation3 + $0x50] sm:$0xff]
    %v395 = vld [vmem:[#allocation3 + $0x58] sm:$0xff]
    %v396 = vld [vmem:[#allocation3 + $0x60] sm:$0xff]
    %v397 = vld [vmem:[#allocation3 + $0x68] sm:$0xff]
    %v398 = vld [vmem:[#allocation3 + $0x70] sm:$0xff]
    %v399 = vld [vmem:[#allocation3 + $0x78] sm:$0xff]
    %v400 = vld [vmem:[#allocation3 + $0x80] sm:$0xff]
    %v401 = vld [vmem:[#allocation3 + $0x88] sm:$0xff]
    %v402 = vld [vmem:[#allocation3 + $0x90] sm:$0xff]
    %v403 = vld [vmem:[#allocation3 + $0x98] sm:$0xff]
    %v404 = vld [vmem:[#allocation3 + $0xa0] sm:$0xff]
    %v405 = vld [vmem:[#allocation3 + $0xa8] sm:$0xff]
    %v406 = vld [vmem:[#allocation3 + $0xb0] sm:$0xff]
    %v407 = vld [vmem:[#allocation3 + $0xb8] sm:$0xff]
    %v408 = vld [vmem:[#allocation3 + $0xc0] sm:$0xff]
    %v409 = vld [vmem:[#allocation3 + $0xc8] sm:$0xff]
    %v410 = vld [vmem:[#allocation3 + $0xd0] sm:$0xff]
    %v411 = vld [vmem:[#allocation3 + $0xd8] sm:$0xff]
    %v412 = vld [vmem:[#allocation3 + $0xe0] sm:$0xff]
    %v413 = vld [vmem:[#allocation3 + $0xe8] sm:$0xff]
    %v414 = vld [vmem:[#allocation3 + $0xf0] sm:$0xff]
    %v415 = vld [vmem:[#allocation3 + $0xf8] sm:$0xff]
    %v416 = vld [vmem:[#allocation3 + $0x100] sm:$0xff]
    %v417 = vld [vmem:[#allocation3 + $0x108] sm:$0xff]
    %v418 = vld [vmem:[#allocation3 + $0x110] sm:$0xff]
    %v419 = vld [vmem:[#allocation3 + $0x118] sm:$0xff]
    %v420 = vld [vmem:[#allocation3 + $0x120] sm:$0xff]
    %v421 = vld [vmem:[#allocation3 + $0x128] sm:$0xff]
    %v422 = vld [vmem:[#allocation3 + $0x130] sm:$0xff]
    %v423 = vld [vmem:[#allocation3 + $0x138] sm:$0xff]
    %v424 = vld [vmem:[#allocation3 + $0x140] sm:$0xff]
    %v425 = vld [vmem:[#allocation3 + $0x148] sm:$0xff]
    %v426 = vld [vmem:[#allocation3 + $0x150] sm:$0xff]
    %v427 = vld [vmem:[#allocation3 + $0x158] sm:$0xff]
    %v428 = vld [vmem:[#allocation3 + $0x160] sm:$0xff]
    %v429 = vld [vmem:[#allocation3 + $0x168] sm:$0xff]
    %v430 = vld [vmem:[#allocation3 + $0x170] sm:$0xff]
    %v431 = vld [vmem:[#allocation3 + $0x178] sm:$0xff]
    %v432 = vld [vmem:[#allocation3 + $0x180] sm:$0xff]
    %v433 = vld [vmem:[#allocation3 + $0x188] sm:$0xff]
    %v434 = vld [vmem:[#allocation3 + $0x190] sm:$0xff]
    %v435 = vld [vmem:[#allocation3 + $0x198] sm:$0xff]
    %v436 = vld [vmem:[#allocation3 + $0x1a0] sm:$0xff]
    %v437 = vld [vmem:[#allocation3 + $0x1a8] sm:$0xff]
    %v438 = vld [vmem:[#allocation3 + $0x1b0] sm:$0xff]
    %v439 = vld [vmem:[#allocation3 + $0x1b8] sm:$0xff]
    %v440 = vld [vmem:[#allocation3 + $0x1c0] sm:$0xff]
    %v441 = vld [vmem:[#allocation3 + $0x1c8] sm:$0xff]
    %v442 = vld [vmem:[#allocation3 + $0x1d0] sm:$0xff]
    %v443 = vld [vmem:[#allocation3 + $0x1d8] sm:$0xff]
    %v444 = vld [vmem:[#allocation3 + $0x1e0] sm:$0xff]
    %v445 = vld [vmem:[#allocation3 + $0x1e8] sm:$0xff]
    %v446 = vld [vmem:[#allocation3 + $0x1f0] sm:$0xff]
    %v447 = vld [vmem:[#allocation3 + $0x1f8] sm:$0xff]
    %v448 = vld [vmem:[#allocation3 + $0x200] sm:$0xff]
    %v449 = vld [vmem:[#allocation3 + $0x208] sm:$0xff]
    %v450 = vld [vmem:[#allocation3 + $0x210] sm:$0xff]
    %v451 = vld [vmem:[#allocation3 + $0x218] sm:$0xff]
    %v452 = vld [vmem:[#allocation3 + $0x220] sm:$0xff]
    %v453 = vld [vmem:[#allocation3 + $0x228] sm:$0xff]
    %v454 = vld [vmem:[#allocation3 + $0x230] sm:$0xff]
    %v455 = vld [vmem:[#allocation3 + $0x238] sm:$0xff]
    %v456 = vld [vmem:[#allocation3 + $0x240] sm:$0xff]
    %v457 = vld [vmem:[#allocation3 + $0x248] sm:$0xff]
    %v458 = vld [vmem:[#allocation3 + $0x250] sm:$0xff]
    %v459 = vld [vmem:[#allocation3 + $0x258] sm:$0xff]
    %v460 = vld [vmem:[#allocation3 + $0x260] sm:$0xff]
    %v461 = vld [vmem:[#allocation3 + $0x268] sm:$0xff]
    %v462 = vld [vmem:[#allocation3 + $0x270] sm:$0xff]
    %v463 = vld [vmem:[#allocation3 + $0x278] sm:$0xff]
    %v464 = vld [vmem:[#allocation3 + $0x280] sm:$0xff]
    %v465 = vld [vmem:[#allocation3 + $0x288] sm:$0xff]
    %v466 = vld [vmem:[#allocation3 + $0x290] sm:$0xff]
    %v467 = vld [vmem:[#allocation3 + $0x298] sm:$0xff]
    %v468 = vld [vmem:[#allocation3 + $0x2a0] sm:$0xff]
    %v469 = vld [vmem:[#allocation3 + $0x2a8] sm:$0xff]
    %v470 = vld [vmem:[#allocation3 + $0x2b0] sm:$0xff]
    %v471 = vld [vmem:[#allocation3 + $0x2b8] sm:$0xff]
    %v472 = vld [vmem:[#allocation3 + $0x2c0] sm:$0xff]
    %v473 = vld [vmem:[#allocation3 + $0x2c8] sm:$0xff]
    %v474 = vld [vmem:[#allocation3 + $0x2d0] sm:$0xff]
    %v475 = vld [vmem:[#allocation3 + $0x2d8] sm:$0xff]
    %v476 = vld [vmem:[#allocation3 + $0x2e0] sm:$0xff]
    %v477 = vld [vmem:[#allocation3 + $0x2e8] sm:$0xff]
    %v478 = vld [vmem:[#allocation3 + $0x2f0] sm:$0xff]
    %v479 = vld [vmem:[#allocation3 + $0x2f8] sm:$0xff]
    %v480 = vld [vmem:[#allocation3 + $0x300] sm:$0xff]
    %v481 = vld [vmem:[#allocation3 + $0x308] sm:$0xff]
    %v482 = vld [vmem:[#allocation3 + $0x310] sm:$0xff]
    %v483 = vld [vmem:[#allocation3 + $0x318] sm:$0xff]
    %v484 = vld [vmem:[#allocation3 + $0x320] sm:$0xff]
    %v485 = vld [vmem:[#allocation3 + $0x328] sm:$0xff]
    %v486 = vld [vmem:[#allocation3 + $0x330] sm:$0xff]
    %v487 = vld [vmem:[#allocation3 + $0x338] sm:$0xff]
    %v488 = vld [vmem:[#allocation3 + $0x340] sm:$0xff]
    %v489 = vld [vmem:[#allocation3 + $0x348] sm:$0xff]
    %v490 = vld [vmem:[#allocation3 + $0x350] sm:$0xff]
    %v491 = vld [vmem:[#allocation3 + $0x358] sm:$0xff]
    %v492 = vld [vmem:[#allocation3 + $0x360] sm:$0xff]
    %v493 = vld [vmem:[#allocation3 + $0x368] sm:$0xff]
    %v494 = vld [vmem:[#allocation3 + $0x370] sm:$0xff]
    %v495 = vld [vmem:[#allocation3 + $0x378] sm:$0xff]
    %v496 = vld [vmem:[#allocation3 + $0x380] sm:$0xff]
    %v497 = vld [vmem:[#allocation3 + $0x388] sm:$0xff]
    %v498 = vld [vmem:[#allocation3 + $0x390] sm:$0xff]
    %v499 = vld [vmem:[#allocation3 + $0x398] sm:$0xff]
    %v500 = vld [vmem:[#allocation3 + $0x3a0] sm:$0xff]
    %v501 = vld [vmem:[#allocation3 + $0x3a8] sm:$0xff]
    %v502 = vld [vmem:[#allocation3 + $0x3b0] sm:$0xff]
    %v503 = vld [vmem:[#allocation3 + $0x3b8] sm:$0xff]
    %v504 = vld [vmem:[#allocation3 + $0x3c0] sm:$0xff]
    %v505 = vld [vmem:[#allocation3 + $0x3c8] sm:$0xff]
    %v506 = vld [vmem:[#allocation3 + $0x3d0] sm:$0xff]
    %v507 = vld [vmem:[#allocation3 + $0x3d8] sm:$0xff]
    %v508 = vld [vmem:[#allocation3 + $0x3e0] sm:$0xff]
    %v509 = vld [vmem:[#allocation3 + $0x3e8] sm:$0xff]
    %v510 = vld [vmem:[#allocation3 + $0x3f0] sm:$0xff]
    %v511 = vld [vmem:[#allocation3 + $0x3f8] sm:$0xff]
    %v512 = vld [vmem:[#allocation3 + $0x400] sm:$0xff]
    %v513 = vld [vmem:[#allocation3 + $0x408] sm:$0xff]
    %v514 = vld [vmem:[#allocation3 + $0x410] sm:$0xff]
    %v515 = vld [vmem:[#allocation3 + $0x418] sm:$0xff]
    %v516 = vld [vmem:[#allocation3 + $0x420] sm:$0xff]
    %v517 = vld [vmem:[#allocation3 + $0x428] sm:$0xff]
    %v518 = vld [vmem:[#allocation3 + $0x430] sm:$0xff]
    %v519 = vld [vmem:[#allocation3 + $0x438] sm:$0xff]
    %v520 = vld [vmem:[#allocation3 + $0x440] sm:$0xff]
    %v521 = vld [vmem:[#allocation3 + $0x448] sm:$0xff]
    %v522 = vld [vmem:[#allocation3 + $0x450] sm:$0xff]
    %v523 = vld [vmem:[#allocation3 + $0x458] sm:$0xff]
    %v524 = vld [vmem:[#allocation3 + $0x460] sm:$0xff]
    %v525 = vld [vmem:[#allocation3 + $0x468] sm:$0xff]
    %v526 = vld [vmem:[#allocation3 + $0x470] sm:$0xff]
    %v527 = vld [vmem:[#allocation3 + $0x478] sm:$0xff]
    %v528 = vld [vmem:[#allocation3 + $0x480] sm:$0xff]
    %v529 = vld [vmem:[#allocation3 + $0x488] sm:$0xff]
    %v530 = vld [vmem:[#allocation3 + $0x490] sm:$0xff]
    %v531 = vld [vmem:[#allocation3 + $0x498] sm:$0xff]
    %v532 = vld [vmem:[#allocation3 + $0x4a0] sm:$0xff]
    %v533 = vld [vmem:[#allocation3 + $0x4a8] sm:$0xff]
    %v534 = vld [vmem:[#allocation3 + $0x4b0] sm:$0xff]
    %v535 = vld [vmem:[#allocation3 + $0x4b8] sm:$0xff]
    %v536 = vld [vmem:[#allocation3 + $0x4c0] sm:$0xff]
    %v537 = vld [vmem:[#allocation3 + $0x4c8] sm:$0xff]
    %v538 = vld [vmem:[#allocation3 + $0x4d0] sm:$0xff]
    %v539 = vld [vmem:[#allocation3 + $0x4d8] sm:$0xff]
    %v540 = vld [vmem:[#allocation3 + $0x4e0] sm:$0xff]
    %v541 = vld [vmem:[#allocation3 + $0x4e8] sm:$0xff]
    %v542 = vld [vmem:[#allocation3 + $0x4f0] sm:$0xff]
    %v543 = vld [vmem:[#allocation3 + $0x4f8] sm:$0xff]
    %v544 = vld [vmem:[#allocation3 + $0x500] sm:$0xff]
    %v545 = vld [vmem:[#allocation3 + $0x508] sm:$0xff]
    %v546 = vld [vmem:[#allocation3 + $0x510] sm:$0xff]
    %v547 = vld [vmem:[#allocation3 + $0x518] sm:$0xff]
    %v548 = vld [vmem:[#allocation3 + $0x520] sm:$0xff]
    %v549 = vld [vmem:[#allocation3 + $0x528] sm:$0xff]
    %v550 = vld [vmem:[#allocation3 + $0x530] sm:$0xff]
    %v551 = vld [vmem:[#allocation3 + $0x538] sm:$0xff]
    %v552 = vld [vmem:[#allocation3 + $0x540] sm:$0xff]
    %v553 = vld [vmem:[#allocation3 + $0x548] sm:$0xff]
    %v554 = vld [vmem:[#allocation3 + $0x550] sm:$0xff]
    %v555 = vld [vmem:[#allocation3 + $0x558] sm:$0xff]
    %v556 = vld [vmem:[#allocation3 + $0x560] sm:$0xff]
    %v557 = vld [vmem:[#allocation3 + $0x568] sm:$0xff]
    %v558 = vld [vmem:[#allocation3 + $0x570] sm:$0xff]
    %v559 = vld [vmem:[#allocation3 + $0x578] sm:$0xff]
    %v560 = vld [vmem:[#allocation3 + $0x580] sm:$0xff]
    %v561 = vld [vmem:[#allocation3 + $0x588] sm:$0xff]
    %v562 = vld [vmem:[#allocation3 + $0x590] sm:$0xff]
    %v563 = vld [vmem:[#allocation3 + $0x598] sm:$0xff]
    %v564 = vld [vmem:[#allocation3 + $0x5a0] sm:$0xff]
    %v565 = vld [vmem:[#allocation3 + $0x5a8] sm:$0xff]
    %v566 = vld [vmem:[#allocation3 + $0x5b0] sm:$0xff]
    %v567 = vld [vmem:[#allocation3 + $0x5b8] sm:$0xff]
    %v568 = vld [vmem:[#allocation3 + $0x5c0] sm:$0xff]
    %v569 = vld [vmem:[#allocation3 + $0x5c8] sm:$0xff]
    %v570 = vld [vmem:[#allocation3 + $0x5d0] sm:$0xff]
    %v571 = vld [vmem:[#allocation3 + $0x5d8] sm:$0xff]
    %v572 = vld [vmem:[#allocation3 + $0x5e0] sm:$0xff]
    %v573 = vld [vmem:[#allocation3 + $0x5e8] sm:$0xff]
    %v574 = vld [vmem:[#allocation3 + $0x5f0] sm:$0xff]
    %v575 = vld [vmem:[#allocation3 + $0x5f8] sm:$0xff]
    %v576 = vld [vmem:[#allocation3 + $0x600] sm:$0xff]
    %v577 = vld [vmem:[#allocation3 + $0x608] sm:$0xff]
    %v578 = vld [vmem:[#allocation3 + $0x610] sm:$0xff]
    %v579 = vld [vmem:[#allocation3 + $0x618] sm:$0xff]
    %v580 = vld [vmem:[#allocation3 + $0x620] sm:$0xff]
    %v581 = vld [vmem:[#allocation3 + $0x628] sm:$0xff]
    %v582 = vld [vmem:[#allocation3 + $0x630] sm:$0xff]
    %v583 = vld [vmem:[#allocation3 + $0x638] sm:$0xff]
    %v584 = vld [vmem:[#allocation3 + $0x640] sm:$0xff]
    %v585 = vld [vmem:[#allocation3 + $0x648] sm:$0xff]
    %v586 = vld [vmem:[#allocation3 + $0x650] sm:$0xff]
    %v587 = vld [vmem:[#allocation3 + $0x658] sm:$0xff]
    %v588 = vld [vmem:[#allocation3 + $0x660] sm:$0xff]
    %v589 = vld [vmem:[#allocation3 + $0x668] sm:$0xff]
    %v590 = vld [vmem:[#allocation3 + $0x670] sm:$0xff]
    %v591 = vld [vmem:[#allocation3 + $0x678] sm:$0xff]
    %v592 = vld [vmem:[#allocation3 + $0x680] sm:$0xff]
    %v593 = vld [vmem:[#allocation3 + $0x688] sm:$0xff]
    %v594 = vld [vmem:[#allocation3 + $0x690] sm:$0xff]
    %v595 = vld [vmem:[#allocation3 + $0x698] sm:$0xff]
    %v596 = vld [vmem:[#allocation3 + $0x6a0] sm:$0xff]
    %v597 = vld [vmem:[#allocation3 + $0x6a8] sm:$0xff]
    %v598 = vld [vmem:[#allocation3 + $0x6b0] sm:$0xff]
    %v599 = vld [vmem:[#allocation3 + $0x6b8] sm:$0xff]
    %v600 = vld [vmem:[#allocation3 + $0x6c0] sm:$0xff]
    %v601 = vld [vmem:[#allocation3 + $0x6c8] sm:$0xff]
    %v602 = vld [vmem:[#allocation3 + $0x6d0] sm:$0xff]
    %v603 = vld [vmem:[#allocation3 + $0x6d8] sm:$0xff]
    %v604 = vld [vmem:[#allocation3 + $0x6e0] sm:$0xff]
    %v605 = vld [vmem:[#allocation3 + $0x6e8] sm:$0xff]
    %v606 = vld [vmem:[#allocation3 + $0x6f0] sm:$0xff]
    %v607 = vld [vmem:[#allocation3 + $0x6f8] sm:$0xff]
    %v608 = vld [vmem:[#allocation3 + $0x700] sm:$0xff]
    %v609 = vld [vmem:[#allocation3 + $0x708] sm:$0xff]
    %v610 = vld [vmem:[#allocation3 + $0x710] sm:$0xff]
    %v611 = vld [vmem:[#allocation3 + $0x718] sm:$0xff]
    %v612 = vld [vmem:[#allocation3 + $0x720] sm:$0xff]
    %v613 = vld [vmem:[#allocation3 + $0x728] sm:$0xff]
    %v614 = vld [vmem:[#allocation3 + $0x730] sm:$0xff]
    %v615 = vld [vmem:[#allocation3 + $0x738] sm:$0xff]
    %v616 = vld [vmem:[#allocation3 + $0x740] sm:$0xff]
    %v617 = vld [vmem:[#allocation3 + $0x748] sm:$0xff]
    %v618 = vld [vmem:[#allocation3 + $0x750] sm:$0xff]
    %v619 = vld [vmem:[#allocation3 + $0x758] sm:$0xff]
    %v620 = vld [vmem:[#allocation3 + $0x760] sm:$0xff]
    %v621 = vld [vmem:[#allocation3 + $0x768] sm:$0xff]
    %v622 = vld [vmem:[#allocation3 + $0x770] sm:$0xff]
    %v623 = vld [vmem:[#allocation3 + $0x778] sm:$0xff]
    %v624 = vld [vmem:[#allocation3 + $0x780] sm:$0xff]
    %v625 = vld [vmem:[#allocation3 + $0x788] sm:$0xff]
    %v626 = vld [vmem:[#allocation3 + $0x790] sm:$0xff]
    %v627 = vld [vmem:[#allocation3 + $0x798] sm:$0xff]
    %v628 = vld [vmem:[#allocation3 + $0x7a0] sm:$0xff]
    %v629 = vld [vmem:[#allocation3 + $0x7a8] sm:$0xff]
    %v630 = vld [vmem:[#allocation3 + $0x7b0] sm:$0xff]
    %v631 = vld [vmem:[#allocation3 + $0x7b8] sm:$0xff]
    %v632 = vld [vmem:[#allocation3 + $0x7c0] sm:$0xff]
    %v633 = vld [vmem:[#allocation3 + $0x7c8] sm:$0xff]
    %v634 = vld [vmem:[#allocation3 + $0x7d0] sm:$0xff]
    %v635 = vld [vmem:[#allocation3 + $0x7d8] sm:$0xff]
    %v636 = vld [vmem:[#allocation3 + $0x7e0] sm:$0xff]
    %v637 = vld [vmem:[#allocation3 + $0x7e8] sm:$0xff]
    %v638 = vld [vmem:[#allocation3 + $0x7f0] sm:$0xff]
    %v639 = vld [vmem:[#allocation3 + $0x7f8] sm:$0xff]
    %v640 = vld [vmem:[#allocation3 + $0x800] sm:$0xff]
    %v641 = vld [vmem:[#allocation3 + $0x808] sm:$0xff]
    %v642 = vld [vmem:[#allocation3 + $0x810] sm:$0xff]
    %v643 = vld [vmem:[#allocation3 + $0x818] sm:$0xff]
    %v644 = vld [vmem:[#allocation3 + $0x820] sm:$0xff]
    %v645 = vld [vmem:[#allocation3 + $0x828] sm:$0xff]
    %v646 = vld [vmem:[#allocation3 + $0x830] sm:$0xff]
    %v647 = vld [vmem:[#allocation3 + $0x838] sm:$0xff]
    %v648 = vld [vmem:[#allocation3 + $0x840] sm:$0xff]
    %v649 = vld [vmem:[#allocation3 + $0x848] sm:$0xff]
    %v650 = vld [vmem:[#allocation3 + $0x850] sm:$0xff]
    %v651 = vld [vmem:[#allocation3 + $0x858] sm:$0xff]
    %v652 = vld [vmem:[#allocation3 + $0x860] sm:$0xff]
    %v653 = vld [vmem:[#allocation3 + $0x868] sm:$0xff]
    %v654 = vld [vmem:[#allocation3 + $0x870] sm:$0xff]
    %v655 = vld [vmem:[#allocation3 + $0x878] sm:$0xff]
    %v656 = vld [vmem:[#allocation3 + $0x880] sm:$0xff]
    %v657 = vld [vmem:[#allocation3 + $0x888] sm:$0xff]
    %v658 = vld [vmem:[#allocation3 + $0x890] sm:$0xff]
    %v659 = vld [vmem:[#allocation3 + $0x898] sm:$0xff]
    %v660 = vld [vmem:[#allocation3 + $0x8a0] sm:$0xff]
    %v661 = vld [vmem:[#allocation3 + $0x8a8] sm:$0xff]
    %v662 = vld [vmem:[#allocation3 + $0x8b0] sm:$0xff]
    %v663 = vld [vmem:[#allocation3 + $0x8b8] sm:$0xff]
    %v664 = vld [vmem:[#allocation3 + $0x8c0] sm:$0xff]
    %v665 = vld [vmem:[#allocation3 + $0x8c8] sm:$0xff]
    %v666 = vld [vmem:[#allocation3 + $0x8d0] sm:$0xff]
    %v667 = vld [vmem:[#allocation3 + $0x8d8] sm:$0xff]
    %v668 = vld [vmem:[#allocation3 + $0x8e0] sm:$0xff]
    %v669 = vld [vmem:[#allocation3 + $0x8e8] sm:$0xff]
    %v670 = vld [vmem:[#allocation3 + $0x8f0] sm:$0xff]
    %v671 = vld [vmem:[#allocation3 + $0x8f8] sm:$0xff]
    %v672 = vld [vmem:[#allocation3 + $0x900] sm:$0xff]
    %v673 = vld [vmem:[#allocation3 + $0x908] sm:$0xff]
    %v674 = vld [vmem:[#allocation3 + $0x910] sm:$0xff]
    %v675 = vld [vmem:[#allocation3 + $0x918] sm:$0xff]
    %v676 = vld [vmem:[#allocation3 + $0x920] sm:$0xff]
    %v677 = vld [vmem:[#allocation3 + $0x928] sm:$0xff]
    %v678 = vld [vmem:[#allocation3 + $0x930] sm:$0xff]
    %v679 = vld [vmem:[#allocation3 + $0x938] sm:$0xff]
    %v680 = vld [vmem:[#allocation3 + $0x940] sm:$0xff]
    %v681 = vld [vmem:[#allocation3 + $0x948] sm:$0xff]
    %v682 = vld [vmem:[#allocation3 + $0x950] sm:$0xff]
    %v683 = vld [vmem:[#allocation3 + $0x958] sm:$0xff]
    %v684 = vld [vmem:[#allocation3 + $0x960] sm:$0xff]
    %v685 = vld [vmem:[#allocation3 + $0x968] sm:$0xff]
    %v686 = vld [vmem:[#allocation3 + $0x970] sm:$0xff]
    %v687 = vld [vmem:[#allocation3 + $0x978] sm:$0xff]
    %v688 = vld [vmem:[#allocation3 + $0x980] sm:$0xff]
    %v689 = vld [vmem:[#allocation3 + $0x988] sm:$0xff]
    %v690 = vld [vmem:[#allocation3 + $0x990] sm:$0xff]
    %v691 = vld [vmem:[#allocation3 + $0x998] sm:$0xff]
    %v692 = vld [vmem:[#allocation3 + $0x9a0] sm:$0xff]
    %v693 = vld [vmem:[#allocation3 + $0x9a8] sm:$0xff]
    %v694 = vld [vmem:[#allocation3 + $0x9b0] sm:$0xff]
    %v695 = vld [vmem:[#allocation3 + $0x9b8] sm:$0xff]
    %v696 = vld [vmem:[#allocation3 + $0x9c0] sm:$0xff]
    %v697 = vld [vmem:[#allocation3 + $0x9c8] sm:$0xff]
    %v698 = vld [vmem:[#allocation3 + $0x9d0] sm:$0xff]
    %v699 = vld [vmem:[#allocation3 + $0x9d8] sm:$0xff]
    %v700 = vld [vmem:[#allocation3 + $0x9e0] sm:$0xff]
    %v701 = vld [vmem:[#allocation3 + $0x9e8] sm:$0xff]
    %v702 = vld [vmem:[#allocation3 + $0x9f0] sm:$0xff]
    %v703 = vld [vmem:[#allocation3 + $0x9f8] sm:$0xff]
    %v704 = vld [vmem:[#allocation3 + $0xa00] sm:$0xff]
    %v705 = vld [vmem:[#allocation3 + $0xa08] sm:$0xff]
    %v706 = vld [vmem:[#allocation3 + $0xa10] sm:$0xff]
    %v707 = vld [vmem:[#allocation3 + $0xa18] sm:$0xff]
    %v708 = vld [vmem:[#allocation3 + $0xa20] sm:$0xff]
    %v709 = vld [vmem:[#allocation3 + $0xa28] sm:$0xff]
    %v710 = vld [vmem:[#allocation3 + $0xa30] sm:$0xff]
    %v711 = vld [vmem:[#allocation3 + $0xa38] sm:$0xff]
    %v712 = vld [vmem:[#allocation3 + $0xa40] sm:$0xff]
    %v713 = vld [vmem:[#allocation3 + $0xa48] sm:$0xff]
    %v714 = vld [vmem:[#allocation3 + $0xa50] sm:$0xff]
    %v715 = vld [vmem:[#allocation3 + $0xa58] sm:$0xff]
    %v716 = vld [vmem:[#allocation3 + $0xa60] sm:$0xff]
    %v717 = vld [vmem:[#allocation3 + $0xa68] sm:$0xff]
    %v718 = vld [vmem:[#allocation3 + $0xa70] sm:$0xff]
    %v719 = vld [vmem:[#allocation3 + $0xa78] sm:$0xff]
    %v720 = vld [vmem:[#allocation3 + $0xa80] sm:$0xff]
    %v721 = vld [vmem:[#allocation3 + $0xa88] sm:$0xff]
    %v722 = vld [vmem:[#allocation3 + $0xa90] sm:$0xff]
    %v723 = vld [vmem:[#allocation3 + $0xa98] sm:$0xff]
    %v724 = vld [vmem:[#allocation3 + $0xaa0] sm:$0xff]
    %v725 = vld [vmem:[#allocation3 + $0xaa8] sm:$0xff]
    %v726 = vld [vmem:[#allocation3 + $0xab0] sm:$0xff]
    %v727 = vld [vmem:[#allocation3 + $0xab8] sm:$0xff]
    %v728 = vld [vmem:[#allocation3 + $0xac0] sm:$0xff]
    %v729 = vld [vmem:[#allocation3 + $0xac8] sm:$0xff]
    %v730 = vld [vmem:[#allocation3 + $0xad0] sm:$0xff]
    %v731 = vld [vmem:[#allocation3 + $0xad8] sm:$0xff]
    %v732 = vld [vmem:[#allocation3 + $0xae0] sm:$0xff]
    %v733 = vld [vmem:[#allocation3 + $0xae8] sm:$0xff]
    %v734 = vld [vmem:[#allocation3 + $0xaf0] sm:$0xff]
    %v735 = vld [vmem:[#allocation3 + $0xaf8] sm:$0xff]
    %v736 = vld [vmem:[#allocation3 + $0xb00] sm:$0xff]
    %v737 = vld [vmem:[#allocation3 + $0xb08] sm:$0xff]
    %v738 = vld [vmem:[#allocation3 + $0xb10] sm:$0xff]
    %v739 = vld [vmem:[#allocation3 + $0xb18] sm:$0xff]
    %v740 = vld [vmem:[#allocation3 + $0xb20] sm:$0xff]
    %v741 = vld [vmem:[#allocation3 + $0xb28] sm:$0xff]
    %v742 = vld [vmem:[#allocation3 + $0xb30] sm:$0xff]
    %v743 = vld [vmem:[#allocation3 + $0xb38] sm:$0xff]
    %v744 = vld [vmem:[#allocation3 + $0xb40] sm:$0xff]
    %v745 = vld [vmem:[#allocation3 + $0xb48] sm:$0xff]
    %v746 = vld [vmem:[#allocation3 + $0xb50] sm:$0xff]
    %v747 = vld [vmem:[#allocation3 + $0xb58] sm:$0xff]
    %v748 = vld [vmem:[#allocation3 + $0xb60] sm:$0xff]
    %v749 = vld [vmem:[#allocation3 + $0xb68] sm:$0xff]
    %v750 = vld [vmem:[#allocation3 + $0xb70] sm:$0xff]
    %v751 = vld [vmem:[#allocation3 + $0xb78] sm:$0xff]
    %v752 = vld [vmem:[#allocation3 + $0xb80] sm:$0xff]
    %v753 = vld [vmem:[#allocation3 + $0xb88] sm:$0xff]
    %v754 = vld [vmem:[#allocation3 + $0xb90] sm:$0xff]
    %v755 = vld [vmem:[#allocation3 + $0xb98] sm:$0xff]
    %v756 = vld [vmem:[#allocation3 + $0xba0] sm:$0xff]
    %v757 = vld [vmem:[#allocation3 + $0xba8] sm:$0xff]
    %v758 = vld [vmem:[#allocation3 + $0xbb0] sm:$0xff]
    %v759 = vld [vmem:[#allocation3 + $0xbb8] sm:$0xff]
    %v760 = vld [vmem:[#allocation3 + $0xbc0] sm:$0xff]
    %v761 = vld [vmem:[#allocation3 + $0xbc8] sm:$0xff]
    %v762 = vld [vmem:[#allocation3 + $0xbd0] sm:$0xff]
    %v763 = vld [vmem:[#allocation3 + $0xbd8] sm:$0xff]
    %v764 = vld [vmem:[#allocation3 + $0xbe0] sm:$0xff]
    %v765 = vld [vmem:[#allocation3 + $0xbe8] sm:$0xff]
    %v766 = vld [vmem:[#allocation3 + $0xbf0] sm:$0xff]
    %v767 = vld [vmem:[#allocation3 + $0xbf8] sm:$0xff]
    %v768 = vld [vmem:[#allocation3 + $0xc00] sm:$0xff]
    %v769 = vld [vmem:[#allocation3 + $0xc08] sm:$0xff]
    %v770 = vld [vmem:[#allocation3 + $0xc10] sm:$0xff]
    %v771 = vld [vmem:[#allocation3 + $0xc18] sm:$0xff]
    %v772 = vld [vmem:[#allocation3 + $0xc20] sm:$0xff]
    %v773 = vld [vmem:[#allocation3 + $0xc28] sm:$0xff]
    %v774 = vld [vmem:[#allocation3 + $0xc30] sm:$0xff]
    %v775 = vld [vmem:[#allocation3 + $0xc38] sm:$0xff]
    %v776 = vld [vmem:[#allocation3 + $0xc40] sm:$0xff]
    %v777 = vld [vmem:[#allocation3 + $0xc48] sm:$0xff]
    %v778 = vld [vmem:[#allocation3 + $0xc50] sm:$0xff]
    %v779 = vld [vmem:[#allocation3 + $0xc58] sm:$0xff]
    %v780 = vld [vmem:[#allocation3 + $0xc60] sm:$0xff]
    %v781 = vld [vmem:[#allocation3 + $0xc68] sm:$0xff]
    %v782 = vld [vmem:[#allocation3 + $0xc70] sm:$0xff]
    %v783 = vld [vmem:[#allocation3 + $0xc78] sm:$0xff]
    %v784 = vld [vmem:[#allocation3 + $0xc80] sm:$0xff]
    %v785 = vld [vmem:[#allocation3 + $0xc88] sm:$0xff]
    %v786 = vld [vmem:[#allocation3 + $0xc90] sm:$0xff]
    %v787 = vld [vmem:[#allocation3 + $0xc98] sm:$0xff]
    %v788 = vld [vmem:[#allocation3 + $0xca0] sm:$0xff]
    %v789 = vld [vmem:[#allocation3 + $0xca8] sm:$0xff]
    %v790 = vld [vmem:[#allocation3 + $0xcb0] sm:$0xff]
    %v791 = vld [vmem:[#allocation3 + $0xcb8] sm:$0xff]
    %v792 = vld [vmem:[#allocation3 + $0xcc0] sm:$0xff]
    %v793 = vld [vmem:[#allocation3 + $0xcc8] sm:$0xff]
    %v794 = vld [vmem:[#allocation3 + $0xcd0] sm:$0xff]
    %v795 = vld [vmem:[#allocation3 + $0xcd8] sm:$0xff]
    %v796 = vld [vmem:[#allocation3 + $0xce0] sm:$0xff]
    %v797 = vld [vmem:[#allocation3 + $0xce8] sm:$0xff]
    %v798 = vld [vmem:[#allocation3 + $0xcf0] sm:$0xff]
    %v799 = vld [vmem:[#allocation3 + $0xcf8] sm:$0xff]
    %v800 = vld [vmem:[#allocation3 + $0xd00] sm:$0xff]
    %v801 = vld [vmem:[#allocation3 + $0xd08] sm:$0xff]
    %v802 = vld [vmem:[#allocation3 + $0xd10] sm:$0xff]
    %v803 = vld [vmem:[#allocation3 + $0xd18] sm:$0xff]
    %v804 = vld [vmem:[#allocation3 + $0xd20] sm:$0xff]
    %v805 = vld [vmem:[#allocation3 + $0xd28] sm:$0xff]
    %v806 = vld [vmem:[#allocation3 + $0xd30] sm:$0xff]
    %v807 = vld [vmem:[#allocation3 + $0xd38] sm:$0xff]
    %v808 = vld [vmem:[#allocation3 + $0xd40] sm:$0xff]
    %v809 = vld [vmem:[#allocation3 + $0xd48] sm:$0xff]
    %v810 = vld [vmem:[#allocation3 + $0xd50] sm:$0xff]
    %v811 = vld [vmem:[#allocation3 + $0xd58] sm:$0xff]
    %v812 = vld [vmem:[#allocation3 + $0xd60] sm:$0xff]
    %v813 = vld [vmem:[#allocation3 + $0xd68] sm:$0xff]
    %v814 = vld [vmem:[#allocation3 + $0xd70] sm:$0xff]
    %v815 = vld [vmem:[#allocation3 + $0xd78] sm:$0xff]
    %v816 = vld [vmem:[#allocation3 + $0xd80] sm:$0xff]
    %v817 = vld [vmem:[#allocation3 + $0xd88] sm:$0xff]
    %v818 = vld [vmem:[#allocation3 + $0xd90] sm:$0xff]
    %v819 = vld [vmem:[#allocation3 + $0xd98] sm:$0xff]
    %v820 = vld [vmem:[#allocation3 + $0xda0] sm:$0xff]
    %v821 = vld [vmem:[#allocation3 + $0xda8] sm:$0xff]
    %v822 = vld [vmem:[#allocation3 + $0xdb0] sm:$0xff]
    %v823 = vld [vmem:[#allocation3 + $0xdb8] sm:$0xff]
    %v824 = vld [vmem:[#allocation3 + $0xdc0] sm:$0xff]
    %v825 = vld [vmem:[#allocation3 + $0xdc8] sm:$0xff]
    %v826 = vld [vmem:[#allocation3 + $0xdd0] sm:$0xff]
    %v827 = vld [vmem:[#allocation3 + $0xdd8] sm:$0xff]
    %v828 = vld [vmem:[#allocation3 + $0xde0] sm:$0xff]
    %v829 = vld [vmem:[#allocation3 + $0xde8] sm:$0xff]
    %v830 = vld [vmem:[#allocation3 + $0xdf0] sm:$0xff]
    %v831 = vld [vmem:[#allocation3 + $0xdf8] sm:$0xff]
    %v832 = vld [vmem:[#allocation7] sm:$0x3]
    %v834 = vlaneseq
    %v835 = vshrl.u32 %v834, 7
    %v836 = vsub.s32 0, %v835
    %v837 = vrot.slane %v832, %v836
    %v838 = vlaneseq
    %v839 = vshrl.u32 %v838, 7
    %v840 = vsub.s32 1, %v839
    %v841 = vrot.slane %v832, %v840
    %844 = vmatprep.subr.mxu0 %v385
    %845 = vmatpush1.msra.mxu0 %v384
    %846 = vmatprep.subr.mxu0 %v387
    %847 = vmatpush1.msra.mxu0 %v386
    %848 = vmatprep.subr.mxu0 %v389
    %849 = vmatpush1.msra.mxu0 %v388
    %850 = vmatprep.subr.mxu0 %v391
    %851 = vmatpush1.msra.mxu0 %v390
    %852 = vmatprep.subr.mxu0 %v393
    %853 = vmatpush1.msra.mxu0 %v392
    %854 = vmatprep.subr.mxu0 %v395
    %855 = vmatpush1.msra.mxu0 %v394
    %856 = vmatprep.subr.mxu0 %v397
    %857 = vmatpush1.msra.mxu0 %v396
    %858 = vmatprep.subr.mxu0 %v399
    %859 = vmatpush1.msra.mxu0 %v398
    %860 = vmatprep.subr.mxu0 %v401
    %861 = vmatpush1.msra.mxu0 %v400
    %862 = vmatprep.subr.mxu0 %v403
    %863 = vmatpush1.msra.mxu0 %v402
    %864 = vmatprep.subr.mxu0 %v405
    %865 = vmatpush1.msra.mxu0 %v404
    %866 = vmatprep.subr.mxu0 %v407
    %867 = vmatpush1.msra.mxu0 %v406
    %868 = vmatprep.subr.mxu0 %v409
    %869 = vmatpush1.msra.mxu0 %v408
    %870 = vmatprep.subr.mxu0 %v411
    %871 = vmatpush1.msra.mxu0 %v410
    %872 = vmatprep.subr.mxu0 %v413
    %873 = vmatpush1.msra.mxu0 %v412
    %874 = vmatprep.subr.mxu0 %v415
    %875 = vmatpush1.msra.mxu0 %v414
    %876 = vmatprep.subr.mxu0 %v417
    %877 = vmatpush1.msra.mxu0 %v416
    %878 = vmatprep.subr.mxu0 %v419
    %879 = vmatpush1.msra.mxu0 %v418
    %880 = vmatprep.subr.mxu0 %v421
    %881 = vmatpush1.msra.mxu0 %v420
    %882 = vmatprep.subr.mxu0 %v423
    %883 = vmatpush1.msra.mxu0 %v422
    %884 = vmatprep.subr.mxu0 %v425
    %885 = vmatpush1.msra.mxu0 %v424
    %886 = vmatprep.subr.mxu0 %v427
    %887 = vmatpush1.msra.mxu0 %v426
    %888 = vmatprep.subr.mxu0 %v429
    %889 = vmatpush1.msra.mxu0 %v428
    %890 = vmatprep.subr.mxu0 %v431
    %891 = vmatpush1.msra.mxu0 %v430
    %892 = vmatprep.subr.mxu0 %v433
    %893 = vmatpush1.msra.mxu0 %v432
    %894 = vmatprep.subr.mxu0 %v435
    %895 = vmatpush1.msra.mxu0 %v434
    %896 = vmatprep.subr.mxu0 %v437
    %897 = vmatpush1.msra.mxu0 %v436
    %898 = vmatprep.subr.mxu0 %v439
    %899 = vmatpush1.msra.mxu0 %v438
    %900 = vmatprep.subr.mxu0 %v441
    %901 = vmatpush1.msra.mxu0 %v440
    %902 = vmatprep.subr.mxu0 %v443
    %903 = vmatpush1.msra.mxu0 %v442
    %904 = vmatprep.subr.mxu0 %v445
    %905 = vmatpush1.msra.mxu0 %v444
    %906 = vmatprep.subr.mxu0 %v447
    %907 = vmatpush1.msra.mxu0 %v446
    %908 = vmatprep.mubr.f32.mxu0 %v329
    %909 = vmatmul.mubr.f32.gmra.mrb[0].mxu0 %v328
    %v910 = vpop.f32.mrb[0].mxu0
    %v911 = vadd.f32 %v837, %v910
    %v912 = vpop.f32.mrb[0].mxu0
    %v913 = vadd.f32 %v841, %v912
    %914 = vmatprep.mubr.f32.mxu0 %v343
    %915 = vmatmul.mubr.f32.gmra.mrb[0].mxu0 %v342
    %v916 = vpop.f32.mrb[0].mxu0
    %v917 = vadd.f32 %v837, %v916
    %v918 = vpop.f32.mrb[0].mxu0
    %v919 = vadd.f32 %v841, %v918
    %920 = vmatprep.mubr.f32.mxu0 %v357
    %921 = vmatmul.mubr.f32.gmra.mrb[0].mxu0 %v356
    %v922 = vpop.f32.mrb[0].mxu0
    %v923 = vadd.f32 %v837, %v922
    %v924 = vpop.f32.mrb[0].mxu0
    %v925 = vadd.f32 %v841, %v924
    %926 = vmatprep.mubr.f32.mxu0 %v371
    %927 = vmatmul.mubr.f32.gmra.mrb[0].mxu0 %v370
    %v928 = vpop.f32.mrb[0].mxu0
    %v929 = vadd.f32 %v837, %v928
    %v930 = vpop.f32.mrb[0].mxu0
    %v931 = vadd.f32 %v841, %v930
    %932 = vdwg.mxu0
    %933 = vmatprep.subr.mxu0 %v449
    %934 = vmatpush1.msra.mxu0 %v448
    %935 = vmatprep.subr.mxu0 %v451
    %936 = vmatpush1.msra.mxu0 %v450
    %937 = vmatprep.subr.mxu0 %v453
    %938 = vmatpush1.msra.mxu0 %v452
    %939 = vmatprep.subr.mxu0 %v455
    %940 = vmatpush1.msra.mxu0 %v454
    %941 = vmatprep.subr.mxu0 %v457
    %942 = vmatpush1.msra.mxu0 %v456
    %943 = vmatprep.subr.mxu0 %v459
    %944 = vmatpush1.msra.mxu0 %v458
    %945 = vmatprep.subr.mxu0 %v461
    %946 = vmatpush1.msra.mxu0 %v460
    %947 = vmatprep.subr.mxu0 %v463
    %948 = vmatpush1.msra.mxu0 %v462
    %949 = vmatprep.subr.mxu0 %v465
    %950 = vmatpush1.msra.mxu0 %v464
    %951 = vmatprep.subr.mxu0 %v467
    %952 = vmatpush1.msra.mxu0 %v466
    %953 = vmatprep.subr.mxu0 %v469
    %954 = vmatpush1.msra.mxu0 %v468
    %955 = vmatprep.subr.mxu0 %v471
    %956 = vmatpush1.msra.mxu0 %v470
    %957 = vmatprep.subr.mxu0 %v473
    %958 = vmatpush1.msra.mxu0 %v472
    %959 = vmatprep.subr.mxu0 %v475
    %960 = vmatpush1.msra.mxu0 %v474
    %961 = vmatprep.subr.mxu0 %v477
    %962 = vmatpush1.msra.mxu0 %v476
    %963 = vmatprep.subr.mxu0 %v479
    %964 = vmatpush1.msra.mxu0 %v478
    %965 = vmatprep.subr.mxu0 %v481
    %966 = vmatpush1.msra.mxu0 %v480
    %967 = vmatprep.subr.mxu0 %v483
    %968 = vmatpush1.msra.mxu0 %v482
    %969 = vmatprep.subr.mxu0 %v485
    %970 = vmatpush1.msra.mxu0 %v484
    %971 = vmatprep.subr.mxu0 %v487
    %972 = vmatpush1.msra.mxu0 %v486
    %973 = vmatprep.subr.mxu0 %v489
    %974 = vmatpush1.msra.mxu0 %v488
    %975 = vmatprep.subr.mxu0 %v491
    %976 = vmatpush1.msra.mxu0 %v490
    %977 = vmatprep.subr.mxu0 %v493
    %978 = vmatpush1.msra.mxu0 %v492
    %979 = vmatprep.subr.mxu0 %v495
    %980 = vmatpush1.msra.mxu0 %v494
    %981 = vmatprep.subr.mxu0 %v497
    %982 = vmatpush1.msra.mxu0 %v496
    %983 = vmatprep.subr.mxu0 %v499
    %984 = vmatpush1.msra.mxu0 %v498
    %985 = vmatprep.subr.mxu0 %v501
    %986 = vmatpush1.msra.mxu0 %v500
    %987 = vmatprep.subr.mxu0 %v503
    %988 = vmatpush1.msra.mxu0 %v502
    %989 = vmatprep.subr.mxu0 %v505
    %990 = vmatpush1.msra.mxu0 %v504
    %991 = vmatprep.subr.mxu0 %v507
    %992 = vmatpush1.msra.mxu0 %v506
    %993 = vmatprep.subr.mxu0 %v509
    %994 = vmatpush1.msra.mxu0 %v508
    %995 = vmatprep.subr.mxu0 %v511
    %996 = vmatpush1.msra.mxu0 %v510
    %997 = vmatprep.mubr.f32.mxu0 %v331
    %998 = vmatmul.mubr.f32.gmra.mrb[0].mxu0 %v330
    %v999 = vpop.f32.mrb[0].mxu0
    %v1000 = vadd.f32 %v911, %v999
    %v1001 = vpop.f32.mrb[0].mxu0
    %v1002 = vadd.f32 %v913, %v1001
    %1003 = vmatprep.mubr.f32.mxu0 %v345
    %1004 = vmatmul.mubr.f32.gmra.mrb[0].mxu0 %v344
    %v1005 = vpop.f32.mrb[0].mxu0
    %v1006 = vadd.f32 %v917, %v1005
    %v1007 = vpop.f32.mrb[0].mxu0
    %v1008 = vadd.f32 %v919, %v1007
    %1009 = vmatprep.mubr.f32.mxu0 %v359
    %1010 = vmatmul.mubr.f32.gmra.mrb[0].mxu0 %v358
    %v1011 = vpop.f32.mrb[0].mxu0
    %v1012 = vadd.f32 %v923, %v1011
    %v1013 = vpop.f32.mrb[0].mxu0
    %v1014 = vadd.f32 %v925, %v1013
    %1015 = vmatprep.mubr.f32.mxu0 %v373
    %1016 = vmatmul.mubr.f32.gmra.mrb[0].mxu0 %v372
    %v1017 = vpop.f32.mrb[0].mxu0
    %v1018 = vadd.f32 %v929, %v1017
    %v1019 = vpop.f32.mrb[0].mxu0
    %v1020 = vadd.f32 %v931, %v1019
    %1021 = vdwg.mxu0
    %1022 = vmatprep.subr.mxu0 %v513
    %1023 = vmatpush1.msra.mxu0 %v512
    %1024 = vmatprep.subr.mxu0 %v515
    %1025 = vmatpush1.msra.mxu0 %v514
    %1026 = vmatprep.subr.mxu0 %v517
    %1027 = vmatpush1.msra.mxu0 %v516
    %1028 = vmatprep.subr.mxu0 %v519
    %1029 = vmatpush1.msra.mxu0 %v518
    %1030 = vmatprep.subr.mxu0 %v521
    %1031 = vmatpush1.msra.mxu0 %v520
    %1032 = vmatprep.subr.mxu0 %v523
    %1033 = vmatpush1.msra.mxu0 %v522
    %1034 = vmatprep.subr.mxu0 %v525
    %1035 = vmatpush1.msra.mxu0 %v524
    %1036 = vmatprep.subr.mxu0 %v527
    %1037 = vmatpush1.msra.mxu0 %v526
    %1038 = vmatprep.subr.mxu0 %v529
    %1039 = vmatpush1.msra.mxu0 %v528
    %1040 = vmatprep.subr.mxu0 %v531
    %1041 = vmatpush1.msra.mxu0 %v530
    %1042 = vmatprep.subr.mxu0 %v533
    %1043 = vmatpush1.msra.mxu0 %v532
    %1044 = vmatprep.subr.mxu0 %v535
    %1045 = vmatpush1.msra.mxu0 %v534
    %1046 = vmatprep.subr.mxu0 %v537
    %1047 = vmatpush1.msra.mxu0 %v536
    %1048 = vmatprep.subr.mxu0 %v539
    %1049 = vmatpush1.msra.mxu0 %v538
    %1050 = vmatprep.subr.mxu0 %v541
    %1051 = vmatpush1.msra.mxu0 %v540
    %1052 = vmatprep.subr.mxu0 %v543
    %1053 = vmatpush1.msra.mxu0 %v542
    %1054 = vmatprep.subr.mxu0 %v545
    %1055 = vmatpush1.msra.mxu0 %v544
    %1056 = vmatprep.subr.mxu0 %v547
    %1057 = vmatpush1.msra.mxu0 %v546
    %1058 = vmatprep.subr.mxu0 %v549
    %1059 = vmatpush1.msra.mxu0 %v548
    %1060 = vmatprep.subr.mxu0 %v551
    %1061 = vmatpush1.msra.mxu0 %v550
    %1062 = vmatprep.subr.mxu0 %v553
    %1063 = vmatpush1.msra.mxu0 %v552
    %1064 = vmatprep.subr.mxu0 %v555
    %1065 = vmatpush1.msra.mxu0 %v554
    %1066 = vmatprep.subr.mxu0 %v557
    %1067 = vmatpush1.msra.mxu0 %v556
    %1068 = vmatprep.subr.mxu0 %v559
    %1069 = vmatpush1.msra.mxu0 %v558
    %1070 = vmatprep.subr.mxu0 %v561
    %1071 = vmatpush1.msra.mxu0 %v560
    %1072 = vmatprep.subr.mxu0 %v563
    %1073 = vmatpush1.msra.mxu0 %v562
    %1074 = vmatprep.subr.mxu0 %v565
    %1075 = vmatpush1.msra.mxu0 %v564
    %1076 = vmatprep.subr.mxu0 %v567
    %1077 = vmatpush1.msra.mxu0 %v566
    %1078 = vmatprep.subr.mxu0 %v569
    %1079 = vmatpush1.msra.mxu0 %v568
    %1080 = vmatprep.subr.mxu0 %v571
    %1081 = vmatpush1.msra.mxu0 %v570
    %1082 = vmatprep.subr.mxu0 %v573
    %1083 = vmatpush1.msra.mxu0 %v572
    %1084 = vmatprep.subr.mxu0 %v575
    %1085 = vmatpush1.msra.mxu0 %v574
    %1086 = vmatprep.mubr.f32.mxu0 %v333
    %1087 = vmatmul.mubr.f32.gmra.mrb[0].mxu0 %v332
    %v1088 = vpop.f32.mrb[0].mxu0
    %v1089 = vadd.f32 %v1000, %v1088
    %v1090 = vpop.f32.mrb[0].mxu0
    %v1091 = vadd.f32 %v1002, %v1090
    %1092 = vmatprep.mubr.f32.mxu0 %v347
    %1093 = vmatmul.mubr.f32.gmra.mrb[0].mxu0 %v346
    %v1094 = vpop.f32.mrb[0].mxu0
    %v1095 = vadd.f32 %v1006, %v1094
    %v1096 = vpop.f32.mrb[0].mxu0
    %v1097 = vadd.f32 %v1008, %v1096
    %1098 = vmatprep.mubr.f32.mxu0 %v361
    %1099 = vmatmul.mubr.f32.gmra.mrb[0].mxu0 %v360
    %v1100 = vpop.f32.mrb[0].mxu0
    %v1101 = vadd.f32 %v1012, %v1100
    %v1102 = vpop.f32.mrb[0].mxu0
    %v1103 = vadd.f32 %v1014, %v1102
    %1104 = vmatprep.mubr.f32.mxu0 %v375
    %1105 = vmatmul.mubr.f32.gmra.mrb[0].mxu0 %v374
    %v1106 = vpop.f32.mrb[0].mxu0
    %v1107 = vadd.f32 %v1018, %v1106
    %v1108 = vpop.f32.mrb[0].mxu0
    %v1109 = vadd.f32 %v1020, %v1108
    %1110 = vdwg.mxu0
    %1111 = vmatprep.subr.mxu0 %v577
    %1112 = vmatpush1.msra.mxu0 %v576
    %1113 = vmatprep.subr.mxu0 %v579
    %1114 = vmatpush1.msra.mxu0 %v578
    %1115 = vmatprep.subr.mxu0 %v581
    %1116 = vmatpush1.msra.mxu0 %v580
    %1117 = vmatprep.subr.mxu0 %v583
    %1118 = vmatpush1.msra.mxu0 %v582
    %1119 = vmatprep.subr.mxu0 %v585
    %1120 = vmatpush1.msra.mxu0 %v584
    %1121 = vmatprep.subr.mxu0 %v587
    %1122 = vmatpush1.msra.mxu0 %v586
    %1123 = vmatprep.subr.mxu0 %v589
    %1124 = vmatpush1.msra.mxu0 %v588
    %1125 = vmatprep.subr.mxu0 %v591
    %1126 = vmatpush1.msra.mxu0 %v590
    %1127 = vmatprep.subr.mxu0 %v593
    %1128 = vmatpush1.msra.mxu0 %v592
    %1129 = vmatprep.subr.mxu0 %v595
    %1130 = vmatpush1.msra.mxu0 %v594
    %1131 = vmatprep.subr.mxu0 %v597
    %1132 = vmatpush1.msra.mxu0 %v596
    %1133 = vmatprep.subr.mxu0 %v599
    %1134 = vmatpush1.msra.mxu0 %v598
    %1135 = vmatprep.subr.mxu0 %v601
    %1136 = vmatpush1.msra.mxu0 %v600
    %1137 = vmatprep.subr.mxu0 %v603
    %1138 = vmatpush1.msra.mxu0 %v602
    %1139 = vmatprep.subr.mxu0 %v605
    %1140 = vmatpush1.msra.mxu0 %v604
    %1141 = vmatprep.subr.mxu0 %v607
    %1142 = vmatpush1.msra.mxu0 %v606
    %1143 = vmatprep.subr.mxu0 %v609
    %1144 = vmatpush1.msra.mxu0 %v608
    %1145 = vmatprep.subr.mxu0 %v611
    %1146 = vmatpush1.msra.mxu0 %v610
    %1147 = vmatprep.subr.mxu0 %v613
    %1148 = vmatpush1.msra.mxu0 %v612
    %1149 = vmatprep.subr.mxu0 %v615
    %1150 = vmatpush1.msra.mxu0 %v614
    %1151 = vmatprep.subr.mxu0 %v617
    %1152 = vmatpush1.msra.mxu0 %v616
    %1153 = vmatprep.subr.mxu0 %v619
    %1154 = vmatpush1.msra.mxu0 %v618
    %1155 = vmatprep.subr.mxu0 %v621
    %1156 = vmatpush1.msra.mxu0 %v620
    %1157 = vmatprep.subr.mxu0 %v623
    %1158 = vmatpush1.msra.mxu0 %v622
    %1159 = vmatprep.subr.mxu0 %v625
    %1160 = vmatpush1.msra.mxu0 %v624
    %1161 = vmatprep.subr.mxu0 %v627
    %1162 = vmatpush1.msra.mxu0 %v626
    %1163 = vmatprep.subr.mxu0 %v629
    %1164 = vmatpush1.msra.mxu0 %v628
    %1165 = vmatprep.subr.mxu0 %v631
    %1166 = vmatpush1.msra.mxu0 %v630
    %1167 = vmatprep.subr.mxu0 %v633
    %1168 = vmatpush1.msra.mxu0 %v632
    %1169 = vmatprep.subr.mxu0 %v635
    %1170 = vmatpush1.msra.mxu0 %v634
    %1171 = vmatprep.subr.mxu0 %v637
    %1172 = vmatpush1.msra.mxu0 %v636
    %1173 = vmatprep.subr.mxu0 %v639
    %1174 = vmatpush1.msra.mxu0 %v638
    %1175 = vmatprep.mubr.f32.mxu0 %v335
    %1176 = vmatmul.mubr.f32.gmra.mrb[0].mxu0 %v334
    %v1177 = vpop.f32.mrb[0].mxu0
    %v1178 = vadd.f32 %v1089, %v1177
    %v1179 = vpop.f32.mrb[0].mxu0
    %v1180 = vadd.f32 %v1091, %v1179
    %1181 = vmatprep.mubr.f32.mxu0 %v349
    %1182 = vmatmul.mubr.f32.gmra.mrb[0].mxu0 %v348
    %v1183 = vpop.f32.mrb[0].mxu0
    %v1184 = vadd.f32 %v1095, %v1183
    %v1185 = vpop.f32.mrb[0].mxu0
    %v1186 = vadd.f32 %v1097, %v1185
    %1187 = vmatprep.mubr.f32.mxu0 %v363
    %1188 = vmatmul.mubr.f32.gmra.mrb[0].mxu0 %v362
    %v1189 = vpop.f32.mrb[0].mxu0
    %v1190 = vadd.f32 %v1101, %v1189
    %v1191 = vpop.f32.mrb[0].mxu0
    %v1192 = vadd.f32 %v1103, %v1191
    %1193 = vmatprep.mubr.f32.mxu0 %v377
    %1194 = vmatmul.mubr.f32.gmra.mrb[0].mxu0 %v376
    %v1195 = vpop.f32.mrb[0].mxu0
    %v1196 = vadd.f32 %v1107, %v1195
    %v1197 = vpop.f32.mrb[0].mxu0
    %v1198 = vadd.f32 %v1109, %v1197
    %1199 = vdwg.mxu0
    %1200 = vmatprep.subr.mxu0 %v641
    %1201 = vmatpush1.msra.mxu0 %v640
    %1202 = vmatprep.subr.mxu0 %v643
    %1203 = vmatpush1.msra.mxu0 %v642
    %1204 = vmatprep.subr.mxu0 %v645
    %1205 = vmatpush1.msra.mxu0 %v644
    %1206 = vmatprep.subr.mxu0 %v647
    %1207 = vmatpush1.msra.mxu0 %v646
    %1208 = vmatprep.subr.mxu0 %v649
    %1209 = vmatpush1.msra.mxu0 %v648
    %1210 = vmatprep.subr.mxu0 %v651
    %1211 = vmatpush1.msra.mxu0 %v650
    %1212 = vmatprep.subr.mxu0 %v653
    %1213 = vmatpush1.msra.mxu0 %v652
    %1214 = vmatprep.subr.mxu0 %v655
    %1215 = vmatpush1.msra.mxu0 %v654
    %1216 = vmatprep.subr.mxu0 %v657
    %1217 = vmatpush1.msra.mxu0 %v656
    %1218 = vmatprep.subr.mxu0 %v659
    %1219 = vmatpush1.msra.mxu0 %v658
    %1220 = vmatprep.subr.mxu0 %v661
    %1221 = vmatpush1.msra.mxu0 %v660
    %1222 = vmatprep.subr.mxu0 %v663
    %1223 = vmatpush1.msra.mxu0 %v662
    %1224 = vmatprep.subr.mxu0 %v665
    %1225 = vmatpush1.msra.mxu0 %v664
    %1226 = vmatprep.subr.mxu0 %v667
    %1227 = vmatpush1.msra.mxu0 %v666
    %1228 = vmatprep.subr.mxu0 %v669
    %1229 = vmatpush1.msra.mxu0 %v668
    %1230 = vmatprep.subr.mxu0 %v671
    %1231 = vmatpush1.msra.mxu0 %v670
    %1232 = vmatprep.subr.mxu0 %v673
    %1233 = vmatpush1.msra.mxu0 %v672
    %1234 = vmatprep.subr.mxu0 %v675
    %1235 = vmatpush1.msra.mxu0 %v674
    %1236 = vmatprep.subr.mxu0 %v677
    %1237 = vmatpush1.msra.mxu0 %v676
    %1238 = vmatprep.subr.mxu0 %v679
    %1239 = vmatpush1.msra.mxu0 %v678
    %1240 = vmatprep.subr.mxu0 %v681
    %1241 = vmatpush1.msra.mxu0 %v680
    %1242 = vmatprep.subr.mxu0 %v683
    %1243 = vmatpush1.msra.mxu0 %v682
    %1244 = vmatprep.subr.mxu0 %v685
    %1245 = vmatpush1.msra.mxu0 %v684
    %1246 = vmatprep.subr.mxu0 %v687
    %1247 = vmatpush1.msra.mxu0 %v686
    %1248 = vmatprep.subr.mxu0 %v689
    %1249 = vmatpush1.msra.mxu0 %v688
    %1250 = vmatprep.subr.mxu0 %v691
    %1251 = vmatpush1.msra.mxu0 %v690
    %1252 = vmatprep.subr.mxu0 %v693
    %1253 = vmatpush1.msra.mxu0 %v692
    %1254 = vmatprep.subr.mxu0 %v695
    %1255 = vmatpush1.msra.mxu0 %v694
    %1256 = vmatprep.subr.mxu0 %v697
    %1257 = vmatpush1.msra.mxu0 %v696
    %1258 = vmatprep.subr.mxu0 %v699
    %1259 = vmatpush1.msra.mxu0 %v698
    %1260 = vmatprep.subr.mxu0 %v701
    %1261 = vmatpush1.msra.mxu0 %v700
    %1262 = vmatprep.subr.mxu0 %v703
    %1263 = vmatpush1.msra.mxu0 %v702
    %1264 = vmatprep.mubr.f32.mxu0 %v337
    %1265 = vmatmul.mubr.f32.gmra.mrb[0].mxu0 %v336
    %v1266 = vpop.f32.mrb[0].mxu0
    %v1267 = vadd.f32 %v1178, %v1266
    %v1268 = vpop.f32.mrb[0].mxu0
    %v1269 = vadd.f32 %v1180, %v1268
    %1270 = vmatprep.mubr.f32.mxu0 %v351
    %1271 = vmatmul.mubr.f32.gmra.mrb[0].mxu0 %v350
    %v1272 = vpop.f32.mrb[0].mxu0
    %v1273 = vadd.f32 %v1184, %v1272
    %v1274 = vpop.f32.mrb[0].mxu0
    %v1275 = vadd.f32 %v1186, %v1274
    %1276 = vmatprep.mubr.f32.mxu0 %v365
    %1277 = vmatmul.mubr.f32.gmra.mrb[0].mxu0 %v364
    %v1278 = vpop.f32.mrb[0].mxu0
    %v1279 = vadd.f32 %v1190, %v1278
    %v1280 = vpop.f32.mrb[0].mxu0
    %v1281 = vadd.f32 %v1192, %v1280
    %1282 = vmatprep.mubr.f32.mxu0 %v379
    %1283 = vmatmul.mubr.f32.gmra.mrb[0].mxu0 %v378
    %v1284 = vpop.f32.mrb[0].mxu0
    %v1285 = vadd.f32 %v1196, %v1284
    %v1286 = vpop.f32.mrb[0].mxu0
    %v1287 = vadd.f32 %v1198, %v1286
    %1288 = vdwg.mxu0
    %1289 = vmatprep.subr.mxu0 %v705
    %1290 = vmatpush1.msra.mxu0 %v704
    %1291 = vmatprep.subr.mxu0 %v707
    %1292 = vmatpush1.msra.mxu0 %v706
    %1293 = vmatprep.subr.mxu0 %v709
    %1294 = vmatpush1.msra.mxu0 %v708
    %1295 = vmatprep.subr.mxu0 %v711
    %1296 = vmatpush1.msra.mxu0 %v710
    %1297 = vmatprep.subr.mxu0 %v713
    %1298 = vmatpush1.msra.mxu0 %v712
    %1299 = vmatprep.subr.mxu0 %v715
    %1300 = vmatpush1.msra.mxu0 %v714
    %1301 = vmatprep.subr.mxu0 %v717
    %1302 = vmatpush1.msra.mxu0 %v716
    %1303 = vmatprep.subr.mxu0 %v719
    %1304 = vmatpush1.msra.mxu0 %v718
    %1305 = vmatprep.subr.mxu0 %v721
    %1306 = vmatpush1.msra.mxu0 %v720
    %1307 = vmatprep.subr.mxu0 %v723
    %1308 = vmatpush1.msra.mxu0 %v722
    %1309 = vmatprep.subr.mxu0 %v725
    %1310 = vmatpush1.msra.mxu0 %v724
    %1311 = vmatprep.subr.mxu0 %v727
    %1312 = vmatpush1.msra.mxu0 %v726
    %1313 = vmatprep.subr.mxu0 %v729
    %1314 = vmatpush1.msra.mxu0 %v728
    %1315 = vmatprep.subr.mxu0 %v731
    %1316 = vmatpush1.msra.mxu0 %v730
    %1317 = vmatprep.subr.mxu0 %v733
    %1318 = vmatpush1.msra.mxu0 %v732
    %1319 = vmatprep.subr.mxu0 %v735
    %1320 = vmatpush1.msra.mxu0 %v734
    %1321 = vmatprep.subr.mxu0 %v737
    %1322 = vmatpush1.msra.mxu0 %v736
    %1323 = vmatprep.subr.mxu0 %v739
    %1324 = vmatpush1.msra.mxu0 %v738
    %1325 = vmatprep.subr.mxu0 %v741
    %1326 = vmatpush1.msra.mxu0 %v740
    %1327 = vmatprep.subr.mxu0 %v743
    %1328 = vmatpush1.msra.mxu0 %v742
    %1329 = vmatprep.subr.mxu0 %v745
    %1330 = vmatpush1.msra.mxu0 %v744
    %1331 = vmatprep.subr.mxu0 %v747
    %1332 = vmatpush1.msra.mxu0 %v746
    %1333 = vmatprep.subr.mxu0 %v749
    %1334 = vmatpush1.msra.mxu0 %v748
    %1335 = vmatprep.subr.mxu0 %v751
    %1336 = vmatpush1.msra.mxu0 %v750
    %1337 = vmatprep.subr.mxu0 %v753
    %1338 = vmatpush1.msra.mxu0 %v752
    %1339 = vmatprep.subr.mxu0 %v755
    %1340 = vmatpush1.msra.mxu0 %v754
    %1341 = vmatprep.subr.mxu0 %v757
    %1342 = vmatpush1.msra.mxu0 %v756
    %1343 = vmatprep.subr.mxu0 %v759
    %1344 = vmatpush1.msra.mxu0 %v758
    %1345 = vmatprep.subr.mxu0 %v761
    %1346 = vmatpush1.msra.mxu0 %v760
    %1347 = vmatprep.subr.mxu0 %v763
    %1348 = vmatpush1.msra.mxu0 %v762
    %1349 = vmatprep.subr.mxu0 %v765
    %1350 = vmatpush1.msra.mxu0 %v764
    %1351 = vmatprep.subr.mxu0 %v767
    %1352 = vmatpush1.msra.mxu0 %v766
    %1353 = vmatprep.mubr.f32.mxu0 %v339
    %1354 = vmatmul.mubr.f32.gmra.mrb[0].mxu0 %v338
    %v1355 = vpop.f32.mrb[0].mxu0
    %v1356 = vadd.f32 %v1267, %v1355
    %v1357 = vpop.f32.mrb[0].mxu0
    %v1358 = vadd.f32 %v1269, %v1357
    %1359 = vmatprep.mubr.f32.mxu0 %v353
    %1360 = vmatmul.mubr.f32.gmra.mrb[0].mxu0 %v352
    %v1361 = vpop.f32.mrb[0].mxu0
    %v1362 = vadd.f32 %v1273, %v1361
    %v1363 = vpop.f32.mrb[0].mxu0
    %v1364 = vadd.f32 %v1275, %v1363
    %1365 = vmatprep.mubr.f32.mxu0 %v367
    %1366 = vmatmul.mubr.f32.gmra.mrb[0].mxu0 %v366
    %v1367 = vpop.f32.mrb[0].mxu0
    %v1368 = vadd.f32 %v1279, %v1367
    %v1369 = vpop.f32.mrb[0].mxu0
    %v1370 = vadd.f32 %v1281, %v1369
    %1371 = vmatprep.mubr.f32.mxu0 %v381
    %1372 = vmatmul.mubr.f32.gmra.mrb[0].mxu0 %v380
    %v1373 = vpop.f32.mrb[0].mxu0
    %v1374 = vadd.f32 %v1285, %v1373
    %v1375 = vpop.f32.mrb[0].mxu0
    %v1376 = vadd.f32 %v1287, %v1375
    %1377 = vdwg.mxu0
    %1378 = vmatprep.subr.mxu0 %v769
    %1379 = vmatpush1.msra.mxu0 %v768
    %1380 = vmatprep.subr.mxu0 %v771
    %1381 = vmatpush1.msra.mxu0 %v770
    %1382 = vmatprep.subr.mxu0 %v773
    %1383 = vmatpush1.msra.mxu0 %v772
    %1384 = vmatprep.subr.mxu0 %v775
    %1385 = vmatpush1.msra.mxu0 %v774
    %1386 = vmatprep.subr.mxu0 %v777
    %1387 = vmatpush1.msra.mxu0 %v776
    %1388 = vmatprep.subr.mxu0 %v779
    %1389 = vmatpush1.msra.mxu0 %v778
    %1390 = vmatprep.subr.mxu0 %v781
    %1391 = vmatpush1.msra.mxu0 %v780
    %1392 = vmatprep.subr.mxu0 %v783
    %1393 = vmatpush1.msra.mxu0 %v782
    %1394 = vmatprep.subr.mxu0 %v785
    %1395 = vmatpush1.msra.mxu0 %v784
    %1396 = vmatprep.subr.mxu0 %v787
    %1397 = vmatpush1.msra.mxu0 %v786
    %1398 = vmatprep.subr.mxu0 %v789
    %1399 = vmatpush1.msra.mxu0 %v788
    %1400 = vmatprep.subr.mxu0 %v791
    %1401 = vmatpush1.msra.mxu0 %v790
    %1402 = vmatprep.subr.mxu0 %v793
    %1403 = vmatpush1.msra.mxu0 %v792
    %1404 = vmatprep.subr.mxu0 %v795
    %1405 = vmatpush1.msra.mxu0 %v794
    %1406 = vmatprep.subr.mxu0 %v797
    %1407 = vmatpush1.msra.mxu0 %v796
    %1408 = vmatprep.subr.mxu0 %v799
    %1409 = vmatpush1.msra.mxu0 %v798
    %1410 = vmatprep.subr.mxu0 %v801
    %1411 = vmatpush1.msra.mxu0 %v800
    %1412 = vmatprep.subr.mxu0 %v803
    %1413 = vmatpush1.msra.mxu0 %v802
    %1414 = vmatprep.subr.mxu0 %v805
    %1415 = vmatpush1.msra.mxu0 %v804
    %1416 = vmatprep.subr.mxu0 %v807
    %1417 = vmatpush1.msra.mxu0 %v806
    %1418 = vmatprep.subr.mxu0 %v809
    %1419 = vmatpush1.msra.mxu0 %v808
    %1420 = vmatprep.subr.mxu0 %v811
    %1421 = vmatpush1.msra.mxu0 %v810
    %1422 = vmatprep.subr.mxu0 %v813
    %1423 = vmatpush1.msra.mxu0 %v812
    %1424 = vmatprep.subr.mxu0 %v815
    %1425 = vmatpush1.msra.mxu0 %v814
    %1426 = vmatprep.subr.mxu0 %v817
    %1427 = vmatpush1.msra.mxu0 %v816
    %1428 = vmatprep.subr.mxu0 %v819
    %1429 = vmatpush1.msra.mxu0 %v818
    %1430 = vmatprep.subr.mxu0 %v821
    %1431 = vmatpush1.msra.mxu0 %v820
    %1432 = vmatprep.subr.mxu0 %v823
    %1433 = vmatpush1.msra.mxu0 %v822
    %1434 = vmatprep.subr.mxu0 %v825
    %1435 = vmatpush1.msra.mxu0 %v824
    %1436 = vmatprep.subr.mxu0 %v827
    %1437 = vmatpush1.msra.mxu0 %v826
    %1438 = vmatprep.subr.mxu0 %v829
    %1439 = vmatpush1.msra.mxu0 %v828
    %1440 = vmatprep.subr.mxu0 %v831
    %1441 = vmatpush1.msra.mxu0 %v830
    %1442 = vmatprep.mubr.f32.mxu0 %v341
    %1443 = vmatmul.mubr.f32.gmra.mrb[0].mxu0 %v340
    %v1444 = vpop.f32.mrb[0].mxu0
    %v1445 = vadd.f32 %v1356, %v1444
    %v1446 = vpop.f32.mrb[0].mxu0
    %v1447 = vadd.f32 %v1358, %v1446
    %1448 = vmatprep.mubr.f32.mxu0 %v355
    %1449 = vmatmul.mubr.f32.gmra.mrb[0].mxu0 %v354
    %v1450 = vpop.f32.mrb[0].mxu0
    %v1451 = vadd.f32 %v1362, %v1450
    %v1452 = vpop.f32.mrb[0].mxu0
    %v1453 = vadd.f32 %v1364, %v1452
    %1454 = vmatprep.mubr.f32.mxu0 %v369
    %1455 = vmatmul.mubr.f32.gmra.mrb[0].mxu0 %v368
    %v1456 = vpop.f32.mrb[0].mxu0
    %v1457 = vadd.f32 %v1368, %v1456
    %v1458 = vpop.f32.mrb[0].mxu0
    %v1459 = vadd.f32 %v1370, %v1458
    %1460 = vmatprep.mubr.f32.mxu0 %v383
    %1461 = vmatmul.mubr.f32.gmra.mrb[0].mxu0 %v382
    %v1462 = vpop.f32.mrb[0].mxu0
    %v1463 = vadd.f32 %v1374, %v1462
    %v1464 = vpop.f32.mrb[0].mxu0
    %v1465 = vadd.f32 %v1376, %v1464
    %1466 = vdwg.mxu0
    %v1467 = vmax.f32 %v1445, 0.0
    %v1468 = vmax.f32 %v1447, 0.0
    %v1469 = vmax.f32 %v1451, 0.0
    %v1470 = vmax.f32 %v1453, 0.0
    %v1471 = vmax.f32 %v1457, 0.0
    %v1472 = vmax.f32 %v1459, 0.0
    %v1473 = vmax.f32 %v1463, 0.0
    %v1474 = vmax.f32 %v1465, 0.0
    %v1479 = vrot.slane %v1467, 5
    %v1480 = vrot.slane %v1468, 5
    %v1481 = vrot.slane %v1469, 5
    %v1482 = vsel %vm142, %v1479, %v1481
    %v1483 = vrot.slane %v1470, 5
    %v1484 = vsel %vm142, %v1480, %v1483
    %1489 = vst [vmem:[#allocation2] sm:$0xf8] %v1479
    %1490 = vst [vmem:[#allocation2 + $0x8] sm:$0xf8] %v1480
    %1491 = vst [vmem:[#allocation2 + $0x70] sm:$0xff] %v1482
    %1492 = vst [vmem:[#allocation2 + $0x78] sm:$0xff] %v1484
    %v1493 = vrot.slane %v1467, 6
    %v1494 = vrot.slane %v1468, 6
    %v1495 = vrot.slane %v1469, 6
    %v1496 = vsel %vm157, %v1493, %v1495
    %v1497 = vrot.slane %v1470, 6
    %v1498 = vsel %vm157, %v1494, %v1497
    %1503 = vst [vmem:[#allocation2 + $0x10] sm:$0xfc] %v1493
    %1504 = vst [vmem:[#allocation2 + $0x18] sm:$0xfc] %v1494
    %1505 = vst [vmem:[#allocation2 + $0x80] sm:$0xff] %v1496
    %1506 = vst [vmem:[#allocation2 + $0x88] sm:$0xff] %v1498
    %v1507 = vrot.slane %v1467, 7
    %v1508 = vrot.slane %v1468, 7
    %v1509 = vrot.slane %v1469, 7
    %v1510 = vsel %vm172, %v1507, %v1509
    %v1511 = vrot.slane %v1470, 7
    %v1512 = vsel %vm172, %v1508, %v1511
    %1517 = vst [vmem:[#allocation2 + $0x20] sm:$0xfe] %v1507
    %1518 = vst [vmem:[#allocation2 + $0x28] sm:$0xfe] %v1508
    %1519 = vst [vmem:[#allocation2 + $0x90] sm:$0xff] %v1510
    %1520 = vst [vmem:[#allocation2 + $0x98] sm:$0xff] %v1512
    %1521 = vst [vmem:[#allocation2 + $0x30] sm:$0xff] %v1467
    %1522 = vst [vmem:[#allocation2 + $0x38] sm:$0xff] %v1468
    %1523 = vst [vmem:[#allocation2 + $0xa0] sm:$0xff] %v1469
    %1524 = vst [vmem:[#allocation2 + $0xa8] sm:$0xff] %v1470
    %v1525 = vrot.slane %v1467, 1
    %v1526 = vrot.slane %v1469, 1
    %v1527 = vsel %vm191, %v1525, %v1526
    %v1528 = vrot.slane %v1468, 1
    %v1529 = vrot.slane %v1470, 1
    %v1530 = vsel %vm191, %v1528, %v1529
    %1535 = vst [vmem:[#allocation2 + $0x40] sm:$0xff] %v1527
    %1536 = vst [vmem:[#allocation2 + $0x48] sm:$0xff] %v1530
    %1537 = vst [vmem:[#allocation2 + $0xb0] sm:$0x7f] %v1526
    %1538 = vst [vmem:[#allocation2 + $0xb8] sm:$0x7f] %v1529
    %v1539 = vrot.slane %v1467, 2
    %v1540 = vrot.slane %v1469, 2
    %v1541 = vsel %vm206, %v1539, %v1540
    %v1542 = vrot.slane %v1468, 2
    %v1543 = vrot.slane %v1470, 2
    %v1544 = vsel %vm206, %v1542, %v1543
    %1549 = vst [vmem:[#allocation2 + $0x50] sm:$0xff] %v1541
    %1550 = vst [vmem:[#allocation2 + $0x58] sm:$0xff] %v1544
    %1551 = vst [vmem:[#allocation2 + $0xc0] sm:$0x3f] %v1540
    %1552 = vst [vmem:[#allocation2 + $0xc8] sm:$0x3f] %v1543
    %v1553 = vrot.slane %v1467, 3
    %v1554 = vrot.slane %v1469, 3
    %v1555 = vsel %vm221, %v1553, %v1554
    %v1556 = vrot.slane %v1468, 3
    %v1557 = vrot.slane %v1470, 3
    %v1558 = vsel %vm221, %v1556, %v1557
    %1563 = vst [vmem:[#allocation2 + $0x60] sm:$0xff] %v1555
    %1564 = vst [vmem:[#allocation2 + $0x68] sm:$0xff] %v1558
    %1565 = vst [vmem:[#allocation2 + $0xd0] sm:$0x1f] %v1554
    %1566 = vst [vmem:[#allocation2 + $0xd8] sm:$0x1f] %v1557
    %v1571 = vrot.slane %v1471, 5
    %v1572 = vrot.slane %v1472, 5
    %v1573 = vrot.slane %v1473, 5
    %v1574 = vsel %vm142, %v1571, %v1573
    %v1575 = vrot.slane %v1474, 5
    %v1576 = vsel %vm142, %v1572, %v1575
    %1581 = vst [vmem:[#allocation2 + $0xe0] sm:$0xf8] %v1571
    %1582 = vst [vmem:[#allocation2 + $0xe8] sm:$0xf8] %v1572
    %1583 = vst [vmem:[#allocation2 + $0x150] sm:$0xff] %v1574
    %1584 = vst [vmem:[#allocation2 + $0x158] sm:$0xff] %v1576
    %v1585 = vrot.slane %v1471, 6
    %v1586 = vrot.slane %v1472, 6
    %v1587 = vrot.slane %v1473, 6
    %v1588 = vsel %vm157, %v1585, %v1587
    %v1589 = vrot.slane %v1474, 6
    %v1590 = vsel %vm157, %v1586, %v1589
    %1595 = vst [vmem:[#allocation2 + $0xf0] sm:$0xfc] %v1585
    %1596 = vst [vmem:[#allocation2 + $0xf8] sm:$0xfc] %v1586
    %1597 = vst [vmem:[#allocation2 + $0x160] sm:$0xff] %v1588
    %1598 = vst [vmem:[#allocation2 + $0x168] sm:$0xff] %v1590
    %v1599 = vrot.slane %v1471, 7
    %v1600 = vrot.slane %v1472, 7
    %v1601 = vrot.slane %v1473, 7
    %v1602 = vsel %vm172, %v1599, %v1601
    %v1603 = vrot.slane %v1474, 7
    %v1604 = vsel %vm172, %v1600, %v1603
    %1609 = vst [vmem:[#allocation2 + $0x100] sm:$0xfe] %v1599
    %1610 = vst [vmem:[#allocation2 + $0x108] sm:$0xfe] %v1600
    %1611 = vst [vmem:[#allocation2 + $0x170] sm:$0xff] %v1602
    %1612 = vst [vmem:[#allocation2 + $0x178] sm:$0xff] %v1604
    %1613 = vst [vmem:[#allocation2 + $0x110] sm:$0xff] %v1471
    %1614 = vst [vmem:[#allocation2 + $0x118] sm:$0xff] %v1472
    %1615 = vst [vmem:[#allocation2 + $0x180] sm:$0xff] %v1473
    %1616 = vst [vmem:[#allocation2 + $0x188] sm:$0xff] %v1474
    %v1617 = vrot.slane %v1471, 1
    %v1618 = vrot.slane %v1473, 1
    %v1619 = vsel %vm191, %v1617, %v1618
    %v1620 = vrot.slane %v1472, 1
    %v1621 = vrot.slane %v1474, 1
    %v1622 = vsel %vm191, %v1620, %v1621
    %1627 = vst [vmem:[#allocation2 + $0x120] sm:$0xff] %v1619
    %1628 = vst [vmem:[#allocation2 + $0x128] sm:$0xff] %v1622
    %1629 = vst [vmem:[#allocation2 + $0x190] sm:$0x7f] %v1618
    %1630 = vst [vmem:[#allocation2 + $0x198] sm:$0x7f] %v1621
    %v1631 = vrot.slane %v1471, 2
    %v1632 = vrot.slane %v1473, 2
    %v1633 = vsel %vm206, %v1631, %v1632
    %v1634 = vrot.slane %v1472, 2
    %v1635 = vrot.slane %v1474, 2
    %v1636 = vsel %vm206, %v1634, %v1635
    %1641 = vst [vmem:[#allocation2 + $0x130] sm:$0xff] %v1633
    %1642 = vst [vmem:[#allocation2 + $0x138] sm:$0xff] %v1636
    %1643 = vst [vmem:[#allocation2 + $0x1a0] sm:$0x3f] %v1632
    %1644 = vst [vmem:[#allocation2 + $0x1a8] sm:$0x3f] %v1635
    %v1645 = vrot.slane %v1471, 3
    %v1646 = vrot.slane %v1473, 3
    %v1647 = vsel %vm221, %v1645, %v1646
    %v1648 = vrot.slane %v1472, 3
    %v1649 = vrot.slane %v1474, 3
    %v1650 = vsel %vm221, %v1648, %v1649
    %1655 = vst [vmem:[#allocation2 + $0x140] sm:$0xff] %v1647
    %1656 = vst [vmem:[#allocation2 + $0x148] sm:$0xff] %v1650
    %1657 = vst [vmem:[#allocation2 + $0x1b0] sm:$0x1f] %v1646
    %1658 = vst [vmem:[#allocation2 + $0x1b8] sm:$0x1f] %v1649
    %v1659 = vld [vmem:[#allocation2] sm:$0xff]
    %v1660 = vld [vmem:[#allocation2 + $0x8] sm:$0xff]
    %v1661 = vld [vmem:[#allocation2 + $0x10] sm:$0xff]
    %v1662 = vld [vmem:[#allocation2 + $0x18] sm:$0xff]
    %v1663 = vld [vmem:[#allocation2 + $0x20] sm:$0xff]
    %v1664 = vld [vmem:[#allocation2 + $0x28] sm:$0xff]
    %v1665 = vld [vmem:[#allocation2 + $0x30] sm:$0xff]
    %v1666 = vld [vmem:[#allocation2 + $0x38] sm:$0xff]
    %v1667 = vld [vmem:[#allocation2 + $0x40] sm:$0xff]
    %v1668 = vld [vmem:[#allocation2 + $0x48] sm:$0xff]
    %v1669 = vld [vmem:[#allocation2 + $0x50] sm:$0xff]
    %v1670 = vld [vmem:[#allocation2 + $0x58] sm:$0xff]
    %v1671 = vld [vmem:[#allocation2 + $0x60] sm:$0xff]
    %v1672 = vld [vmem:[#allocation2 + $0x68] sm:$0xff]
    %v1673 = vld [vmem:[#allocation2 + $0x70] sm:$0xff]
    %v1674 = vld [vmem:[#allocation2 + $0x78] sm:$0xff]
    %v1675 = vld [vmem:[#allocation2 + $0x80] sm:$0xff]
    %v1676 = vld [vmem:[#allocation2 + $0x88] sm:$0xff]
    %v1677 = vld [vmem:[#allocation2 + $0x90] sm:$0xff]
    %v1678 = vld [vmem:[#allocation2 + $0x98] sm:$0xff]
    %v1679 = vld [vmem:[#allocation2 + $0xa0] sm:$0xff]
    %v1680 = vld [vmem:[#allocation2 + $0xa8] sm:$0xff]
    %v1681 = vld [vmem:[#allocation2 + $0xb0] sm:$0xff]
    %v1682 = vld [vmem:[#allocation2 + $0xb8] sm:$0xff]
    %v1683 = vld [vmem:[#allocation2 + $0xc0] sm:$0xff]
    %v1684 = vld [vmem:[#allocation2 + $0xc8] sm:$0xff]
    %v1685 = vld [vmem:[#allocation2 + $0xd0] sm:$0xff]
    %v1686 = vld [vmem:[#allocation2 + $0xd8] sm:$0xff]
    %v1687 = vld [vmem:[#allocation2 + $0xe0] sm:$0xff]
    %v1688 = vld [vmem:[#allocation2 + $0xe8] sm:$0xff]
    %v1689 = vld [vmem:[#allocation2 + $0xf0] sm:$0xff]
    %v1690 = vld [vmem:[#allocation2 + $0xf8] sm:$0xff]
    %v1691 = vld [vmem:[#allocation2 + $0x100] sm:$0xff]
    %v1692 = vld [vmem:[#allocation2 + $0x108] sm:$0xff]
    %v1693 = vld [vmem:[#allocation2 + $0x110] sm:$0xff]
    %v1694 = vld [vmem:[#allocation2 + $0x118] sm:$0xff]
    %v1695 = vld [vmem:[#allocation2 + $0x120] sm:$0xff]
    %v1696 = vld [vmem:[#allocation2 + $0x128] sm:$0xff]
    %v1697 = vld [vmem:[#allocation2 + $0x130] sm:$0xff]
    %v1698 = vld [vmem:[#allocation2 + $0x138] sm:$0xff]
    %v1699 = vld [vmem:[#allocation2 + $0x140] sm:$0xff]
    %v1700 = vld [vmem:[#allocation2 + $0x148] sm:$0xff]
    %v1701 = vld [vmem:[#allocation2 + $0x150] sm:$0xff]
    %v1702 = vld [vmem:[#allocation2 + $0x158] sm:$0xff]
    %v1703 = vld [vmem:[#allocation2 + $0x160] sm:$0xff]
    %v1704 = vld [vmem:[#allocation2 + $0x168] sm:$0xff]
    %v1705 = vld [vmem:[#allocation2 + $0x170] sm:$0xff]
    %v1706 = vld [vmem:[#allocation2 + $0x178] sm:$0xff]
    %v1707 = vld [vmem:[#allocation2 + $0x180] sm:$0xff]
    %v1708 = vld [vmem:[#allocation2 + $0x188] sm:$0xff]
    %v1709 = vld [vmem:[#allocation2 + $0x190] sm:$0xff]
    %v1710 = vld [vmem:[#allocation2 + $0x198] sm:$0xff]
    %v1711 = vld [vmem:[#allocation2 + $0x1a0] sm:$0xff]
    %v1712 = vld [vmem:[#allocation2 + $0x1a8] sm:$0xff]
    %v1713 = vld [vmem:[#allocation2 + $0x1b0] sm:$0xff]
    %v1714 = vld [vmem:[#allocation2 + $0x1b8] sm:$0xff]
    %v1715 = vld [vmem:[#allocation3] sm:$0xff]
    %v1716 = vld [vmem:[#allocation3 + $0x8] sm:$0xff]
    %v1717 = vld [vmem:[#allocation3 + $0x10] sm:$0xff]
    %v1718 = vld [vmem:[#allocation3 + $0x18] sm:$0xff]
    %v1719 = vld [vmem:[#allocation3 + $0x20] sm:$0xff]
    %v1720 = vld [vmem:[#allocation3 + $0x28] sm:$0xff]
    %v1721 = vld [vmem:[#allocation3 + $0x30] sm:$0xff]
    %v1722 = vld [vmem:[#allocation3 + $0x38] sm:$0xff]
    %v1723 = vld [vmem:[#allocation3 + $0x40] sm:$0xff]
    %v1724 = vld [vmem:[#allocation3 + $0x48] sm:$0xff]
    %v1725 = vld [vmem:[#allocation3 + $0x50] sm:$0xff]
    %v1726 = vld [vmem:[#allocation3 + $0x58] sm:$0xff]
    %v1727 = vld [vmem:[#allocation3 + $0x60] sm:$0xff]
    %v1728 = vld [vmem:[#allocation3 + $0x68] sm:$0xff]
    %v1729 = vld [vmem:[#allocation3 + $0x70] sm:$0xff]
    %v1730 = vld [vmem:[#allocation3 + $0x78] sm:$0xff]
    %v1731 = vld [vmem:[#allocation3 + $0x80] sm:$0xff]
    %v1732 = vld [vmem:[#allocation3 + $0x88] sm:$0xff]
    %v1733 = vld [vmem:[#allocation3 + $0x90] sm:$0xff]
    %v1734 = vld [vmem:[#allocation3 + $0x98] sm:$0xff]
    %v1735 = vld [vmem:[#allocation3 + $0xa0] sm:$0xff]
    %v1736 = vld [vmem:[#allocation3 + $0xa8] sm:$0xff]
    %v1737 = vld [vmem:[#allocation3 + $0xb0] sm:$0xff]
    %v1738 = vld [vmem:[#allocation3 + $0xb8] sm:$0xff]
    %v1739 = vld [vmem:[#allocation3 + $0xc0] sm:$0xff]
    %v1740 = vld [vmem:[#allocation3 + $0xc8] sm:$0xff]
    %v1741 = vld [vmem:[#allocation3 + $0xd0] sm:$0xff]
    %v1742 = vld [vmem:[#allocation3 + $0xd8] sm:$0xff]
    %v1743 = vld [vmem:[#allocation3 + $0xe0] sm:$0xff]
    %v1744 = vld [vmem:[#allocation3 + $0xe8] sm:$0xff]
    %v1745 = vld [vmem:[#allocation3 + $0xf0] sm:$0xff]
    %v1746 = vld [vmem:[#allocation3 + $0xf8] sm:$0xff]
    %v1747 = vld [vmem:[#allocation3 + $0x100] sm:$0xff]
    %v1748 = vld [vmem:[#allocation3 + $0x108] sm:$0xff]
    %v1749 = vld [vmem:[#allocation3 + $0x110] sm:$0xff]
    %v1750 = vld [vmem:[#allocation3 + $0x118] sm:$0xff]
    %v1751 = vld [vmem:[#allocation3 + $0x120] sm:$0xff]
    %v1752 = vld [vmem:[#allocation3 + $0x128] sm:$0xff]
    %v1753 = vld [vmem:[#allocation3 + $0x130] sm:$0xff]
    %v1754 = vld [vmem:[#allocation3 + $0x138] sm:$0xff]
    %v1755 = vld [vmem:[#allocation3 + $0x140] sm:$0xff]
    %v1756 = vld [vmem:[#allocation3 + $0x148] sm:$0xff]
    %v1757 = vld [vmem:[#allocation3 + $0x150] sm:$0xff]
    %v1758 = vld [vmem:[#allocation3 + $0x158] sm:$0xff]
    %v1759 = vld [vmem:[#allocation3 + $0x160] sm:$0xff]
    %v1760 = vld [vmem:[#allocation3 + $0x168] sm:$0xff]
    %v1761 = vld [vmem:[#allocation3 + $0x170] sm:$0xff]
    %v1762 = vld [vmem:[#allocation3 + $0x178] sm:$0xff]
    %v1763 = vld [vmem:[#allocation3 + $0x180] sm:$0xff]
    %v1764 = vld [vmem:[#allocation3 + $0x188] sm:$0xff]
    %v1765 = vld [vmem:[#allocation3 + $0x190] sm:$0xff]
    %v1766 = vld [vmem:[#allocation3 + $0x198] sm:$0xff]
    %v1767 = vld [vmem:[#allocation3 + $0x1a0] sm:$0xff]
    %v1768 = vld [vmem:[#allocation3 + $0x1a8] sm:$0xff]
    %v1769 = vld [vmem:[#allocation3 + $0x1b0] sm:$0xff]
    %v1770 = vld [vmem:[#allocation3 + $0x1b8] sm:$0xff]
    %v1771 = vld [vmem:[#allocation3 + $0x1c0] sm:$0xff]
    %v1772 = vld [vmem:[#allocation3 + $0x1c8] sm:$0xff]
    %v1773 = vld [vmem:[#allocation3 + $0x1d0] sm:$0xff]
    %v1774 = vld [vmem:[#allocation3 + $0x1d8] sm:$0xff]
    %v1775 = vld [vmem:[#allocation3 + $0x1e0] sm:$0xff]
    %v1776 = vld [vmem:[#allocation3 + $0x1e8] sm:$0xff]
    %v1777 = vld [vmem:[#allocation3 + $0x1f0] sm:$0xff]
    %v1778 = vld [vmem:[#allocation3 + $0x1f8] sm:$0xff]
    %v1779 = vld [vmem:[#allocation3 + $0x200] sm:$0xff]
    %v1780 = vld [vmem:[#allocation3 + $0x208] sm:$0xff]
    %v1781 = vld [vmem:[#allocation3 + $0x210] sm:$0xff]
    %v1782 = vld [vmem:[#allocation3 + $0x218] sm:$0xff]
    %v1783 = vld [vmem:[#allocation3 + $0x220] sm:$0xff]
    %v1784 = vld [vmem:[#allocation3 + $0x228] sm:$0xff]
    %v1785 = vld [vmem:[#allocation3 + $0x230] sm:$0xff]
    %v1786 = vld [vmem:[#allocation3 + $0x238] sm:$0xff]
    %v1787 = vld [vmem:[#allocation3 + $0x240] sm:$0xff]
    %v1788 = vld [vmem:[#allocation3 + $0x248] sm:$0xff]
    %v1789 = vld [vmem:[#allocation3 + $0x250] sm:$0xff]
    %v1790 = vld [vmem:[#allocation3 + $0x258] sm:$0xff]
    %v1791 = vld [vmem:[#allocation3 + $0x260] sm:$0xff]
    %v1792 = vld [vmem:[#allocation3 + $0x268] sm:$0xff]
    %v1793 = vld [vmem:[#allocation3 + $0x270] sm:$0xff]
    %v1794 = vld [vmem:[#allocation3 + $0x278] sm:$0xff]
    %v1795 = vld [vmem:[#allocation3 + $0x280] sm:$0xff]
    %v1796 = vld [vmem:[#allocation3 + $0x288] sm:$0xff]
    %v1797 = vld [vmem:[#allocation3 + $0x290] sm:$0xff]
    %v1798 = vld [vmem:[#allocation3 + $0x298] sm:$0xff]
    %v1799 = vld [vmem:[#allocation3 + $0x2a0] sm:$0xff]
    %v1800 = vld [vmem:[#allocation3 + $0x2a8] sm:$0xff]
    %v1801 = vld [vmem:[#allocation3 + $0x2b0] sm:$0xff]
    %v1802 = vld [vmem:[#allocation3 + $0x2b8] sm:$0xff]
    %v1803 = vld [vmem:[#allocation3 + $0x2c0] sm:$0xff]
    %v1804 = vld [vmem:[#allocation3 + $0x2c8] sm:$0xff]
    %v1805 = vld [vmem:[#allocation3 + $0x2d0] sm:$0xff]
    %v1806 = vld [vmem:[#allocation3 + $0x2d8] sm:$0xff]
    %v1807 = vld [vmem:[#allocation3 + $0x2e0] sm:$0xff]
    %v1808 = vld [vmem:[#allocation3 + $0x2e8] sm:$0xff]
    %v1809 = vld [vmem:[#allocation3 + $0x2f0] sm:$0xff]
    %v1810 = vld [vmem:[#allocation3 + $0x2f8] sm:$0xff]
    %v1811 = vld [vmem:[#allocation3 + $0x300] sm:$0xff]
    %v1812 = vld [vmem:[#allocation3 + $0x308] sm:$0xff]
    %v1813 = vld [vmem:[#allocation3 + $0x310] sm:$0xff]
    %v1814 = vld [vmem:[#allocation3 + $0x318] sm:$0xff]
    %v1815 = vld [vmem:[#allocation3 + $0x320] sm:$0xff]
    %v1816 = vld [vmem:[#allocation3 + $0x328] sm:$0xff]
    %v1817 = vld [vmem:[#allocation3 + $0x330] sm:$0xff]
    %v1818 = vld [vmem:[#allocation3 + $0x338] sm:$0xff]
    %v1819 = vld [vmem:[#allocation3 + $0x340] sm:$0xff]
    %v1820 = vld [vmem:[#allocation3 + $0x348] sm:$0xff]
    %v1821 = vld [vmem:[#allocation3 + $0x350] sm:$0xff]
    %v1822 = vld [vmem:[#allocation3 + $0x358] sm:$0xff]
    %v1823 = vld [vmem:[#allocation3 + $0x360] sm:$0xff]
    %v1824 = vld [vmem:[#allocation3 + $0x368] sm:$0xff]
    %v1825 = vld [vmem:[#allocation3 + $0x370] sm:$0xff]
    %v1826 = vld [vmem:[#allocation3 + $0x378] sm:$0xff]
    %v1827 = vld [vmem:[#allocation3 + $0x380] sm:$0xff]
    %v1828 = vld [vmem:[#allocation3 + $0x388] sm:$0xff]
    %v1829 = vld [vmem:[#allocation3 + $0x390] sm:$0xff]
    %v1830 = vld [vmem:[#allocation3 + $0x398] sm:$0xff]
    %v1831 = vld [vmem:[#allocation3 + $0x3a0] sm:$0xff]
    %v1832 = vld [vmem:[#allocation3 + $0x3a8] sm:$0xff]
    %v1833 = vld [vmem:[#allocation3 + $0x3b0] sm:$0xff]
    %v1834 = vld [vmem:[#allocation3 + $0x3b8] sm:$0xff]
    %v1835 = vld [vmem:[#allocation3 + $0x3c0] sm:$0xff]
    %v1836 = vld [vmem:[#allocation3 + $0x3c8] sm:$0xff]
    %v1837 = vld [vmem:[#allocation3 + $0x3d0] sm:$0xff]
    %v1838 = vld [vmem:[#allocation3 + $0x3d8] sm:$0xff]
    %v1839 = vld [vmem:[#allocation3 + $0x3e0] sm:$0xff]
    %v1840 = vld [vmem:[#allocation3 + $0x3e8] sm:$0xff]
    %v1841 = vld [vmem:[#allocation3 + $0x3f0] sm:$0xff]
    %v1842 = vld [vmem:[#allocation3 + $0x3f8] sm:$0xff]
    %v1843 = vld [vmem:[#allocation3 + $0x400] sm:$0xff]
    %v1844 = vld [vmem:[#allocation3 + $0x408] sm:$0xff]
    %v1845 = vld [vmem:[#allocation3 + $0x410] sm:$0xff]
    %v1846 = vld [vmem:[#allocation3 + $0x418] sm:$0xff]
    %v1847 = vld [vmem:[#allocation3 + $0x420] sm:$0xff]
    %v1848 = vld [vmem:[#allocation3 + $0x428] sm:$0xff]
    %v1849 = vld [vmem:[#allocation3 + $0x430] sm:$0xff]
    %v1850 = vld [vmem:[#allocation3 + $0x438] sm:$0xff]
    %v1851 = vld [vmem:[#allocation3 + $0x440] sm:$0xff]
    %v1852 = vld [vmem:[#allocation3 + $0x448] sm:$0xff]
    %v1853 = vld [vmem:[#allocation3 + $0x450] sm:$0xff]
    %v1854 = vld [vmem:[#allocation3 + $0x458] sm:$0xff]
    %v1855 = vld [vmem:[#allocation3 + $0x460] sm:$0xff]
    %v1856 = vld [vmem:[#allocation3 + $0x468] sm:$0xff]
    %v1857 = vld [vmem:[#allocation3 + $0x470] sm:$0xff]
    %v1858 = vld [vmem:[#allocation3 + $0x478] sm:$0xff]
    %v1859 = vld [vmem:[#allocation3 + $0x480] sm:$0xff]
    %v1860 = vld [vmem:[#allocation3 + $0x488] sm:$0xff]
    %v1861 = vld [vmem:[#allocation3 + $0x490] sm:$0xff]
    %v1862 = vld [vmem:[#allocation3 + $0x498] sm:$0xff]
    %v1863 = vld [vmem:[#allocation3 + $0x4a0] sm:$0xff]
    %v1864 = vld [vmem:[#allocation3 + $0x4a8] sm:$0xff]
    %v1865 = vld [vmem:[#allocation3 + $0x4b0] sm:$0xff]
    %v1866 = vld [vmem:[#allocation3 + $0x4b8] sm:$0xff]
    %v1867 = vld [vmem:[#allocation3 + $0x4c0] sm:$0xff]
    %v1868 = vld [vmem:[#allocation3 + $0x4c8] sm:$0xff]
    %v1869 = vld [vmem:[#allocation3 + $0x4d0] sm:$0xff]
    %v1870 = vld [vmem:[#allocation3 + $0x4d8] sm:$0xff]
    %v1871 = vld [vmem:[#allocation3 + $0x4e0] sm:$0xff]
    %v1872 = vld [vmem:[#allocation3 + $0x4e8] sm:$0xff]
    %v1873 = vld [vmem:[#allocation3 + $0x4f0] sm:$0xff]
    %v1874 = vld [vmem:[#allocation3 + $0x4f8] sm:$0xff]
    %v1875 = vld [vmem:[#allocation3 + $0x500] sm:$0xff]
    %v1876 = vld [vmem:[#allocation3 + $0x508] sm:$0xff]
    %v1877 = vld [vmem:[#allocation3 + $0x510] sm:$0xff]
    %v1878 = vld [vmem:[#allocation3 + $0x518] sm:$0xff]
    %v1879 = vld [vmem:[#allocation3 + $0x520] sm:$0xff]
    %v1880 = vld [vmem:[#allocation3 + $0x528] sm:$0xff]
    %v1881 = vld [vmem:[#allocation3 + $0x530] sm:$0xff]
    %v1882 = vld [vmem:[#allocation3 + $0x538] sm:$0xff]
    %v1883 = vld [vmem:[#allocation3 + $0x540] sm:$0xff]
    %v1884 = vld [vmem:[#allocation3 + $0x548] sm:$0xff]
    %v1885 = vld [vmem:[#allocation3 + $0x550] sm:$0xff]
    %v1886 = vld [vmem:[#allocation3 + $0x558] sm:$0xff]
    %v1887 = vld [vmem:[#allocation3 + $0x560] sm:$0xff]
    %v1888 = vld [vmem:[#allocation3 + $0x568] sm:$0xff]
    %v1889 = vld [vmem:[#allocation3 + $0x570] sm:$0xff]
    %v1890 = vld [vmem:[#allocation3 + $0x578] sm:$0xff]
    %v1891 = vld [vmem:[#allocation3 + $0x580] sm:$0xff]
    %v1892 = vld [vmem:[#allocation3 + $0x588] sm:$0xff]
    %v1893 = vld [vmem:[#allocation3 + $0x590] sm:$0xff]
    %v1894 = vld [vmem:[#allocation3 + $0x598] sm:$0xff]
    %v1895 = vld [vmem:[#allocation3 + $0x5a0] sm:$0xff]
    %v1896 = vld [vmem:[#allocation3 + $0x5a8] sm:$0xff]
    %v1897 = vld [vmem:[#allocation3 + $0x5b0] sm:$0xff]
    %v1898 = vld [vmem:[#allocation3 + $0x5b8] sm:$0xff]
    %v1899 = vld [vmem:[#allocation3 + $0x5c0] sm:$0xff]
    %v1900 = vld [vmem:[#allocation3 + $0x5c8] sm:$0xff]
    %v1901 = vld [vmem:[#allocation3 + $0x5d0] sm:$0xff]
    %v1902 = vld [vmem:[#allocation3 + $0x5d8] sm:$0xff]
    %v1903 = vld [vmem:[#allocation3 + $0x5e0] sm:$0xff]
    %v1904 = vld [vmem:[#allocation3 + $0x5e8] sm:$0xff]
    %v1905 = vld [vmem:[#allocation3 + $0x5f0] sm:$0xff]
    %v1906 = vld [vmem:[#allocation3 + $0x5f8] sm:$0xff]
    %v1907 = vld [vmem:[#allocation3 + $0x600] sm:$0xff]
    %v1908 = vld [vmem:[#allocation3 + $0x608] sm:$0xff]
    %v1909 = vld [vmem:[#allocation3 + $0x610] sm:$0xff]
    %v1910 = vld [vmem:[#allocation3 + $0x618] sm:$0xff]
    %v1911 = vld [vmem:[#allocation3 + $0x620] sm:$0xff]
    %v1912 = vld [vmem:[#allocation3 + $0x628] sm:$0xff]
    %v1913 = vld [vmem:[#allocation3 + $0x630] sm:$0xff]
    %v1914 = vld [vmem:[#allocation3 + $0x638] sm:$0xff]
    %v1915 = vld [vmem:[#allocation3 + $0x640] sm:$0xff]
    %v1916 = vld [vmem:[#allocation3 + $0x648] sm:$0xff]
    %v1917 = vld [vmem:[#allocation3 + $0x650] sm:$0xff]
    %v1918 = vld [vmem:[#allocation3 + $0x658] sm:$0xff]
    %v1919 = vld [vmem:[#allocation3 + $0x660] sm:$0xff]
    %v1920 = vld [vmem:[#allocation3 + $0x668] sm:$0xff]
    %v1921 = vld [vmem:[#allocation3 + $0x670] sm:$0xff]
    %v1922 = vld [vmem:[#allocation3 + $0x678] sm:$0xff]
    %v1923 = vld [vmem:[#allocation3 + $0x680] sm:$0xff]
    %v1924 = vld [vmem:[#allocation3 + $0x688] sm:$0xff]
    %v1925 = vld [vmem:[#allocation3 + $0x690] sm:$0xff]
    %v1926 = vld [vmem:[#allocation3 + $0x698] sm:$0xff]
    %v1927 = vld [vmem:[#allocation3 + $0x6a0] sm:$0xff]
    %v1928 = vld [vmem:[#allocation3 + $0x6a8] sm:$0xff]
    %v1929 = vld [vmem:[#allocation3 + $0x6b0] sm:$0xff]
    %v1930 = vld [vmem:[#allocation3 + $0x6b8] sm:$0xff]
    %v1931 = vld [vmem:[#allocation3 + $0x6c0] sm:$0xff]
    %v1932 = vld [vmem:[#allocation3 + $0x6c8] sm:$0xff]
    %v1933 = vld [vmem:[#allocation3 + $0x6d0] sm:$0xff]
    %v1934 = vld [vmem:[#allocation3 + $0x6d8] sm:$0xff]
    %v1935 = vld [vmem:[#allocation3 + $0x6e0] sm:$0xff]
    %v1936 = vld [vmem:[#allocation3 + $0x6e8] sm:$0xff]
    %v1937 = vld [vmem:[#allocation3 + $0x6f0] sm:$0xff]
    %v1938 = vld [vmem:[#allocation3 + $0x6f8] sm:$0xff]
    %v1939 = vld [vmem:[#allocation3 + $0x700] sm:$0xff]
    %v1940 = vld [vmem:[#allocation3 + $0x708] sm:$0xff]
    %v1941 = vld [vmem:[#allocation3 + $0x710] sm:$0xff]
    %v1942 = vld [vmem:[#allocation3 + $0x718] sm:$0xff]
    %v1943 = vld [vmem:[#allocation3 + $0x720] sm:$0xff]
    %v1944 = vld [vmem:[#allocation3 + $0x728] sm:$0xff]
    %v1945 = vld [vmem:[#allocation3 + $0x730] sm:$0xff]
    %v1946 = vld [vmem:[#allocation3 + $0x738] sm:$0xff]
    %v1947 = vld [vmem:[#allocation3 + $0x740] sm:$0xff]
    %v1948 = vld [vmem:[#allocation3 + $0x748] sm:$0xff]
    %v1949 = vld [vmem:[#allocation3 + $0x750] sm:$0xff]
    %v1950 = vld [vmem:[#allocation3 + $0x758] sm:$0xff]
    %v1951 = vld [vmem:[#allocation3 + $0x760] sm:$0xff]
    %v1952 = vld [vmem:[#allocation3 + $0x768] sm:$0xff]
    %v1953 = vld [vmem:[#allocation3 + $0x770] sm:$0xff]
    %v1954 = vld [vmem:[#allocation3 + $0x778] sm:$0xff]
    %v1955 = vld [vmem:[#allocation3 + $0x780] sm:$0xff]
    %v1956 = vld [vmem:[#allocation3 + $0x788] sm:$0xff]
    %v1957 = vld [vmem:[#allocation3 + $0x790] sm:$0xff]
    %v1958 = vld [vmem:[#allocation3 + $0x798] sm:$0xff]
    %v1959 = vld [vmem:[#allocation3 + $0x7a0] sm:$0xff]
    %v1960 = vld [vmem:[#allocation3 + $0x7a8] sm:$0xff]
    %v1961 = vld [vmem:[#allocation3 + $0x7b0] sm:$0xff]
    %v1962 = vld [vmem:[#allocation3 + $0x7b8] sm:$0xff]
    %v1963 = vld [vmem:[#allocation3 + $0x7c0] sm:$0xff]
    %v1964 = vld [vmem:[#allocation3 + $0x7c8] sm:$0xff]
    %v1965 = vld [vmem:[#allocation3 + $0x7d0] sm:$0xff]
    %v1966 = vld [vmem:[#allocation3 + $0x7d8] sm:$0xff]
    %v1967 = vld [vmem:[#allocation3 + $0x7e0] sm:$0xff]
    %v1968 = vld [vmem:[#allocation3 + $0x7e8] sm:$0xff]
    %v1969 = vld [vmem:[#allocation3 + $0x7f0] sm:$0xff]
    %v1970 = vld [vmem:[#allocation3 + $0x7f8] sm:$0xff]
    %v1971 = vld [vmem:[#allocation3 + $0x800] sm:$0xff]
    %v1972 = vld [vmem:[#allocation3 + $0x808] sm:$0xff]
    %v1973 = vld [vmem:[#allocation3 + $0x810] sm:$0xff]
    %v1974 = vld [vmem:[#allocation3 + $0x818] sm:$0xff]
    %v1975 = vld [vmem:[#allocation3 + $0x820] sm:$0xff]
    %v1976 = vld [vmem:[#allocation3 + $0x828] sm:$0xff]
    %v1977 = vld [vmem:[#allocation3 + $0x830] sm:$0xff]
    %v1978 = vld [vmem:[#allocation3 + $0x838] sm:$0xff]
    %v1979 = vld [vmem:[#allocation3 + $0x840] sm:$0xff]
    %v1980 = vld [vmem:[#allocation3 + $0x848] sm:$0xff]
    %v1981 = vld [vmem:[#allocation3 + $0x850] sm:$0xff]
    %v1982 = vld [vmem:[#allocation3 + $0x858] sm:$0xff]
    %v1983 = vld [vmem:[#allocation3 + $0x860] sm:$0xff]
    %v1984 = vld [vmem:[#allocation3 + $0x868] sm:$0xff]
    %v1985 = vld [vmem:[#allocation3 + $0x870] sm:$0xff]
    %v1986 = vld [vmem:[#allocation3 + $0x878] sm:$0xff]
    %v1987 = vld [vmem:[#allocation3 + $0x880] sm:$0xff]
    %v1988 = vld [vmem:[#allocation3 + $0x888] sm:$0xff]
    %v1989 = vld [vmem:[#allocation3 + $0x890] sm:$0xff]
    %v1990 = vld [vmem:[#allocation3 + $0x898] sm:$0xff]
    %v1991 = vld [vmem:[#allocation3 + $0x8a0] sm:$0xff]
    %v1992 = vld [vmem:[#allocation3 + $0x8a8] sm:$0xff]
    %v1993 = vld [vmem:[#allocation3 + $0x8b0] sm:$0xff]
    %v1994 = vld [vmem:[#allocation3 + $0x8b8] sm:$0xff]
    %v1995 = vld [vmem:[#allocation3 + $0x8c0] sm:$0xff]
    %v1996 = vld [vmem:[#allocation3 + $0x8c8] sm:$0xff]
    %v1997 = vld [vmem:[#allocation3 + $0x8d0] sm:$0xff]
    %v1998 = vld [vmem:[#allocation3 + $0x8d8] sm:$0xff]
    %v1999 = vld [vmem:[#allocation3 + $0x8e0] sm:$0xff]
    %v2000 = vld [vmem:[#allocation3 + $0x8e8] sm:$0xff]
    %v2001 = vld [vmem:[#allocation3 + $0x8f0] sm:$0xff]
    %v2002 = vld [vmem:[#allocation3 + $0x8f8] sm:$0xff]
    %v2003 = vld [vmem:[#allocation3 + $0x900] sm:$0xff]
    %v2004 = vld [vmem:[#allocation3 + $0x908] sm:$0xff]
    %v2005 = vld [vmem:[#allocation3 + $0x910] sm:$0xff]
    %v2006 = vld [vmem:[#allocation3 + $0x918] sm:$0xff]
    %v2007 = vld [vmem:[#allocation3 + $0x920] sm:$0xff]
    %v2008 = vld [vmem:[#allocation3 + $0x928] sm:$0xff]
    %v2009 = vld [vmem:[#allocation3 + $0x930] sm:$0xff]
    %v2010 = vld [vmem:[#allocation3 + $0x938] sm:$0xff]
    %v2011 = vld [vmem:[#allocation3 + $0x940] sm:$0xff]
    %v2012 = vld [vmem:[#allocation3 + $0x948] sm:$0xff]
    %v2013 = vld [vmem:[#allocation3 + $0x950] sm:$0xff]
    %v2014 = vld [vmem:[#allocation3 + $0x958] sm:$0xff]
    %v2015 = vld [vmem:[#allocation3 + $0x960] sm:$0xff]
    %v2016 = vld [vmem:[#allocation3 + $0x968] sm:$0xff]
    %v2017 = vld [vmem:[#allocation3 + $0x970] sm:$0xff]
    %v2018 = vld [vmem:[#allocation3 + $0x978] sm:$0xff]
    %v2019 = vld [vmem:[#allocation3 + $0x980] sm:$0xff]
    %v2020 = vld [vmem:[#allocation3 + $0x988] sm:$0xff]
    %v2021 = vld [vmem:[#allocation3 + $0x990] sm:$0xff]
    %v2022 = vld [vmem:[#allocation3 + $0x998] sm:$0xff]
    %v2023 = vld [vmem:[#allocation3 + $0x9a0] sm:$0xff]
    %v2024 = vld [vmem:[#allocation3 + $0x9a8] sm:$0xff]
    %v2025 = vld [vmem:[#allocation3 + $0x9b0] sm:$0xff]
    %v2026 = vld [vmem:[#allocation3 + $0x9b8] sm:$0xff]
    %v2027 = vld [vmem:[#allocation3 + $0x9c0] sm:$0xff]
    %v2028 = vld [vmem:[#allocation3 + $0x9c8] sm:$0xff]
    %v2029 = vld [vmem:[#allocation3 + $0x9d0] sm:$0xff]
    %v2030 = vld [vmem:[#allocation3 + $0x9d8] sm:$0xff]
    %v2031 = vld [vmem:[#allocation3 + $0x9e0] sm:$0xff]
    %v2032 = vld [vmem:[#allocation3 + $0x9e8] sm:$0xff]
    %v2033 = vld [vmem:[#allocation3 + $0x9f0] sm:$0xff]
    %v2034 = vld [vmem:[#allocation3 + $0x9f8] sm:$0xff]
    %v2035 = vld [vmem:[#allocation3 + $0xa00] sm:$0xff]
    %v2036 = vld [vmem:[#allocation3 + $0xa08] sm:$0xff]
    %v2037 = vld [vmem:[#allocation3 + $0xa10] sm:$0xff]
    %v2038 = vld [vmem:[#allocation3 + $0xa18] sm:$0xff]
    %v2039 = vld [vmem:[#allocation3 + $0xa20] sm:$0xff]
    %v2040 = vld [vmem:[#allocation3 + $0xa28] sm:$0xff]
    %v2041 = vld [vmem:[#allocation3 + $0xa30] sm:$0xff]
    %v2042 = vld [vmem:[#allocation3 + $0xa38] sm:$0xff]
    %v2043 = vld [vmem:[#allocation3 + $0xa40] sm:$0xff]
    %v2044 = vld [vmem:[#allocation3 + $0xa48] sm:$0xff]
    %v2045 = vld [vmem:[#allocation3 + $0xa50] sm:$0xff]
    %v2046 = vld [vmem:[#allocation3 + $0xa58] sm:$0xff]
    %v2047 = vld [vmem:[#allocation3 + $0xa60] sm:$0xff]
    %v2048 = vld [vmem:[#allocation3 + $0xa68] sm:$0xff]
    %v2049 = vld [vmem:[#allocation3 + $0xa70] sm:$0xff]
    %v2050 = vld [vmem:[#allocation3 + $0xa78] sm:$0xff]
    %v2051 = vld [vmem:[#allocation3 + $0xa80] sm:$0xff]
    %v2052 = vld [vmem:[#allocation3 + $0xa88] sm:$0xff]
    %v2053 = vld [vmem:[#allocation3 + $0xa90] sm:$0xff]
    %v2054 = vld [vmem:[#allocation3 + $0xa98] sm:$0xff]
    %v2055 = vld [vmem:[#allocation3 + $0xaa0] sm:$0xff]
    %v2056 = vld [vmem:[#allocation3 + $0xaa8] sm:$0xff]
    %v2057 = vld [vmem:[#allocation3 + $0xab0] sm:$0xff]
    %v2058 = vld [vmem:[#allocation3 + $0xab8] sm:$0xff]
    %v2059 = vld [vmem:[#allocation3 + $0xac0] sm:$0xff]
    %v2060 = vld [vmem:[#allocation3 + $0xac8] sm:$0xff]
    %v2061 = vld [vmem:[#allocation3 + $0xad0] sm:$0xff]
    %v2062 = vld [vmem:[#allocation3 + $0xad8] sm:$0xff]
    %v2063 = vld [vmem:[#allocation3 + $0xae0] sm:$0xff]
    %v2064 = vld [vmem:[#allocation3 + $0xae8] sm:$0xff]
    %v2065 = vld [vmem:[#allocation3 + $0xaf0] sm:$0xff]
    %v2066 = vld [vmem:[#allocation3 + $0xaf8] sm:$0xff]
    %v2067 = vld [vmem:[#allocation3 + $0xb00] sm:$0xff]
    %v2068 = vld [vmem:[#allocation3 + $0xb08] sm:$0xff]
    %v2069 = vld [vmem:[#allocation3 + $0xb10] sm:$0xff]
    %v2070 = vld [vmem:[#allocation3 + $0xb18] sm:$0xff]
    %v2071 = vld [vmem:[#allocation3 + $0xb20] sm:$0xff]
    %v2072 = vld [vmem:[#allocation3 + $0xb28] sm:$0xff]
    %v2073 = vld [vmem:[#allocation3 + $0xb30] sm:$0xff]
    %v2074 = vld [vmem:[#allocation3 + $0xb38] sm:$0xff]
    %v2075 = vld [vmem:[#allocation3 + $0xb40] sm:$0xff]
    %v2076 = vld [vmem:[#allocation3 + $0xb48] sm:$0xff]
    %v2077 = vld [vmem:[#allocation3 + $0xb50] sm:$0xff]
    %v2078 = vld [vmem:[#allocation3 + $0xb58] sm:$0xff]
    %v2079 = vld [vmem:[#allocation3 + $0xb60] sm:$0xff]
    %v2080 = vld [vmem:[#allocation3 + $0xb68] sm:$0xff]
    %v2081 = vld [vmem:[#allocation3 + $0xb70] sm:$0xff]
    %v2082 = vld [vmem:[#allocation3 + $0xb78] sm:$0xff]
    %v2083 = vld [vmem:[#allocation3 + $0xb80] sm:$0xff]
    %v2084 = vld [vmem:[#allocation3 + $0xb88] sm:$0xff]
    %v2085 = vld [vmem:[#allocation3 + $0xb90] sm:$0xff]
    %v2086 = vld [vmem:[#allocation3 + $0xb98] sm:$0xff]
    %v2087 = vld [vmem:[#allocation3 + $0xba0] sm:$0xff]
    %v2088 = vld [vmem:[#allocation3 + $0xba8] sm:$0xff]
    %v2089 = vld [vmem:[#allocation3 + $0xbb0] sm:$0xff]
    %v2090 = vld [vmem:[#allocation3 + $0xbb8] sm:$0xff]
    %v2091 = vld [vmem:[#allocation3 + $0xbc0] sm:$0xff]
    %v2092 = vld [vmem:[#allocation3 + $0xbc8] sm:$0xff]
    %v2093 = vld [vmem:[#allocation3 + $0xbd0] sm:$0xff]
    %v2094 = vld [vmem:[#allocation3 + $0xbd8] sm:$0xff]
    %v2095 = vld [vmem:[#allocation3 + $0xbe0] sm:$0xff]
    %v2096 = vld [vmem:[#allocation3 + $0xbe8] sm:$0xff]
    %v2097 = vld [vmem:[#allocation3 + $0xbf0] sm:$0xff]
    %v2098 = vld [vmem:[#allocation3 + $0xbf8] sm:$0xff]
    %v2099 = vld [vmem:[#allocation3 + $0xc00] sm:$0xff]
    %v2100 = vld [vmem:[#allocation3 + $0xc08] sm:$0xff]
    %v2101 = vld [vmem:[#allocation3 + $0xc10] sm:$0xff]
    %v2102 = vld [vmem:[#allocation3 + $0xc18] sm:$0xff]
    %v2103 = vld [vmem:[#allocation3 + $0xc20] sm:$0xff]
    %v2104 = vld [vmem:[#allocation3 + $0xc28] sm:$0xff]
    %v2105 = vld [vmem:[#allocation3 + $0xc30] sm:$0xff]
    %v2106 = vld [vmem:[#allocation3 + $0xc38] sm:$0xff]
    %v2107 = vld [vmem:[#allocation3 + $0xc40] sm:$0xff]
    %v2108 = vld [vmem:[#allocation3 + $0xc48] sm:$0xff]
    %v2109 = vld [vmem:[#allocation3 + $0xc50] sm:$0xff]
    %v2110 = vld [vmem:[#allocation3 + $0xc58] sm:$0xff]
    %v2111 = vld [vmem:[#allocation3 + $0xc60] sm:$0xff]
    %v2112 = vld [vmem:[#allocation3 + $0xc68] sm:$0xff]
    %v2113 = vld [vmem:[#allocation3 + $0xc70] sm:$0xff]
    %v2114 = vld [vmem:[#allocation3 + $0xc78] sm:$0xff]
    %v2115 = vld [vmem:[#allocation3 + $0xc80] sm:$0xff]
    %v2116 = vld [vmem:[#allocation3 + $0xc88] sm:$0xff]
    %v2117 = vld [vmem:[#allocation3 + $0xc90] sm:$0xff]
    %v2118 = vld [vmem:[#allocation3 + $0xc98] sm:$0xff]
    %v2119 = vld [vmem:[#allocation3 + $0xca0] sm:$0xff]
    %v2120 = vld [vmem:[#allocation3 + $0xca8] sm:$0xff]
    %v2121 = vld [vmem:[#allocation3 + $0xcb0] sm:$0xff]
    %v2122 = vld [vmem:[#allocation3 + $0xcb8] sm:$0xff]
    %v2123 = vld [vmem:[#allocation3 + $0xcc0] sm:$0xff]
    %v2124 = vld [vmem:[#allocation3 + $0xcc8] sm:$0xff]
    %v2125 = vld [vmem:[#allocation3 + $0xcd0] sm:$0xff]
    %v2126 = vld [vmem:[#allocation3 + $0xcd8] sm:$0xff]
    %v2127 = vld [vmem:[#allocation3 + $0xce0] sm:$0xff]
    %v2128 = vld [vmem:[#allocation3 + $0xce8] sm:$0xff]
    %v2129 = vld [vmem:[#allocation3 + $0xcf0] sm:$0xff]
    %v2130 = vld [vmem:[#allocation3 + $0xcf8] sm:$0xff]
    %v2131 = vld [vmem:[#allocation3 + $0xd00] sm:$0xff]
    %v2132 = vld [vmem:[#allocation3 + $0xd08] sm:$0xff]
    %v2133 = vld [vmem:[#allocation3 + $0xd10] sm:$0xff]
    %v2134 = vld [vmem:[#allocation3 + $0xd18] sm:$0xff]
    %v2135 = vld [vmem:[#allocation3 + $0xd20] sm:$0xff]
    %v2136 = vld [vmem:[#allocation3 + $0xd28] sm:$0xff]
    %v2137 = vld [vmem:[#allocation3 + $0xd30] sm:$0xff]
    %v2138 = vld [vmem:[#allocation3 + $0xd38] sm:$0xff]
    %v2139 = vld [vmem:[#allocation3 + $0xd40] sm:$0xff]
    %v2140 = vld [vmem:[#allocation3 + $0xd48] sm:$0xff]
    %v2141 = vld [vmem:[#allocation3 + $0xd50] sm:$0xff]
    %v2142 = vld [vmem:[#allocation3 + $0xd58] sm:$0xff]
    %v2143 = vld [vmem:[#allocation3 + $0xd60] sm:$0xff]
    %v2144 = vld [vmem:[#allocation3 + $0xd68] sm:$0xff]
    %v2145 = vld [vmem:[#allocation3 + $0xd70] sm:$0xff]
    %v2146 = vld [vmem:[#allocation3 + $0xd78] sm:$0xff]
    %v2147 = vld [vmem:[#allocation3 + $0xd80] sm:$0xff]
    %v2148 = vld [vmem:[#allocation3 + $0xd88] sm:$0xff]
    %v2149 = vld [vmem:[#allocation3 + $0xd90] sm:$0xff]
    %v2150 = vld [vmem:[#allocation3 + $0xd98] sm:$0xff]
    %v2151 = vld [vmem:[#allocation3 + $0xda0] sm:$0xff]
    %v2152 = vld [vmem:[#allocation3 + $0xda8] sm:$0xff]
    %v2153 = vld [vmem:[#allocation3 + $0xdb0] sm:$0xff]
    %v2154 = vld [vmem:[#allocation3 + $0xdb8] sm:$0xff]
    %v2155 = vld [vmem:[#allocation3 + $0xdc0] sm:$0xff]
    %v2156 = vld [vmem:[#allocation3 + $0xdc8] sm:$0xff]
    %v2157 = vld [vmem:[#allocation3 + $0xdd0] sm:$0xff]
    %v2158 = vld [vmem:[#allocation3 + $0xdd8] sm:$0xff]
    %v2159 = vld [vmem:[#allocation3 + $0xde0] sm:$0xff]
    %v2160 = vld [vmem:[#allocation3 + $0xde8] sm:$0xff]
    %v2161 = vld [vmem:[#allocation3 + $0xdf0] sm:$0xff]
    %v2162 = vld [vmem:[#allocation3 + $0xdf8] sm:$0xff]
    %v2163 = vld [vmem:[#allocation7] sm:$0x3]
    %v2165 = vlaneseq
    %v2166 = vshrl.u32 %v2165, 7
    %v2167 = vsub.s32 0, %v2166
    %v2168 = vrot.slane %v2163, %v2167
    %v2169 = vlaneseq
    %v2170 = vshrl.u32 %v2169, 7
    %v2171 = vsub.s32 1, %v2170
    %v2172 = vrot.slane %v2163, %v2171
    %2175 = vmatprep.subr.mxu0 %v1716
    %2176 = vmatpush1.msra.mxu0 %v1715
    %2177 = vmatprep.subr.mxu0 %v1718
    %2178 = vmatpush1.msra.mxu0 %v1717
    %2179 = vmatprep.subr.mxu0 %v1720
    %2180 = vmatpush1.msra.mxu0 %v1719
    %2181 = vmatprep.subr.mxu0 %v1722
    %2182 = vmatpush1.msra.mxu0 %v1721
    %2183 = vmatprep.subr.mxu0 %v1724
    %2184 = vmatpush1.msra.mxu0 %v1723
    %2185 = vmatprep.subr.mxu0 %v1726
    %2186 = vmatpush1.msra.mxu0 %v1725
    %2187 = vmatprep.subr.mxu0 %v1728
    %2188 = vmatpush1.msra.mxu0 %v1727
    %2189 = vmatprep.subr.mxu0 %v1730
    %2190 = vmatpush1.msra.mxu0 %v1729
    %2191 = vmatprep.subr.mxu0 %v1732
    %2192 = vmatpush1.msra.mxu0 %v1731
    %2193 = vmatprep.subr.mxu0 %v1734
    %2194 = vmatpush1.msra.mxu0 %v1733
    %2195 = vmatprep.subr.mxu0 %v1736
    %2196 = vmatpush1.msra.mxu0 %v1735
    %2197 = vmatprep.subr.mxu0 %v1738
    %2198 = vmatpush1.msra.mxu0 %v1737
    %2199 = vmatprep.subr.mxu0 %v1740
    %2200 = vmatpush1.msra.mxu0 %v1739
    %2201 = vmatprep.subr.mxu0 %v1742
    %2202 = vmatpush1.msra.mxu0 %v1741
    %2203 = vmatprep.subr.mxu0 %v1744
    %2204 = vmatpush1.msra.mxu0 %v1743
    %2205 = vmatprep.subr.mxu0 %v1746
    %2206 = vmatpush1.msra.mxu0 %v1745
    %2207 = vmatprep.subr.mxu0 %v1748
    %2208 = vmatpush1.msra.mxu0 %v1747
    %2209 = vmatprep.subr.mxu0 %v1750
    %2210 = vmatpush1.msra.mxu0 %v1749
    %2211 = vmatprep.subr.mxu0 %v1752
    %2212 = vmatpush1.msra.mxu0 %v1751
    %2213 = vmatprep.subr.mxu0 %v1754
    %2214 = vmatpush1.msra.mxu0 %v1753
    %2215 = vmatprep.subr.mxu0 %v1756
    %2216 = vmatpush1.msra.mxu0 %v1755
    %2217 = vmatprep.subr.mxu0 %v1758
    %2218 = vmatpush1.msra.mxu0 %v1757
    %2219 = vmatprep.subr.mxu0 %v1760
    %2220 = vmatpush1.msra.mxu0 %v1759
    %2221 = vmatprep.subr.mxu0 %v1762
    %2222 = vmatpush1.msra.mxu0 %v1761
    %2223 = vmatprep.subr.mxu0 %v1764
    %2224 = vmatpush1.msra.mxu0 %v1763
    %2225 = vmatprep.subr.mxu0 %v1766
    %2226 = vmatpush1.msra.mxu0 %v1765
    %2227 = vmatprep.subr.mxu0 %v1768
    %2228 = vmatpush1.msra.mxu0 %v1767
    %2229 = vmatprep.subr.mxu0 %v1770
    %2230 = vmatpush1.msra.mxu0 %v1769
    %2231 = vmatprep.subr.mxu0 %v1772
    %2232 = vmatpush1.msra.mxu0 %v1771
    %2233 = vmatprep.subr.mxu0 %v1774
    %2234 = vmatpush1.msra.mxu0 %v1773
    %2235 = vmatprep.subr.mxu0 %v1776
    %2236 = vmatpush1.msra.mxu0 %v1775
    %2237 = vmatprep.subr.mxu0 %v1778
    %2238 = vmatpush1.msra.mxu0 %v1777
    %2239 = vmatprep.mubr.f32.mxu0 %v1660
    %2240 = vmatmul.mubr.f32.gmra.mrb[0].mxu0 %v1659
    %v2241 = vpop.f32.mrb[0].mxu0
    %v2242 = vadd.f32 %v2168, %v2241
    %v2243 = vpop.f32.mrb[0].mxu0
    %v2244 = vadd.f32 %v2172, %v2243
    %2245 = vmatprep.mubr.f32.mxu0 %v1674
    %2246 = vmatmul.mubr.f32.gmra.mrb[0].mxu0 %v1673
    %v2247 = vpop.f32.mrb[0].mxu0
    %v2248 = vadd.f32 %v2168, %v2247
    %v2249 = vpop.f32.mrb[0].mxu0
    %v2250 = vadd.f32 %v2172, %v2249
    %2251 = vmatprep.mubr.f32.mxu0 %v1688
    %2252 = vmatmul.mubr.f32.gmra.mrb[0].mxu0 %v1687
    %v2253 = vpop.f32.mrb[0].mxu0
    %v2254 = vadd.f32 %v2168, %v2253
    %v2255 = vpop.f32.mrb[0].mxu0
    %v2256 = vadd.f32 %v2172, %v2255
    %2257 = vmatprep.mubr.f32.mxu0 %v1702
    %2258 = vmatmul.mubr.f32.gmra.mrb[0].mxu0 %v1701
    %v2259 = vpop.f32.mrb[0].mxu0
    %v2260 = vadd.f32 %v2168, %v2259
    %v2261 = vpop.f32.mrb[0].mxu0
    %v2262 = vadd.f32 %v2172, %v2261
    %2263 = vdwg.mxu0
    %2264 = vmatprep.subr.mxu0 %v1780
    %2265 = vmatpush1.msra.mxu0 %v1779
    %2266 = vmatprep.subr.mxu0 %v1782
    %2267 = vmatpush1.msra.mxu0 %v1781
    %2268 = vmatprep.subr.mxu0 %v1784
    %2269 = vmatpush1.msra.mxu0 %v1783
    %2270 = vmatprep.subr.mxu0 %v1786
    %2271 = vmatpush1.msra.mxu0 %v1785
    %2272 = vmatprep.subr.mxu0 %v1788
    %2273 = vmatpush1.msra.mxu0 %v1787
    %2274 = vmatprep.subr.mxu0 %v1790
    %2275 = vmatpush1.msra.mxu0 %v1789
    %2276 = vmatprep.subr.mxu0 %v1792
    %2277 = vmatpush1.msra.mxu0 %v1791
    %2278 = vmatprep.subr.mxu0 %v1794
    %2279 = vmatpush1.msra.mxu0 %v1793
    %2280 = vmatprep.subr.mxu0 %v1796
    %2281 = vmatpush1.msra.mxu0 %v1795
    %2282 = vmatprep.subr.mxu0 %v1798
    %2283 = vmatpush1.msra.mxu0 %v1797
    %2284 = vmatprep.subr.mxu0 %v1800
    %2285 = vmatpush1.msra.mxu0 %v1799
    %2286 = vmatprep.subr.mxu0 %v1802
    %2287 = vmatpush1.msra.mxu0 %v1801
    %2288 = vmatprep.subr.mxu0 %v1804
    %2289 = vmatpush1.msra.mxu0 %v1803
    %2290 = vmatprep.subr.mxu0 %v1806
    %2291 = vmatpush1.msra.mxu0 %v1805
    %2292 = vmatprep.subr.mxu0 %v1808
    %2293 = vmatpush1.msra.mxu0 %v1807
    %2294 = vmatprep.subr.mxu0 %v1810
    %2295 = vmatpush1.msra.mxu0 %v1809
    %2296 = vmatprep.subr.mxu0 %v1812
    %2297 = vmatpush1.msra.mxu0 %v1811
    %2298 = vmatprep.subr.mxu0 %v1814
    %2299 = vmatpush1.msra.mxu0 %v1813
    %2300 = vmatprep.subr.mxu0 %v1816
    %2301 = vmatpush1.msra.mxu0 %v1815
    %2302 = vmatprep.subr.mxu0 %v1818
    %2303 = vmatpush1.msra.mxu0 %v1817
    %2304 = vmatprep.subr.mxu0 %v1820
    %2305 = vmatpush1.msra.mxu0 %v1819
    %2306 = vmatprep.subr.mxu0 %v1822
    %2307 = vmatpush1.msra.mxu0 %v1821
    %2308 = vmatprep.subr.mxu0 %v1824
    %2309 = vmatpush1.msra.mxu0 %v1823
    %2310 = vmatprep.subr.mxu0 %v1826
    %2311 = vmatpush1.msra.mxu0 %v1825
    %2312 = vmatprep.subr.mxu0 %v1828
    %2313 = vmatpush1.msra.mxu0 %v1827
    %2314 = vmatprep.subr.mxu0 %v1830
    %2315 = vmatpush1.msra.mxu0 %v1829
    %2316 = vmatprep.subr.mxu0 %v1832
    %2317 = vmatpush1.msra.mxu0 %v1831
    %2318 = vmatprep.subr.mxu0 %v1834
    %2319 = vmatpush1.msra.mxu0 %v1833
    %2320 = vmatprep.subr.mxu0 %v1836
    %2321 = vmatpush1.msra.mxu0 %v1835
    %2322 = vmatprep.subr.mxu0 %v1838
    %2323 = vmatpush1.msra.mxu0 %v1837
    %2324 = vmatprep.subr.mxu0 %v1840
    %2325 = vmatpush1.msra.mxu0 %v1839
    %2326 = vmatprep.subr.mxu0 %v1842
    %2327 = vmatpush1.msra.mxu0 %v1841
    %2328 = vmatprep.mubr.f32.mxu0 %v1662
    %2329 = vmatmul.mubr.f32.gmra.mrb[0].mxu0 %v1661
    %v2330 = vpop.f32.mrb[0].mxu0
    %v2331 = vadd.f32 %v2242, %v2330
    %v2332 = vpop.f32.mrb[0].mxu0
    %v2333 = vadd.f32 %v2244, %v2332
    %2334 = vmatprep.mubr.f32.mxu0 %v1676
    %2335 = vmatmul.mubr.f32.gmra.mrb[0].mxu0 %v1675
    %v2336 = vpop.f32.mrb[0].mxu0
    %v2337 = vadd.f32 %v2248, %v2336
    %v2338 = vpop.f32.mrb[0].mxu0
    %v2339 = vadd.f32 %v2250, %v2338
    %2340 = vmatprep.mubr.f32.mxu0 %v1690
    %2341 = vmatmul.mubr.f32.gmra.mrb[0].mxu0 %v1689
    %v2342 = vpop.f32.mrb[0].mxu0
    %v2343 = vadd.f32 %v2254, %v2342
    %v2344 = vpop.f32.mrb[0].mxu0
    %v2345 = vadd.f32 %v2256, %v2344
    %2346 = vmatprep.mubr.f32.mxu0 %v1704
    %2347 = vmatmul.mubr.f32.gmra.mrb[0].mxu0 %v1703
    %v2348 = vpop.f32.mrb[0].mxu0
    %v2349 = vadd.f32 %v2260, %v2348
    %v2350 = vpop.f32.mrb[0].mxu0
    %v2351 = vadd.f32 %v2262, %v2350
    %2352 = vdwg.mxu0
    %2353 = vmatprep.subr.mxu0 %v1844
    %2354 = vmatpush1.msra.mxu0 %v1843
    %2355 = vmatprep.subr.mxu0 %v1846
    %2356 = vmatpush1.msra.mxu0 %v1845
    %2357 = vmatprep.subr.mxu0 %v1848
    %2358 = vmatpush1.msra.mxu0 %v1847
    %2359 = vmatprep.subr.mxu0 %v1850
    %2360 = vmatpush1.msra.mxu0 %v1849
    %2361 = vmatprep.subr.mxu0 %v1852
    %2362 = vmatpush1.msra.mxu0 %v1851
    %2363 = vmatprep.subr.mxu0 %v1854
    %2364 = vmatpush1.msra.mxu0 %v1853
    %2365 = vmatprep.subr.mxu0 %v1856
    %2366 = vmatpush1.msra.mxu0 %v1855
    %2367 = vmatprep.subr.mxu0 %v1858
    %2368 = vmatpush1.msra.mxu0 %v1857
    %2369 = vmatprep.subr.mxu0 %v1860
    %2370 = vmatpush1.msra.mxu0 %v1859
    %2371 = vmatprep.subr.mxu0 %v1862
    %2372 = vmatpush1.msra.mxu0 %v1861
    %2373 = vmatprep.subr.mxu0 %v1864
    %2374 = vmatpush1.msra.mxu0 %v1863
    %2375 = vmatprep.subr.mxu0 %v1866
    %2376 = vmatpush1.msra.mxu0 %v1865
    %2377 = vmatprep.subr.mxu0 %v1868
    %2378 = vmatpush1.msra.mxu0 %v1867
    %2379 = vmatprep.subr.mxu0 %v1870
    %2380 = vmatpush1.msra.mxu0 %v1869
    %2381 = vmatprep.subr.mxu0 %v1872
    %2382 = vmatpush1.msra.mxu0 %v1871
    %2383 = vmatprep.subr.mxu0 %v1874
    %2384 = vmatpush1.msra.mxu0 %v1873
    %2385 = vmatprep.subr.mxu0 %v1876
    %2386 = vmatpush1.msra.mxu0 %v1875
    %2387 = vmatprep.subr.mxu0 %v1878
    %2388 = vmatpush1.msra.mxu0 %v1877
    %2389 = vmatprep.subr.mxu0 %v1880
    %2390 = vmatpush1.msra.mxu0 %v1879
    %2391 = vmatprep.subr.mxu0 %v1882
    %2392 = vmatpush1.msra.mxu0 %v1881
    %2393 = vmatprep.subr.mxu0 %v1884
    %2394 = vmatpush1.msra.mxu0 %v1883
    %2395 = vmatprep.subr.mxu0 %v1886
    %2396 = vmatpush1.msra.mxu0 %v1885
    %2397 = vmatprep.subr.mxu0 %v1888
    %2398 = vmatpush1.msra.mxu0 %v1887
    %2399 = vmatprep.subr.mxu0 %v1890
    %2400 = vmatpush1.msra.mxu0 %v1889
    %2401 = vmatprep.subr.mxu0 %v1892
    %2402 = vmatpush1.msra.mxu0 %v1891
    %2403 = vmatprep.subr.mxu0 %v1894
    %2404 = vmatpush1.msra.mxu0 %v1893
    %2405 = vmatprep.subr.mxu0 %v1896
    %2406 = vmatpush1.msra.mxu0 %v1895
    %2407 = vmatprep.subr.mxu0 %v1898
    %2408 = vmatpush1.msra.mxu0 %v1897
    %2409 = vmatprep.subr.mxu0 %v1900
    %2410 = vmatpush1.msra.mxu0 %v1899
    %2411 = vmatprep.subr.mxu0 %v1902
    %2412 = vmatpush1.msra.mxu0 %v1901
    %2413 = vmatprep.subr.mxu0 %v1904
    %2414 = vmatpush1.msra.mxu0 %v1903
    %2415 = vmatprep.subr.mxu0 %v1906
    %2416 = vmatpush1.msra.mxu0 %v1905
    %2417 = vmatprep.mubr.f32.mxu0 %v1664
    %2418 = vmatmul.mubr.f32.gmra.mrb[0].mxu0 %v1663
    %v2419 = vpop.f32.mrb[0].mxu0
    %v2420 = vadd.f32 %v2331, %v2419
    %v2421 = vpop.f32.mrb[0].mxu0
    %v2422 = vadd.f32 %v2333, %v2421
    %2423 = vmatprep.mubr.f32.mxu0 %v1678
    %2424 = vmatmul.mubr.f32.gmra.mrb[0].mxu0 %v1677
    %v2425 = vpop.f32.mrb[0].mxu0
    %v2426 = vadd.f32 %v2337, %v2425
    %v2427 = vpop.f32.mrb[0].mxu0
    %v2428 = vadd.f32 %v2339, %v2427
    %2429 = vmatprep.mubr.f32.mxu0 %v1692
    %2430 = vmatmul.mubr.f32.gmra.mrb[0].mxu0 %v1691
    %v2431 = vpop.f32.mrb[0].mxu0
    %v2432 = vadd.f32 %v2343, %v2431
    %v2433 = vpop.f32.mrb[0].mxu0
    %v2434 = vadd.f32 %v2345, %v2433
    %2435 = vmatprep.mubr.f32.mxu0 %v1706
    %2436 = vmatmul.mubr.f32.gmra.mrb[0].mxu0 %v1705
    %v2437 = vpop.f32.mrb[0].mxu0
    %v2438 = vadd.f32 %v2349, %v2437
    %v2439 = vpop.f32.mrb[0].mxu0
    %v2440 = vadd.f32 %v2351, %v2439
    %2441 = vdwg.mxu0
    %2442 = vmatprep.subr.mxu0 %v1908
    %2443 = vmatpush1.msra.mxu0 %v1907
    %2444 = vmatprep.subr.mxu0 %v1910
    %2445 = vmatpush1.msra.mxu0 %v1909
    %2446 = vmatprep.subr.mxu0 %v1912
    %2447 = vmatpush1.msra.mxu0 %v1911
    %2448 = vmatprep.subr.mxu0 %v1914
    %2449 = vmatpush1.msra.mxu0 %v1913
    %2450 = vmatprep.subr.mxu0 %v1916
    %2451 = vmatpush1.msra.mxu0 %v1915
    %2452 = vmatprep.subr.mxu0 %v1918
    %2453 = vmatpush1.msra.mxu0 %v1917
    %2454 = vmatprep.subr.mxu0 %v1920
    %2455 = vmatpush1.msra.mxu0 %v1919
    %2456 = vmatprep.subr.mxu0 %v1922
    %2457 = vmatpush1.msra.mxu0 %v1921
    %2458 = vmatprep.subr.mxu0 %v1924
    %2459 = vmatpush1.msra.mxu0 %v1923
    %2460 = vmatprep.subr.mxu0 %v1926
    %2461 = vmatpush1.msra.mxu0 %v1925
    %2462 = vmatprep.subr.mxu0 %v1928
    %2463 = vmatpush1.msra.mxu0 %v1927
    %2464 = vmatprep.subr.mxu0 %v1930
    %2465 = vmatpush1.msra.mxu0 %v1929
    %2466 = vmatprep.subr.mxu0 %v1932
    %2467 = vmatpush1.msra.mxu0 %v1931
    %2468 = vmatprep.subr.mxu0 %v1934
    %2469 = vmatpush1.msra.mxu0 %v1933
    %2470 = vmatprep.subr.mxu0 %v1936
    %2471 = vmatpush1.msra.mxu0 %v1935
    %2472 = vmatprep.subr.mxu0 %v1938
    %2473 = vmatpush1.msra.mxu0 %v1937
    %2474 = vmatprep.subr.mxu0 %v1940
    %2475 = vmatpush1.msra.mxu0 %v1939
    %2476 = vmatprep.subr.mxu0 %v1942
    %2477 = vmatpush1.msra.mxu0 %v1941
    %2478 = vmatprep.subr.mxu0 %v1944
    %2479 = vmatpush1.msra.mxu0 %v1943
    %2480 = vmatprep.subr.mxu0 %v1946
    %2481 = vmatpush1.msra.mxu0 %v1945
    %2482 = vmatprep.subr.mxu0 %v1948
    %2483 = vmatpush1.msra.mxu0 %v1947
    %2484 = vmatprep.subr.mxu0 %v1950
    %2485 = vmatpush1.msra.mxu0 %v1949
    %2486 = vmatprep.subr.mxu0 %v1952
    %2487 = vmatpush1.msra.mxu0 %v1951
    %2488 = vmatprep.subr.mxu0 %v1954
    %2489 = vmatpush1.msra.mxu0 %v1953
    %2490 = vmatprep.subr.mxu0 %v1956
    %2491 = vmatpush1.msra.mxu0 %v1955
    %2492 = vmatprep.subr.mxu0 %v1958
    %2493 = vmatpush1.msra.mxu0 %v1957
    %2494 = vmatprep.subr.mxu0 %v1960
    %2495 = vmatpush1.msra.mxu0 %v1959
    %2496 = vmatprep.subr.mxu0 %v1962
    %2497 = vmatpush1.msra.mxu0 %v1961
    %2498 = vmatprep.subr.mxu0 %v1964
    %2499 = vmatpush1.msra.mxu0 %v1963
    %2500 = vmatprep.subr.mxu0 %v1966
    %2501 = vmatpush1.msra.mxu0 %v1965
    %2502 = vmatprep.subr.mxu0 %v1968
    %2503 = vmatpush1.msra.mxu0 %v1967
    %2504 = vmatprep.subr.mxu0 %v1970
    %2505 = vmatpush1.msra.mxu0 %v1969
    %2506 = vmatprep.mubr.f32.mxu0 %v1666
    %2507 = vmatmul.mubr.f32.gmra.mrb[0].mxu0 %v1665
    %v2508 = vpop.f32.mrb[0].mxu0
    %v2509 = vadd.f32 %v2420, %v2508
    %v2510 = vpop.f32.mrb[0].mxu0
    %v2511 = vadd.f32 %v2422, %v2510
    %2512 = vmatprep.mubr.f32.mxu0 %v1680
    %2513 = vmatmul.mubr.f32.gmra.mrb[0].mxu0 %v1679
    %v2514 = vpop.f32.mrb[0].mxu0
    %v2515 = vadd.f32 %v2426, %v2514
    %v2516 = vpop.f32.mrb[0].mxu0
    %v2517 = vadd.f32 %v2428, %v2516
    %2518 = vmatprep.mubr.f32.mxu0 %v1694
    %2519 = vmatmul.mubr.f32.gmra.mrb[0].mxu0 %v1693
    %v2520 = vpop.f32.mrb[0].mxu0
    %v2521 = vadd.f32 %v2432, %v2520
    %v2522 = vpop.f32.mrb[0].mxu0
    %v2523 = vadd.f32 %v2434, %v2522
    %2524 = vmatprep.mubr.f32.mxu0 %v1708
    %2525 = vmatmul.mubr.f32.gmra.mrb[0].mxu0 %v1707
    %v2526 = vpop.f32.mrb[0].mxu0
    %v2527 = vadd.f32 %v2438, %v2526
    %v2528 = vpop.f32.mrb[0].mxu0
    %v2529 = vadd.f32 %v2440, %v2528
    %2530 = vdwg.mxu0
    %2531 = vmatprep.subr.mxu0 %v1972
    %2532 = vmatpush1.msra.mxu0 %v1971
    %2533 = vmatprep.subr.mxu0 %v1974
    %2534 = vmatpush1.msra.mxu0 %v1973
    %2535 = vmatprep.subr.mxu0 %v1976
    %2536 = vmatpush1.msra.mxu0 %v1975
    %2537 = vmatprep.subr.mxu0 %v1978
    %2538 = vmatpush1.msra.mxu0 %v1977
    %2539 = vmatprep.subr.mxu0 %v1980
    %2540 = vmatpush1.msra.mxu0 %v1979
    %2541 = vmatprep.subr.mxu0 %v1982
    %2542 = vmatpush1.msra.mxu0 %v1981
    %2543 = vmatprep.subr.mxu0 %v1984
    %2544 = vmatpush1.msra.mxu0 %v1983
    %2545 = vmatprep.subr.mxu0 %v1986
    %2546 = vmatpush1.msra.mxu0 %v1985
    %2547 = vmatprep.subr.mxu0 %v1988
    %2548 = vmatpush1.msra.mxu0 %v1987
    %2549 = vmatprep.subr.mxu0 %v1990
    %2550 = vmatpush1.msra.mxu0 %v1989
    %2551 = vmatprep.subr.mxu0 %v1992
    %2552 = vmatpush1.msra.mxu0 %v1991
    %2553 = vmatprep.subr.mxu0 %v1994
    %2554 = vmatpush1.msra.mxu0 %v1993
    %2555 = vmatprep.subr.mxu0 %v1996
    %2556 = vmatpush1.msra.mxu0 %v1995
    %2557 = vmatprep.subr.mxu0 %v1998
    %2558 = vmatpush1.msra.mxu0 %v1997
    %2559 = vmatprep.subr.mxu0 %v2000
    %2560 = vmatpush1.msra.mxu0 %v1999
    %2561 = vmatprep.subr.mxu0 %v2002
    %2562 = vmatpush1.msra.mxu0 %v2001
    %2563 = vmatprep.subr.mxu0 %v2004
    %2564 = vmatpush1.msra.mxu0 %v2003
    %2565 = vmatprep.subr.mxu0 %v2006
    %2566 = vmatpush1.msra.mxu0 %v2005
    %2567 = vmatprep.subr.mxu0 %v2008
    %2568 = vmatpush1.msra.mxu0 %v2007
    %2569 = vmatprep.subr.mxu0 %v2010
    %2570 = vmatpush1.msra.mxu0 %v2009
    %2571 = vmatprep.subr.mxu0 %v2012
    %2572 = vmatpush1.msra.mxu0 %v2011
    %2573 = vmatprep.subr.mxu0 %v2014
    %2574 = vmatpush1.msra.mxu0 %v2013
    %2575 = vmatprep.subr.mxu0 %v2016
    %2576 = vmatpush1.msra.mxu0 %v2015
    %2577 = vmatprep.subr.mxu0 %v2018
    %2578 = vmatpush1.msra.mxu0 %v2017
    %2579 = vmatprep.subr.mxu0 %v2020
    %2580 = vmatpush1.msra.mxu0 %v2019
    %2581 = vmatprep.subr.mxu0 %v2022
    %2582 = vmatpush1.msra.mxu0 %v2021
    %2583 = vmatprep.subr.mxu0 %v2024
    %2584 = vmatpush1.msra.mxu0 %v2023
    %2585 = vmatprep.subr.mxu0 %v2026
    %2586 = vmatpush1.msra.mxu0 %v2025
    %2587 = vmatprep.subr.mxu0 %v2028
    %2588 = vmatpush1.msra.mxu0 %v2027
    %2589 = vmatprep.subr.mxu0 %v2030
    %2590 = vmatpush1.msra.mxu0 %v2029
    %2591 = vmatprep.subr.mxu0 %v2032
    %2592 = vmatpush1.msra.mxu0 %v2031
    %2593 = vmatprep.subr.mxu0 %v2034
    %2594 = vmatpush1.msra.mxu0 %v2033
    %2595 = vmatprep.mubr.f32.mxu0 %v1668
    %2596 = vmatmul.mubr.f32.gmra.mrb[0].mxu0 %v1667
    %v2597 = vpop.f32.mrb[0].mxu0
    %v2598 = vadd.f32 %v2509, %v2597
    %v2599 = vpop.f32.mrb[0].mxu0
    %v2600 = vadd.f32 %v2511, %v2599
    %2601 = vmatprep.mubr.f32.mxu0 %v1682
    %2602 = vmatmul.mubr.f32.gmra.mrb[0].mxu0 %v1681
    %v2603 = vpop.f32.mrb[0].mxu0
    %v2604 = vadd.f32 %v2515, %v2603
    %v2605 = vpop.f32.mrb[0].mxu0
    %v2606 = vadd.f32 %v2517, %v2605
    %2607 = vmatprep.mubr.f32.mxu0 %v1696
    %2608 = vmatmul.mubr.f32.gmra.mrb[0].mxu0 %v1695
    %v2609 = vpop.f32.mrb[0].mxu0
    %v2610 = vadd.f32 %v2521, %v2609
    %v2611 = vpop.f32.mrb[0].mxu0
    %v2612 = vadd.f32 %v2523, %v2611
    %2613 = vmatprep.mubr.f32.mxu0 %v1710
    %2614 = vmatmul.mubr.f32.gmra.mrb[0].mxu0 %v1709
    %v2615 = vpop.f32.mrb[0].mxu0
    %v2616 = vadd.f32 %v2527, %v2615
    %v2617 = vpop.f32.mrb[0].mxu0
    %v2618 = vadd.f32 %v2529, %v2617
    %2619 = vdwg.mxu0
    %2620 = vmatprep.subr.mxu0 %v2036
    %2621 = vmatpush1.msra.mxu0 %v2035
    %2622 = vmatprep.subr.mxu0 %v2038
    %2623 = vmatpush1.msra.mxu0 %v2037
    %2624 = vmatprep.subr.mxu0 %v2040
    %2625 = vmatpush1.msra.mxu0 %v2039
    %2626 = vmatprep.subr.mxu0 %v2042
    %2627 = vmatpush1.msra.mxu0 %v2041
    %2628 = vmatprep.subr.mxu0 %v2044
    %2629 = vmatpush1.msra.mxu0 %v2043
    %2630 = vmatprep.subr.mxu0 %v2046
    %2631 = vmatpush1.msra.mxu0 %v2045
    %2632 = vmatprep.subr.mxu0 %v2048
    %2633 = vmatpush1.msra.mxu0 %v2047
    %2634 = vmatprep.subr.mxu0 %v2050
    %2635 = vmatpush1.msra.mxu0 %v2049
    %2636 = vmatprep.subr.mxu0 %v2052
    %2637 = vmatpush1.msra.mxu0 %v2051
    %2638 = vmatprep.subr.mxu0 %v2054
    %2639 = vmatpush1.msra.mxu0 %v2053
    %2640 = vmatprep.subr.mxu0 %v2056
    %2641 = vmatpush1.msra.mxu0 %v2055
    %2642 = vmatprep.subr.mxu0 %v2058
    %2643 = vmatpush1.msra.mxu0 %v2057
    %2644 = vmatprep.subr.mxu0 %v2060
    %2645 = vmatpush1.msra.mxu0 %v2059
    %2646 = vmatprep.subr.mxu0 %v2062
    %2647 = vmatpush1.msra.mxu0 %v2061
    %2648 = vmatprep.subr.mxu0 %v2064
    %2649 = vmatpush1.msra.mxu0 %v2063
    %2650 = vmatprep.subr.mxu0 %v2066
    %2651 = vmatpush1.msra.mxu0 %v2065
    %2652 = vmatprep.subr.mxu0 %v2068
    %2653 = vmatpush1.msra.mxu0 %v2067
    %2654 = vmatprep.subr.mxu0 %v2070
    %2655 = vmatpush1.msra.mxu0 %v2069
    %2656 = vmatprep.subr.mxu0 %v2072
    %2657 = vmatpush1.msra.mxu0 %v2071
    %2658 = vmatprep.subr.mxu0 %v2074
    %2659 = vmatpush1.msra.mxu0 %v2073
    %2660 = vmatprep.subr.mxu0 %v2076
    %2661 = vmatpush1.msra.mxu0 %v2075
    %2662 = vmatprep.subr.mxu0 %v2078
    %2663 = vmatpush1.msra.mxu0 %v2077
    %2664 = vmatprep.subr.mxu0 %v2080
    %2665 = vmatpush1.msra.mxu0 %v2079
    %2666 = vmatprep.subr.mxu0 %v2082
    %2667 = vmatpush1.msra.mxu0 %v2081
    %2668 = vmatprep.subr.mxu0 %v2084
    %2669 = vmatpush1.msra.mxu0 %v2083
    %2670 = vmatprep.subr.mxu0 %v2086
    %2671 = vmatpush1.msra.mxu0 %v2085
    %2672 = vmatprep.subr.mxu0 %v2088
    %2673 = vmatpush1.msra.mxu0 %v2087
    %2674 = vmatprep.subr.mxu0 %v2090
    %2675 = vmatpush1.msra.mxu0 %v2089
    %2676 = vmatprep.subr.mxu0 %v2092
    %2677 = vmatpush1.msra.mxu0 %v2091
    %2678 = vmatprep.subr.mxu0 %v2094
    %2679 = vmatpush1.msra.mxu0 %v2093
    %2680 = vmatprep.subr.mxu0 %v2096
    %2681 = vmatpush1.msra.mxu0 %v2095
    %2682 = vmatprep.subr.mxu0 %v2098
    %2683 = vmatpush1.msra.mxu0 %v2097
    %2684 = vmatprep.mubr.f32.mxu0 %v1670
    %2685 = vmatmul.mubr.f32.gmra.mrb[0].mxu0 %v1669
    %v2686 = vpop.f32.mrb[0].mxu0
    %v2687 = vadd.f32 %v2598, %v2686
    %v2688 = vpop.f32.mrb[0].mxu0
    %v2689 = vadd.f32 %v2600, %v2688
    %2690 = vmatprep.mubr.f32.mxu0 %v1684
    %2691 = vmatmul.mubr.f32.gmra.mrb[0].mxu0 %v1683
    %v2692 = vpop.f32.mrb[0].mxu0
    %v2693 = vadd.f32 %v2604, %v2692
    %v2694 = vpop.f32.mrb[0].mxu0
    %v2695 = vadd.f32 %v2606, %v2694
    %2696 = vmatprep.mubr.f32.mxu0 %v1698
    %2697 = vmatmul.mubr.f32.gmra.mrb[0].mxu0 %v1697
    %v2698 = vpop.f32.mrb[0].mxu0
    %v2699 = vadd.f32 %v2610, %v2698
    %v2700 = vpop.f32.mrb[0].mxu0
    %v2701 = vadd.f32 %v2612, %v2700
    %2702 = vmatprep.mubr.f32.mxu0 %v1712
    %2703 = vmatmul.mubr.f32.gmra.mrb[0].mxu0 %v1711
    %v2704 = vpop.f32.mrb[0].mxu0
    %v2705 = vadd.f32 %v2616, %v2704
    %v2706 = vpop.f32.mrb[0].mxu0
    %v2707 = vadd.f32 %v2618, %v2706
    %2708 = vdwg.mxu0
    %2709 = vmatprep.subr.mxu0 %v2100
    %2710 = vmatpush1.msra.mxu0 %v2099
    %2711 = vmatprep.subr.mxu0 %v2102
    %2712 = vmatpush1.msra.mxu0 %v2101
    %2713 = vmatprep.subr.mxu0 %v2104
    %2714 = vmatpush1.msra.mxu0 %v2103
    %2715 = vmatprep.subr.mxu0 %v2106
    %2716 = vmatpush1.msra.mxu0 %v2105
    %2717 = vmatprep.subr.mxu0 %v2108
    %2718 = vmatpush1.msra.mxu0 %v2107
    %2719 = vmatprep.subr.mxu0 %v2110
    %2720 = vmatpush1.msra.mxu0 %v2109
    %2721 = vmatprep.subr.mxu0 %v2112
    %2722 = vmatpush1.msra.mxu0 %v2111
    %2723 = vmatprep.subr.mxu0 %v2114
    %2724 = vmatpush1.msra.mxu0 %v2113
    %2725 = vmatprep.subr.mxu0 %v2116
    %2726 = vmatpush1.msra.mxu0 %v2115
    %2727 = vmatprep.subr.mxu0 %v2118
    %2728 = vmatpush1.msra.mxu0 %v2117
    %2729 = vmatprep.subr.mxu0 %v2120
    %2730 = vmatpush1.msra.mxu0 %v2119
    %2731 = vmatprep.subr.mxu0 %v2122
    %2732 = vmatpush1.msra.mxu0 %v2121
    %2733 = vmatprep.subr.mxu0 %v2124
    %2734 = vmatpush1.msra.mxu0 %v2123
    %2735 = vmatprep.subr.mxu0 %v2126
    %2736 = vmatpush1.msra.mxu0 %v2125
    %2737 = vmatprep.subr.mxu0 %v2128
    %2738 = vmatpush1.msra.mxu0 %v2127
    %2739 = vmatprep.subr.mxu0 %v2130
    %2740 = vmatpush1.msra.mxu0 %v2129
    %2741 = vmatprep.subr.mxu0 %v2132
    %2742 = vmatpush1.msra.mxu0 %v2131
    %2743 = vmatprep.subr.mxu0 %v2134
    %2744 = vmatpush1.msra.mxu0 %v2133
    %2745 = vmatprep.subr.mxu0 %v2136
    %2746 = vmatpush1.msra.mxu0 %v2135
    %2747 = vmatprep.subr.mxu0 %v2138
    %2748 = vmatpush1.msra.mxu0 %v2137
    %2749 = vmatprep.subr.mxu0 %v2140
    %2750 = vmatpush1.msra.mxu0 %v2139
    %2751 = vmatprep.subr.mxu0 %v2142
    %2752 = vmatpush1.msra.mxu0 %v2141
    %2753 = vmatprep.subr.mxu0 %v2144
    %2754 = vmatpush1.msra.mxu0 %v2143
    %2755 = vmatprep.subr.mxu0 %v2146
    %2756 = vmatpush1.msra.mxu0 %v2145
    %2757 = vmatprep.subr.mxu0 %v2148
    %2758 = vmatpush1.msra.mxu0 %v2147
    %2759 = vmatprep.subr.mxu0 %v2150
    %2760 = vmatpush1.msra.mxu0 %v2149
    %2761 = vmatprep.subr.mxu0 %v2152
    %2762 = vmatpush1.msra.mxu0 %v2151
    %2763 = vmatprep.subr.mxu0 %v2154
    %2764 = vmatpush1.msra.mxu0 %v2153
    %2765 = vmatprep.subr.mxu0 %v2156
    %2766 = vmatpush1.msra.mxu0 %v2155
    %2767 = vmatprep.subr.mxu0 %v2158
    %2768 = vmatpush1.msra.mxu0 %v2157
    %2769 = vmatprep.subr.mxu0 %v2160
    %2770 = vmatpush1.msra.mxu0 %v2159
    %2771 = vmatprep.subr.mxu0 %v2162
    %2772 = vmatpush1.msra.mxu0 %v2161
    %2773 = vmatprep.mubr.f32.mxu0 %v1672
    %2774 = vmatmul.mubr.f32.gmra.mrb[0].mxu0 %v1671
    %v2775 = vpop.f32.mrb[0].mxu0
    %v2776 = vadd.f32 %v2687, %v2775
    %v2777 = vpop.f32.mrb[0].mxu0
    %v2778 = vadd.f32 %v2689, %v2777
    %2779 = vmatprep.mubr.f32.mxu0 %v1686
    %2780 = vmatmul.mubr.f32.gmra.mrb[0].mxu0 %v1685
    %v2781 = vpop.f32.mrb[0].mxu0
    %v2782 = vadd.f32 %v2693, %v2781
    %v2783 = vpop.f32.mrb[0].mxu0
    %v2784 = vadd.f32 %v2695, %v2783
    %2785 = vmatprep.mubr.f32.mxu0 %v1700
    %2786 = vmatmul.mubr.f32.gmra.mrb[0].mxu0 %v1699
    %v2787 = vpop.f32.mrb[0].mxu0
    %v2788 = vadd.f32 %v2699, %v2787
    %v2789 = vpop.f32.mrb[0].mxu0
    %v2790 = vadd.f32 %v2701, %v2789
    %2791 = vmatprep.mubr.f32.mxu0 %v1714
    %2792 = vmatmul.mubr.f32.gmra.mrb[0].mxu0 %v1713
    %v2793 = vpop.f32.mrb[0].mxu0
    %v2794 = vadd.f32 %v2705, %v2793
    %v2795 = vpop.f32.mrb[0].mxu0
    %v2796 = vadd.f32 %v2707, %v2795
    %2797 = vdwg.mxu0
    %v2798 = vld [vmem:[%s1] sm:$0xff]
    %v2799 = vld [vmem:[%s1 + $0x8] sm:$0xff]
    %v2800 = vld [vmem:[%s1 + $0x10] sm:$0xff]
    %v2801 = vld [vmem:[%s1 + $0x18] sm:$0xff]
    %v2802 = vld [vmem:[%s1 + $0x20] sm:$0xff]
    %v2803 = vld [vmem:[%s1 + $0x28] sm:$0xff]
    %v2804 = vld [vmem:[%s1 + $0x30] sm:$0xff]
    %v2805 = vld [vmem:[%s1 + $0x38] sm:$0xff]
    %v2806 = vadd.f32 %v2776, %v2798
    %v2807 = vadd.f32 %v2778, %v2799
    %v2808 = vadd.f32 %v2782, %v2800
    %v2809 = vadd.f32 %v2784, %v2801
    %v2810 = vadd.f32 %v2788, %v2802
    %v2811 = vadd.f32 %v2790, %v2803
    %v2812 = vadd.f32 %v2794, %v2804
    %v2813 = vadd.f32 %v2796, %v2805
    %v2814 = vmax.f32 %v2806, 0.0
    %v2815 = vmax.f32 %v2807, 0.0
    %v2816 = vmax.f32 %v2808, 0.0
    %v2817 = vmax.f32 %v2809, 0.0
    %v2818 = vmax.f32 %v2810, 0.0
    %v2819 = vmax.f32 %v2811, 0.0
    %v2820 = vmax.f32 %v2812, 0.0
    %v2821 = vmax.f32 %v2813, 0.0
    %v2826 = vrot.slane %v2814, 5
    %v2827 = vrot.slane %v2815, 5
    %v2828 = vrot.slane %v2816, 5
    %v2829 = vsel %vm142, %v2826, %v2828
    %v2830 = vrot.slane %v2817, 5
    %v2831 = vsel %vm142, %v2827, %v2830
    %2836 = vst [vmem:[#allocation2] sm:$0xf8] %v2826
    %2837 = vst [vmem:[#allocation2 + $0x8] sm:$0xf8] %v2827
    %2838 = vst [vmem:[#allocation2 + $0x70] sm:$0xff] %v2829
    %2839 = vst [vmem:[#allocation2 + $0x78] sm:$0xff] %v2831
    %v2840 = vrot.slane %v2814, 6
    %v2841 = vrot.slane %v2815, 6
    %v2842 = vrot.slane %v2816, 6
    %v2843 = vsel %vm157, %v2840, %v2842
    %v2844 = vrot.slane %v2817, 6
    %v2845 = vsel %vm157, %v2841, %v2844
    %2850 = vst [vmem:[#allocation2 + $0x10] sm:$0xfc] %v2840
    %2851 = vst [vmem:[#allocation2 + $0x18] sm:$0xfc] %v2841
    %2852 = vst [vmem:[#allocation2 + $0x80] sm:$0xff] %v2843
    %2853 = vst [vmem:[#allocation2 + $0x88] sm:$0xff] %v2845
    %v2854 = vrot.slane %v2814, 7
    %v2855 = vrot.slane %v2815, 7
    %v2856 = vrot.slane %v2816, 7
    %v2857 = vsel %vm172, %v2854, %v2856
    %v2858 = vrot.slane %v2817, 7
    %v2859 = vsel %vm172, %v2855, %v2858
    %2864 = vst [vmem:[#allocation2 + $0x20] sm:$0xfe] %v2854
    %2865 = vst [vmem:[#allocation2 + $0x28] sm:$0xfe] %v2855
    %2866 = vst [vmem:[#allocation2 + $0x90] sm:$0xff] %v2857
    %2867 = vst [vmem:[#allocation2 + $0x98] sm:$0xff] %v2859
    %2868 = vst [vmem:[#allocation2 + $0x30] sm:$0xff] %v2814
    %2869 = vst [vmem:[#allocation2 + $0x38] sm:$0xff] %v2815
    %2870 = vst [vmem:[#allocation2 + $0xa0] sm:$0xff] %v2816
    %2871 = vst [vmem:[#allocation2 + $0xa8] sm:$0xff] %v2817
    %v2872 = vrot.slane %v2814, 1
    %v2873 = vrot.slane %v2816, 1
    %v2874 = vsel %vm191, %v2872, %v2873
    %v2875 = vrot.slane %v2815, 1
    %v2876 = vrot.slane %v2817, 1
    %v2877 = vsel %vm191, %v2875, %v2876
    %2882 = vst [vmem:[#allocation2 + $0x40] sm:$0xff] %v2874
    %2883 = vst [vmem:[#allocation2 + $0x48] sm:$0xff] %v2877
    %2884 = vst [vmem:[#allocation2 + $0xb0] sm:$0x7f] %v2873
    %2885 = vst [vmem:[#allocation2 + $0xb8] sm:$0x7f] %v2876
    %v2886 = vrot.slane %v2814, 2
    %v2887 = vrot.slane %v2816, 2
    %v2888 = vsel %vm206, %v2886, %v2887
    %v2889 = vrot.slane %v2815, 2
    %v2890 = vrot.slane %v2817, 2
    %v2891 = vsel %vm206, %v2889, %v2890
    %2896 = vst [vmem:[#allocation2 + $0x50] sm:$0xff] %v2888
    %2897 = vst [vmem:[#allocation2 + $0x58] sm:$0xff] %v2891
    %2898 = vst [vmem:[#allocation2 + $0xc0] sm:$0x3f] %v2887
    %2899 = vst [vmem:[#allocation2 + $0xc8] sm:$0x3f] %v2890
    %v2900 = vrot.slane %v2814, 3
    %v2901 = vrot.slane %v2816, 3
    %v2902 = vsel %vm221, %v2900, %v2901
    %v2903 = vrot.slane %v2815, 3
    %v2904 = vrot.slane %v2817, 3
    %v2905 = vsel %vm221, %v2903, %v2904
    %2910 = vst [vmem:[#allocation2 + $0x60] sm:$0xff] %v2902
    %2911 = vst [vmem:[#allocation2 + $0x68] sm:$0xff] %v2905
    %2912 = vst [vmem:[#allocation2 + $0xd0] sm:$0x1f] %v2901
    %2913 = vst [vmem:[#allocation2 + $0xd8] sm:$0x1f] %v2904
    %v2918 = vrot.slane %v2818, 5
    %v2919 = vrot.slane %v2819, 5
    %v2920 = vrot.slane %v2820, 5
    %v2921 = vsel %vm142, %v2918, %v2920
    %v2922 = vrot.slane %v2821, 5
    %v2923 = vsel %vm142, %v2919, %v2922
    %2928 = vst [vmem:[#allocation2 + $0xe0] sm:$0xf8] %v2918
    %2929 = vst [vmem:[#allocation2 + $0xe8] sm:$0xf8] %v2919
    %2930 = vst [vmem:[#allocation2 + $0x150] sm:$0xff] %v2921
    %2931 = vst [vmem:[#allocation2 + $0x158] sm:$0xff] %v2923
    %v2932 = vrot.slane %v2818, 6
    %v2933 = vrot.slane %v2819, 6
    %v2934 = vrot.slane %v2820, 6
    %v2935 = vsel %vm157, %v2932, %v2934
    %v2936 = vrot.slane %v2821, 6
    %v2937 = vsel %vm157, %v2933, %v2936
    %2942 = vst [vmem:[#allocation2 + $0xf0] sm:$0xfc] %v2932
    %2943 = vst [vmem:[#allocation2 + $0xf8] sm:$0xfc] %v2933
    %2944 = vst [vmem:[#allocation2 + $0x160] sm:$0xff] %v2935
    %2945 = vst [vmem:[#allocation2 + $0x168] sm:$0xff] %v2937
    %v2946 = vrot.slane %v2818, 7
    %v2947 = vrot.slane %v2819, 7
    %v2948 = vrot.slane %v2820, 7
    %v2949 = vsel %vm172, %v2946, %v2948
    %v2950 = vrot.slane %v2821, 7
    %v2951 = vsel %vm172, %v2947, %v2950
    %2956 = vst [vmem:[#allocation2 + $0x100] sm:$0xfe] %v2946
    %2957 = vst [vmem:[#allocation2 + $0x108] sm:$0xfe] %v2947
    %2958 = vst [vmem:[#allocation2 + $0x170] sm:$0xff] %v2949
    %2959 = vst [vmem:[#allocation2 + $0x178] sm:$0xff] %v2951
    %2960 = vst [vmem:[#allocation2 + $0x110] sm:$0xff] %v2818
    %2961 = vst [vmem:[#allocation2 + $0x118] sm:$0xff] %v2819
    %2962 = vst [vmem:[#allocation2 + $0x180] sm:$0xff] %v2820
    %2963 = vst [vmem:[#allocation2 + $0x188] sm:$0xff] %v2821
    %v2964 = vrot.slane %v2818, 1
    %v2965 = vrot.slane %v2820, 1
    %v2966 = vsel %vm191, %v2964, %v2965
    %v2967 = vrot.slane %v2819, 1
    %v2968 = vrot.slane %v2821, 1
    %v2969 = vsel %vm191, %v2967, %v2968
    %2974 = vst [vmem:[#allocation2 + $0x120] sm:$0xff] %v2966
    %2975 = vst [vmem:[#allocation2 + $0x128] sm:$0xff] %v2969
    %2976 = vst [vmem:[#allocation2 + $0x190] sm:$0x7f] %v2965
    %2977 = vst [vmem:[#allocation2 + $0x198] sm:$0x7f] %v2968
    %v2978 = vrot.slane %v2818, 2
    %v2979 = vrot.slane %v2820, 2
    %v2980 = vsel %vm206, %v2978, %v2979
    %v2981 = vrot.slane %v2819, 2
    %v2982 = vrot.slane %v2821, 2
    %v2983 = vsel %vm206, %v2981, %v2982
    %2988 = vst [vmem:[#allocation2 + $0x130] sm:$0xff] %v2980
    %2989 = vst [vmem:[#allocation2 + $0x138] sm:$0xff] %v2983
    %2990 = vst [vmem:[#allocation2 + $0x1a0] sm:$0x3f] %v2979
    %2991 = vst [vmem:[#allocation2 + $0x1a8] sm:$0x3f] %v2982
    %v2992 = vrot.slane %v2818, 3
    %v2993 = vrot.slane %v2820, 3
    %v2994 = vsel %vm221, %v2992, %v2993
    %v2995 = vrot.slane %v2819, 3
    %v2996 = vrot.slane %v2821, 3
    %v2997 = vsel %vm221, %v2995, %v2996
    %3002 = vst [vmem:[#allocation2 + $0x140] sm:$0xff] %v2994
    %3003 = vst [vmem:[#allocation2 + $0x148] sm:$0xff] %v2997
    %3004 = vst [vmem:[#allocation2 + $0x1b0] sm:$0x1f] %v2993
    %3005 = vst [vmem:[#allocation2 + $0x1b8] sm:$0x1f] %v2996
    %v3006 = vld [vmem:[#allocation2] sm:$0xff]
    %v3007 = vld [vmem:[#allocation2 + $0x8] sm:$0xff]
    %v3008 = vld [vmem:[#allocation2 + $0x10] sm:$0xff]
    %v3009 = vld [vmem:[#allocation2 + $0x18] sm:$0xff]
    %v3010 = vld [vmem:[#allocation2 + $0x20] sm:$0xff]
    %v3011 = vld [vmem:[#allocation2 + $0x28] sm:$0xff]
    %v3012 = vld [vmem:[#allocation2 + $0x30] sm:$0xff]
    %v3013 = vld [vmem:[#allocation2 + $0x38] sm:$0xff]
    %v3014 = vld [vmem:[#allocation2 + $0x40] sm:$0xff]
    %v3015 = vld [vmem:[#allocation2 + $0x48] sm:$0xff]
    %v3016 = vld [vmem:[#allocation2 + $0x50] sm:$0xff]
    %v3017 = vld [vmem:[#allocation2 + $0x58] sm:$0xff]
    %v3018 = vld [vmem:[#allocation2 + $0x60] sm:$0xff]
    %v3019 = vld [vmem:[#allocation2 + $0x68] sm:$0xff]
    %v3020 = vld [vmem:[#allocation2 + $0x70] sm:$0xff]
    %v3021 = vld [vmem:[#allocation2 + $0x78] sm:$0xff]
    %v3022 = vld [vmem:[#allocation2 + $0x80] sm:$0xff]
    %v3023 = vld [vmem:[#allocation2 + $0x88] sm:$0xff]
    %v3024 = vld [vmem:[#allocation2 + $0x90] sm:$0xff]
    %v3025 = vld [vmem:[#allocation2 + $0x98] sm:$0xff]
    %v3026 = vld [vmem:[#allocation2 + $0xa0] sm:$0xff]
    %v3027 = vld [vmem:[#allocation2 + $0xa8] sm:$0xff]
    %v3028 = vld [vmem:[#allocation2 + $0xb0] sm:$0xff]
    %v3029 = vld [vmem:[#allocation2 + $0xb8] sm:$0xff]
    %v3030 = vld [vmem:[#allocation2 + $0xc0] sm:$0xff]
    %v3031 = vld [vmem:[#allocation2 + $0xc8] sm:$0xff]
    %v3032 = vld [vmem:[#allocation2 + $0xd0] sm:$0xff]
    %v3033 = vld [vmem:[#allocation2 + $0xd8] sm:$0xff]
    %v3034 = vld [vmem:[#allocation2 + $0xe0] sm:$0xff]
    %v3035 = vld [vmem:[#allocation2 + $0xe8] sm:$0xff]
    %v3036 = vld [vmem:[#allocation2 + $0xf0] sm:$0xff]
    %v3037 = vld [vmem:[#allocation2 + $0xf8] sm:$0xff]
    %v3038 = vld [vmem:[#allocation2 + $0x100] sm:$0xff]
    %v3039 = vld [vmem:[#allocation2 + $0x108] sm:$0xff]
    %v3040 = vld [vmem:[#allocation2 + $0x110] sm:$0xff]
    %v3041 = vld [vmem:[#allocation2 + $0x118] sm:$0xff]
    %v3042 = vld [vmem:[#allocation2 + $0x120] sm:$0xff]
    %v3043 = vld [vmem:[#allocation2 + $0x128] sm:$0xff]
    %v3044 = vld [vmem:[#allocation2 + $0x130] sm:$0xff]
    %v3045 = vld [vmem:[#allocation2 + $0x138] sm:$0xff]
    %v3046 = vld [vmem:[#allocation2 + $0x140] sm:$0xff]
    %v3047 = vld [vmem:[#allocation2 + $0x148] sm:$0xff]
    %v3048 = vld [vmem:[#allocation2 + $0x150] sm:$0xff]
    %v3049 = vld [vmem:[#allocation2 + $0x158] sm:$0xff]
    %v3050 = vld [vmem:[#allocation2 + $0x160] sm:$0xff]
    %v3051 = vld [vmem:[#allocation2 + $0x168] sm:$0xff]
    %v3052 = vld [vmem:[#allocation2 + $0x170] sm:$0xff]
    %v3053 = vld [vmem:[#allocation2 + $0x178] sm:$0xff]
    %v3054 = vld [vmem:[#allocation2 + $0x180] sm:$0xff]
    %v3055 = vld [vmem:[#allocation2 + $0x188] sm:$0xff]
    %v3056 = vld [vmem:[#allocation2 + $0x190] sm:$0xff]
    %v3057 = vld [vmem:[#allocation2 + $0x198] sm:$0xff]
    %v3058 = vld [vmem:[#allocation2 + $0x1a0] sm:$0xff]
    %v3059 = vld [vmem:[#allocation2 + $0x1a8] sm:$0xff]
    %v3060 = vld [vmem:[#allocation2 + $0x1b0] sm:$0xff]
    %v3061 = vld [vmem:[#allocation2 + $0x1b8] sm:$0xff]
    %v3062 = vld [vmem:[#allocation5] sm:$0xff]
    %v3063 = vld [vmem:[#allocation5 + $0x8] sm:$0xff]
    %v3064 = vld [vmem:[#allocation5 + $0x10] sm:$0xff]
    %v3065 = vld [vmem:[#allocation5 + $0x18] sm:$0xff]
    %v3066 = vld [vmem:[#allocation5 + $0x20] sm:$0xff]
    %v3067 = vld [vmem:[#allocation5 + $0x28] sm:$0xff]
    %v3068 = vld [vmem:[#allocation5 + $0x30] sm:$0xff]
    %v3069 = vld [vmem:[#allocation5 + $0x38] sm:$0xff]
    %v3070 = vld [vmem:[#allocation5 + $0x40] sm:$0xff]
    %v3071 = vld [vmem:[#allocation5 + $0x48] sm:$0xff]
    %v3072 = vld [vmem:[#allocation5 + $0x50] sm:$0xff]
    %v3073 = vld [vmem:[#allocation5 + $0x58] sm:$0xff]
    %v3074 = vld [vmem:[#allocation5 + $0x60] sm:$0xff]
    %v3075 = vld [vmem:[#allocation5 + $0x68] sm:$0xff]
    %v3076 = vld [vmem:[#allocation5 + $0x70] sm:$0xff]
    %v3077 = vld [vmem:[#allocation5 + $0x78] sm:$0xff]
    %v3078 = vld [vmem:[#allocation5 + $0x80] sm:$0xff]
    %v3079 = vld [vmem:[#allocation5 + $0x88] sm:$0xff]
    %v3080 = vld [vmem:[#allocation5 + $0x90] sm:$0xff]
    %v3081 = vld [vmem:[#allocation5 + $0x98] sm:$0xff]
    %v3082 = vld [vmem:[#allocation5 + $0xa0] sm:$0xff]
    %v3083 = vld [vmem:[#allocation5 + $0xa8] sm:$0xff]
    %v3084 = vld [vmem:[#allocation5 + $0xb0] sm:$0xff]
    %v3085 = vld [vmem:[#allocation5 + $0xb8] sm:$0xff]
    %v3086 = vld [vmem:[#allocation5 + $0xc0] sm:$0xff]
    %v3087 = vld [vmem:[#allocation5 + $0xc8] sm:$0xff]
    %v3088 = vld [vmem:[#allocation5 + $0xd0] sm:$0xff]
    %v3089 = vld [vmem:[#allocation5 + $0xd8] sm:$0xff]
    %v3090 = vld [vmem:[#allocation5 + $0xe0] sm:$0xff]
    %v3091 = vld [vmem:[#allocation5 + $0xe8] sm:$0xff]
    %v3092 = vld [vmem:[#allocation5 + $0xf0] sm:$0xff]
    %v3093 = vld [vmem:[#allocation5 + $0xf8] sm:$0xff]
    %v3094 = vld [vmem:[#allocation5 + $0x100] sm:$0xff]
    %v3095 = vld [vmem:[#allocation5 + $0x108] sm:$0xff]
    %v3096 = vld [vmem:[#allocation5 + $0x110] sm:$0xff]
    %v3097 = vld [vmem:[#allocation5 + $0x118] sm:$0xff]
    %v3098 = vld [vmem:[#allocation5 + $0x120] sm:$0xff]
    %v3099 = vld [vmem:[#allocation5 + $0x128] sm:$0xff]
    %v3100 = vld [vmem:[#allocation5 + $0x130] sm:$0xff]
    %v3101 = vld [vmem:[#allocation5 + $0x138] sm:$0xff]
    %v3102 = vld [vmem:[#allocation5 + $0x140] sm:$0xff]
    %v3103 = vld [vmem:[#allocation5 + $0x148] sm:$0xff]
    %v3104 = vld [vmem:[#allocation5 + $0x150] sm:$0xff]
    %v3105 = vld [vmem:[#allocation5 + $0x158] sm:$0xff]
    %v3106 = vld [vmem:[#allocation5 + $0x160] sm:$0xff]
    %v3107 = vld [vmem:[#allocation5 + $0x168] sm:$0xff]
    %v3108 = vld [vmem:[#allocation5 + $0x170] sm:$0xff]
    %v3109 = vld [vmem:[#allocation5 + $0x178] sm:$0xff]
    %v3110 = vld [vmem:[#allocation5 + $0x180] sm:$0xff]
    %v3111 = vld [vmem:[#allocation5 + $0x188] sm:$0xff]
    %v3112 = vld [vmem:[#allocation5 + $0x190] sm:$0xff]
    %v3113 = vld [vmem:[#allocation5 + $0x198] sm:$0xff]
    %v3114 = vld [vmem:[#allocation5 + $0x1a0] sm:$0xff]
    %v3115 = vld [vmem:[#allocation5 + $0x1a8] sm:$0xff]
    %v3116 = vld [vmem:[#allocation5 + $0x1b0] sm:$0xff]
    %v3117 = vld [vmem:[#allocation5 + $0x1b8] sm:$0xff]
    %v3118 = vld [vmem:[#allocation5 + $0x1c0] sm:$0xff]
    %v3119 = vld [vmem:[#allocation5 + $0x1c8] sm:$0xff]
    %v3120 = vld [vmem:[#allocation5 + $0x1d0] sm:$0xff]
    %v3121 = vld [vmem:[#allocation5 + $0x1d8] sm:$0xff]
    %v3122 = vld [vmem:[#allocation5 + $0x1e0] sm:$0xff]
    %v3123 = vld [vmem:[#allocation5 + $0x1e8] sm:$0xff]
    %v3124 = vld [vmem:[#allocation5 + $0x1f0] sm:$0xff]
    %v3125 = vld [vmem:[#allocation5 + $0x1f8] sm:$0xff]
    %v3126 = vld [vmem:[#allocation5 + $0x200] sm:$0xff]
    %v3127 = vld [vmem:[#allocation5 + $0x208] sm:$0xff]
    %v3128 = vld [vmem:[#allocation5 + $0x210] sm:$0xff]
    %v3129 = vld [vmem:[#allocation5 + $0x218] sm:$0xff]
    %v3130 = vld [vmem:[#allocation5 + $0x220] sm:$0xff]
    %v3131 = vld [vmem:[#allocation5 + $0x228] sm:$0xff]
    %v3132 = vld [vmem:[#allocation5 + $0x230] sm:$0xff]
    %v3133 = vld [vmem:[#allocation5 + $0x238] sm:$0xff]
    %v3134 = vld [vmem:[#allocation5 + $0x240] sm:$0xff]
    %v3135 = vld [vmem:[#allocation5 + $0x248] sm:$0xff]
    %v3136 = vld [vmem:[#allocation5 + $0x250] sm:$0xff]
    %v3137 = vld [vmem:[#allocation5 + $0x258] sm:$0xff]
    %v3138 = vld [vmem:[#allocation5 + $0x260] sm:$0xff]
    %v3139 = vld [vmem:[#allocation5 + $0x268] sm:$0xff]
    %v3140 = vld [vmem:[#allocation5 + $0x270] sm:$0xff]
    %v3141 = vld [vmem:[#allocation5 + $0x278] sm:$0xff]
    %v3142 = vld [vmem:[#allocation5 + $0x280] sm:$0xff]
    %v3143 = vld [vmem:[#allocation5 + $0x288] sm:$0xff]
    %v3144 = vld [vmem:[#allocation5 + $0x290] sm:$0xff]
    %v3145 = vld [vmem:[#allocation5 + $0x298] sm:$0xff]
    %v3146 = vld [vmem:[#allocation5 + $0x2a0] sm:$0xff]
    %v3147 = vld [vmem:[#allocation5 + $0x2a8] sm:$0xff]
    %v3148 = vld [vmem:[#allocation5 + $0x2b0] sm:$0xff]
    %v3149 = vld [vmem:[#allocation5 + $0x2b8] sm:$0xff]
    %v3150 = vld [vmem:[#allocation5 + $0x2c0] sm:$0xff]
    %v3151 = vld [vmem:[#allocation5 + $0x2c8] sm:$0xff]
    %v3152 = vld [vmem:[#allocation5 + $0x2d0] sm:$0xff]
    %v3153 = vld [vmem:[#allocation5 + $0x2d8] sm:$0xff]
    %v3154 = vld [vmem:[#allocation5 + $0x2e0] sm:$0xff]
    %v3155 = vld [vmem:[#allocation5 + $0x2e8] sm:$0xff]
    %v3156 = vld [vmem:[#allocation5 + $0x2f0] sm:$0xff]
    %v3157 = vld [vmem:[#allocation5 + $0x2f8] sm:$0xff]
    %v3158 = vld [vmem:[#allocation5 + $0x300] sm:$0xff]
    %v3159 = vld [vmem:[#allocation5 + $0x308] sm:$0xff]
    %v3160 = vld [vmem:[#allocation5 + $0x310] sm:$0xff]
    %v3161 = vld [vmem:[#allocation5 + $0x318] sm:$0xff]
    %v3162 = vld [vmem:[#allocation5 + $0x320] sm:$0xff]
    %v3163 = vld [vmem:[#allocation5 + $0x328] sm:$0xff]
    %v3164 = vld [vmem:[#allocation5 + $0x330] sm:$0xff]
    %v3165 = vld [vmem:[#allocation5 + $0x338] sm:$0xff]
    %v3166 = vld [vmem:[#allocation5 + $0x340] sm:$0xff]
    %v3167 = vld [vmem:[#allocation5 + $0x348] sm:$0xff]
    %v3168 = vld [vmem:[#allocation5 + $0x350] sm:$0xff]
    %v3169 = vld [vmem:[#allocation5 + $0x358] sm:$0xff]
    %v3170 = vld [vmem:[#allocation5 + $0x360] sm:$0xff]
    %v3171 = vld [vmem:[#allocation5 + $0x368] sm:$0xff]
    %v3172 = vld [vmem:[#allocation5 + $0x370] sm:$0xff]
    %v3173 = vld [vmem:[#allocation5 + $0x378] sm:$0xff]
    %v3174 = vld [vmem:[#allocation5 + $0x380] sm:$0xff]
    %v3175 = vld [vmem:[#allocation5 + $0x388] sm:$0xff]
    %v3176 = vld [vmem:[#allocation5 + $0x390] sm:$0xff]
    %v3177 = vld [vmem:[#allocation5 + $0x398] sm:$0xff]
    %v3178 = vld [vmem:[#allocation5 + $0x3a0] sm:$0xff]
    %v3179 = vld [vmem:[#allocation5 + $0x3a8] sm:$0xff]
    %v3180 = vld [vmem:[#allocation5 + $0x3b0] sm:$0xff]
    %v3181 = vld [vmem:[#allocation5 + $0x3b8] sm:$0xff]
    %v3182 = vld [vmem:[#allocation5 + $0x3c0] sm:$0xff]
    %v3183 = vld [vmem:[#allocation5 + $0x3c8] sm:$0xff]
    %v3184 = vld [vmem:[#allocation5 + $0x3d0] sm:$0xff]
    %v3185 = vld [vmem:[#allocation5 + $0x3d8] sm:$0xff]
    %v3186 = vld [vmem:[#allocation5 + $0x3e0] sm:$0xff]
    %v3187 = vld [vmem:[#allocation5 + $0x3e8] sm:$0xff]
    %v3188 = vld [vmem:[#allocation5 + $0x3f0] sm:$0xff]
    %v3189 = vld [vmem:[#allocation5 + $0x3f8] sm:$0xff]
    %v3190 = vld [vmem:[#allocation5 + $0x400] sm:$0xff]
    %v3191 = vld [vmem:[#allocation5 + $0x408] sm:$0xff]
    %v3192 = vld [vmem:[#allocation5 + $0x410] sm:$0xff]
    %v3193 = vld [vmem:[#allocation5 + $0x418] sm:$0xff]
    %v3194 = vld [vmem:[#allocation5 + $0x420] sm:$0xff]
    %v3195 = vld [vmem:[#allocation5 + $0x428] sm:$0xff]
    %v3196 = vld [vmem:[#allocation5 + $0x430] sm:$0xff]
    %v3197 = vld [vmem:[#allocation5 + $0x438] sm:$0xff]
    %v3198 = vld [vmem:[#allocation5 + $0x440] sm:$0xff]
    %v3199 = vld [vmem:[#allocation5 + $0x448] sm:$0xff]
    %v3200 = vld [vmem:[#allocation5 + $0x450] sm:$0xff]
    %v3201 = vld [vmem:[#allocation5 + $0x458] sm:$0xff]
    %v3202 = vld [vmem:[#allocation5 + $0x460] sm:$0xff]
    %v3203 = vld [vmem:[#allocation5 + $0x468] sm:$0xff]
    %v3204 = vld [vmem:[#allocation5 + $0x470] sm:$0xff]
    %v3205 = vld [vmem:[#allocation5 + $0x478] sm:$0xff]
    %v3206 = vld [vmem:[#allocation5 + $0x480] sm:$0xff]
    %v3207 = vld [vmem:[#allocation5 + $0x488] sm:$0xff]
    %v3208 = vld [vmem:[#allocation5 + $0x490] sm:$0xff]
    %v3209 = vld [vmem:[#allocation5 + $0x498] sm:$0xff]
    %v3210 = vld [vmem:[#allocation5 + $0x4a0] sm:$0xff]
    %v3211 = vld [vmem:[#allocation5 + $0x4a8] sm:$0xff]
    %v3212 = vld [vmem:[#allocation5 + $0x4b0] sm:$0xff]
    %v3213 = vld [vmem:[#allocation5 + $0x4b8] sm:$0xff]
    %v3214 = vld [vmem:[#allocation5 + $0x4c0] sm:$0xff]
    %v3215 = vld [vmem:[#allocation5 + $0x4c8] sm:$0xff]
    %v3216 = vld [vmem:[#allocation5 + $0x4d0] sm:$0xff]
    %v3217 = vld [vmem:[#allocation5 + $0x4d8] sm:$0xff]
    %v3218 = vld [vmem:[#allocation5 + $0x4e0] sm:$0xff]
    %v3219 = vld [vmem:[#allocation5 + $0x4e8] sm:$0xff]
    %v3220 = vld [vmem:[#allocation5 + $0x4f0] sm:$0xff]
    %v3221 = vld [vmem:[#allocation5 + $0x4f8] sm:$0xff]
    %v3222 = vld [vmem:[#allocation5 + $0x500] sm:$0xff]
    %v3223 = vld [vmem:[#allocation5 + $0x508] sm:$0xff]
    %v3224 = vld [vmem:[#allocation5 + $0x510] sm:$0xff]
    %v3225 = vld [vmem:[#allocation5 + $0x518] sm:$0xff]
    %v3226 = vld [vmem:[#allocation5 + $0x520] sm:$0xff]
    %v3227 = vld [vmem:[#allocation5 + $0x528] sm:$0xff]
    %v3228 = vld [vmem:[#allocation5 + $0x530] sm:$0xff]
    %v3229 = vld [vmem:[#allocation5 + $0x538] sm:$0xff]
    %v3230 = vld [vmem:[#allocation5 + $0x540] sm:$0xff]
    %v3231 = vld [vmem:[#allocation5 + $0x548] sm:$0xff]
    %v3232 = vld [vmem:[#allocation5 + $0x550] sm:$0xff]
    %v3233 = vld [vmem:[#allocation5 + $0x558] sm:$0xff]
    %v3234 = vld [vmem:[#allocation5 + $0x560] sm:$0xff]
    %v3235 = vld [vmem:[#allocation5 + $0x568] sm:$0xff]
    %v3236 = vld [vmem:[#allocation5 + $0x570] sm:$0xff]
    %v3237 = vld [vmem:[#allocation5 + $0x578] sm:$0xff]
    %v3238 = vld [vmem:[#allocation5 + $0x580] sm:$0xff]
    %v3239 = vld [vmem:[#allocation5 + $0x588] sm:$0xff]
    %v3240 = vld [vmem:[#allocation5 + $0x590] sm:$0xff]
    %v3241 = vld [vmem:[#allocation5 + $0x598] sm:$0xff]
    %v3242 = vld [vmem:[#allocation5 + $0x5a0] sm:$0xff]
    %v3243 = vld [vmem:[#allocation5 + $0x5a8] sm:$0xff]
    %v3244 = vld [vmem:[#allocation5 + $0x5b0] sm:$0xff]
    %v3245 = vld [vmem:[#allocation5 + $0x5b8] sm:$0xff]
    %v3246 = vld [vmem:[#allocation5 + $0x5c0] sm:$0xff]
    %v3247 = vld [vmem:[#allocation5 + $0x5c8] sm:$0xff]
    %v3248 = vld [vmem:[#allocation5 + $0x5d0] sm:$0xff]
    %v3249 = vld [vmem:[#allocation5 + $0x5d8] sm:$0xff]
    %v3250 = vld [vmem:[#allocation5 + $0x5e0] sm:$0xff]
    %v3251 = vld [vmem:[#allocation5 + $0x5e8] sm:$0xff]
    %v3252 = vld [vmem:[#allocation5 + $0x5f0] sm:$0xff]
    %v3253 = vld [vmem:[#allocation5 + $0x5f8] sm:$0xff]
    %v3254 = vld [vmem:[#allocation5 + $0x600] sm:$0xff]
    %v3255 = vld [vmem:[#allocation5 + $0x608] sm:$0xff]
    %v3256 = vld [vmem:[#allocation5 + $0x610] sm:$0xff]
    %v3257 = vld [vmem:[#allocation5 + $0x618] sm:$0xff]
    %v3258 = vld [vmem:[#allocation5 + $0x620] sm:$0xff]
    %v3259 = vld [vmem:[#allocation5 + $0x628] sm:$0xff]
    %v3260 = vld [vmem:[#allocation5 + $0x630] sm:$0xff]
    %v3261 = vld [vmem:[#allocation5 + $0x638] sm:$0xff]
    %v3262 = vld [vmem:[#allocation5 + $0x640] sm:$0xff]
    %v3263 = vld [vmem:[#allocation5 + $0x648] sm:$0xff]
    %v3264 = vld [vmem:[#allocation5 + $0x650] sm:$0xff]
    %v3265 = vld [vmem:[#allocation5 + $0x658] sm:$0xff]
    %v3266 = vld [vmem:[#allocation5 + $0x660] sm:$0xff]
    %v3267 = vld [vmem:[#allocation5 + $0x668] sm:$0xff]
    %v3268 = vld [vmem:[#allocation5 + $0x670] sm:$0xff]
    %v3269 = vld [vmem:[#allocation5 + $0x678] sm:$0xff]
    %v3270 = vld [vmem:[#allocation5 + $0x680] sm:$0xff]
    %v3271 = vld [vmem:[#allocation5 + $0x688] sm:$0xff]
    %v3272 = vld [vmem:[#allocation5 + $0x690] sm:$0xff]
    %v3273 = vld [vmem:[#allocation5 + $0x698] sm:$0xff]
    %v3274 = vld [vmem:[#allocation5 + $0x6a0] sm:$0xff]
    %v3275 = vld [vmem:[#allocation5 + $0x6a8] sm:$0xff]
    %v3276 = vld [vmem:[#allocation5 + $0x6b0] sm:$0xff]
    %v3277 = vld [vmem:[#allocation5 + $0x6b8] sm:$0xff]
    %v3278 = vld [vmem:[#allocation5 + $0x6c0] sm:$0xff]
    %v3279 = vld [vmem:[#allocation5 + $0x6c8] sm:$0xff]
    %v3280 = vld [vmem:[#allocation5 + $0x6d0] sm:$0xff]
    %v3281 = vld [vmem:[#allocation5 + $0x6d8] sm:$0xff]
    %v3282 = vld [vmem:[#allocation5 + $0x6e0] sm:$0xff]
    %v3283 = vld [vmem:[#allocation5 + $0x6e8] sm:$0xff]
    %v3284 = vld [vmem:[#allocation5 + $0x6f0] sm:$0xff]
    %v3285 = vld [vmem:[#allocation5 + $0x6f8] sm:$0xff]
    %v3286 = vld [vmem:[#allocation5 + $0x700] sm:$0xff]
    %v3287 = vld [vmem:[#allocation5 + $0x708] sm:$0xff]
    %v3288 = vld [vmem:[#allocation5 + $0x710] sm:$0xff]
    %v3289 = vld [vmem:[#allocation5 + $0x718] sm:$0xff]
    %v3290 = vld [vmem:[#allocation5 + $0x720] sm:$0xff]
    %v3291 = vld [vmem:[#allocation5 + $0x728] sm:$0xff]
    %v3292 = vld [vmem:[#allocation5 + $0x730] sm:$0xff]
    %v3293 = vld [vmem:[#allocation5 + $0x738] sm:$0xff]
    %v3294 = vld [vmem:[#allocation5 + $0x740] sm:$0xff]
    %v3295 = vld [vmem:[#allocation5 + $0x748] sm:$0xff]
    %v3296 = vld [vmem:[#allocation5 + $0x750] sm:$0xff]
    %v3297 = vld [vmem:[#allocation5 + $0x758] sm:$0xff]
    %v3298 = vld [vmem:[#allocation5 + $0x760] sm:$0xff]
    %v3299 = vld [vmem:[#allocation5 + $0x768] sm:$0xff]
    %v3300 = vld [vmem:[#allocation5 + $0x770] sm:$0xff]
    %v3301 = vld [vmem:[#allocation5 + $0x778] sm:$0xff]
    %v3302 = vld [vmem:[#allocation5 + $0x780] sm:$0xff]
    %v3303 = vld [vmem:[#allocation5 + $0x788] sm:$0xff]
    %v3304 = vld [vmem:[#allocation5 + $0x790] sm:$0xff]
    %v3305 = vld [vmem:[#allocation5 + $0x798] sm:$0xff]
    %v3306 = vld [vmem:[#allocation5 + $0x7a0] sm:$0xff]
    %v3307 = vld [vmem:[#allocation5 + $0x7a8] sm:$0xff]
    %v3308 = vld [vmem:[#allocation5 + $0x7b0] sm:$0xff]
    %v3309 = vld [vmem:[#allocation5 + $0x7b8] sm:$0xff]
    %v3310 = vld [vmem:[#allocation5 + $0x7c0] sm:$0xff]
    %v3311 = vld [vmem:[#allocation5 + $0x7c8] sm:$0xff]
    %v3312 = vld [vmem:[#allocation5 + $0x7d0] sm:$0xff]
    %v3313 = vld [vmem:[#allocation5 + $0x7d8] sm:$0xff]
    %v3314 = vld [vmem:[#allocation5 + $0x7e0] sm:$0xff]
    %v3315 = vld [vmem:[#allocation5 + $0x7e8] sm:$0xff]
    %v3316 = vld [vmem:[#allocation5 + $0x7f0] sm:$0xff]
    %v3317 = vld [vmem:[#allocation5 + $0x7f8] sm:$0xff]
    %v3318 = vld [vmem:[#allocation5 + $0x800] sm:$0xff]
    %v3319 = vld [vmem:[#allocation5 + $0x808] sm:$0xff]
    %v3320 = vld [vmem:[#allocation5 + $0x810] sm:$0xff]
    %v3321 = vld [vmem:[#allocation5 + $0x818] sm:$0xff]
    %v3322 = vld [vmem:[#allocation5 + $0x820] sm:$0xff]
    %v3323 = vld [vmem:[#allocation5 + $0x828] sm:$0xff]
    %v3324 = vld [vmem:[#allocation5 + $0x830] sm:$0xff]
    %v3325 = vld [vmem:[#allocation5 + $0x838] sm:$0xff]
    %v3326 = vld [vmem:[#allocation5 + $0x840] sm:$0xff]
    %v3327 = vld [vmem:[#allocation5 + $0x848] sm:$0xff]
    %v3328 = vld [vmem:[#allocation5 + $0x850] sm:$0xff]
    %v3329 = vld [vmem:[#allocation5 + $0x858] sm:$0xff]
    %v3330 = vld [vmem:[#allocation5 + $0x860] sm:$0xff]
    %v3331 = vld [vmem:[#allocation5 + $0x868] sm:$0xff]
    %v3332 = vld [vmem:[#allocation5 + $0x870] sm:$0xff]
    %v3333 = vld [vmem:[#allocation5 + $0x878] sm:$0xff]
    %v3334 = vld [vmem:[#allocation5 + $0x880] sm:$0xff]
    %v3335 = vld [vmem:[#allocation5 + $0x888] sm:$0xff]
    %v3336 = vld [vmem:[#allocation5 + $0x890] sm:$0xff]
    %v3337 = vld [vmem:[#allocation5 + $0x898] sm:$0xff]
    %v3338 = vld [vmem:[#allocation5 + $0x8a0] sm:$0xff]
    %v3339 = vld [vmem:[#allocation5 + $0x8a8] sm:$0xff]
    %v3340 = vld [vmem:[#allocation5 + $0x8b0] sm:$0xff]
    %v3341 = vld [vmem:[#allocation5 + $0x8b8] sm:$0xff]
    %v3342 = vld [vmem:[#allocation5 + $0x8c0] sm:$0xff]
    %v3343 = vld [vmem:[#allocation5 + $0x8c8] sm:$0xff]
    %v3344 = vld [vmem:[#allocation5 + $0x8d0] sm:$0xff]
    %v3345 = vld [vmem:[#allocation5 + $0x8d8] sm:$0xff]
    %v3346 = vld [vmem:[#allocation5 + $0x8e0] sm:$0xff]
    %v3347 = vld [vmem:[#allocation5 + $0x8e8] sm:$0xff]
    %v3348 = vld [vmem:[#allocation5 + $0x8f0] sm:$0xff]
    %v3349 = vld [vmem:[#allocation5 + $0x8f8] sm:$0xff]
    %v3350 = vld [vmem:[#allocation5 + $0x900] sm:$0xff]
    %v3351 = vld [vmem:[#allocation5 + $0x908] sm:$0xff]
    %v3352 = vld [vmem:[#allocation5 + $0x910] sm:$0xff]
    %v3353 = vld [vmem:[#allocation5 + $0x918] sm:$0xff]
    %v3354 = vld [vmem:[#allocation5 + $0x920] sm:$0xff]
    %v3355 = vld [vmem:[#allocation5 + $0x928] sm:$0xff]
    %v3356 = vld [vmem:[#allocation5 + $0x930] sm:$0xff]
    %v3357 = vld [vmem:[#allocation5 + $0x938] sm:$0xff]
    %v3358 = vld [vmem:[#allocation5 + $0x940] sm:$0xff]
    %v3359 = vld [vmem:[#allocation5 + $0x948] sm:$0xff]
    %v3360 = vld [vmem:[#allocation5 + $0x950] sm:$0xff]
    %v3361 = vld [vmem:[#allocation5 + $0x958] sm:$0xff]
    %v3362 = vld [vmem:[#allocation5 + $0x960] sm:$0xff]
    %v3363 = vld [vmem:[#allocation5 + $0x968] sm:$0xff]
    %v3364 = vld [vmem:[#allocation5 + $0x970] sm:$0xff]
    %v3365 = vld [vmem:[#allocation5 + $0x978] sm:$0xff]
    %v3366 = vld [vmem:[#allocation5 + $0x980] sm:$0xff]
    %v3367 = vld [vmem:[#allocation5 + $0x988] sm:$0xff]
    %v3368 = vld [vmem:[#allocation5 + $0x990] sm:$0xff]
    %v3369 = vld [vmem:[#allocation5 + $0x998] sm:$0xff]
    %v3370 = vld [vmem:[#allocation5 + $0x9a0] sm:$0xff]
    %v3371 = vld [vmem:[#allocation5 + $0x9a8] sm:$0xff]
    %v3372 = vld [vmem:[#allocation5 + $0x9b0] sm:$0xff]
    %v3373 = vld [vmem:[#allocation5 + $0x9b8] sm:$0xff]
    %v3374 = vld [vmem:[#allocation5 + $0x9c0] sm:$0xff]
    %v3375 = vld [vmem:[#allocation5 + $0x9c8] sm:$0xff]
    %v3376 = vld [vmem:[#allocation5 + $0x9d0] sm:$0xff]
    %v3377 = vld [vmem:[#allocation5 + $0x9d8] sm:$0xff]
    %v3378 = vld [vmem:[#allocation5 + $0x9e0] sm:$0xff]
    %v3379 = vld [vmem:[#allocation5 + $0x9e8] sm:$0xff]
    %v3380 = vld [vmem:[#allocation5 + $0x9f0] sm:$0xff]
    %v3381 = vld [vmem:[#allocation5 + $0x9f8] sm:$0xff]
    %v3382 = vld [vmem:[#allocation5 + $0xa00] sm:$0xff]
    %v3383 = vld [vmem:[#allocation5 + $0xa08] sm:$0xff]
    %v3384 = vld [vmem:[#allocation5 + $0xa10] sm:$0xff]
    %v3385 = vld [vmem:[#allocation5 + $0xa18] sm:$0xff]
    %v3386 = vld [vmem:[#allocation5 + $0xa20] sm:$0xff]
    %v3387 = vld [vmem:[#allocation5 + $0xa28] sm:$0xff]
    %v3388 = vld [vmem:[#allocation5 + $0xa30] sm:$0xff]
    %v3389 = vld [vmem:[#allocation5 + $0xa38] sm:$0xff]
    %v3390 = vld [vmem:[#allocation5 + $0xa40] sm:$0xff]
    %v3391 = vld [vmem:[#allocation5 + $0xa48] sm:$0xff]
    %v3392 = vld [vmem:[#allocation5 + $0xa50] sm:$0xff]
    %v3393 = vld [vmem:[#allocation5 + $0xa58] sm:$0xff]
    %v3394 = vld [vmem:[#allocation5 + $0xa60] sm:$0xff]
    %v3395 = vld [vmem:[#allocation5 + $0xa68] sm:$0xff]
    %v3396 = vld [vmem:[#allocation5 + $0xa70] sm:$0xff]
    %v3397 = vld [vmem:[#allocation5 + $0xa78] sm:$0xff]
    %v3398 = vld [vmem:[#allocation5 + $0xa80] sm:$0xff]
    %v3399 = vld [vmem:[#allocation5 + $0xa88] sm:$0xff]
    %v3400 = vld [vmem:[#allocation5 + $0xa90] sm:$0xff]
    %v3401 = vld [vmem:[#allocation5 + $0xa98] sm:$0xff]
    %v3402 = vld [vmem:[#allocation5 + $0xaa0] sm:$0xff]
    %v3403 = vld [vmem:[#allocation5 + $0xaa8] sm:$0xff]
    %v3404 = vld [vmem:[#allocation5 + $0xab0] sm:$0xff]
    %v3405 = vld [vmem:[#allocation5 + $0xab8] sm:$0xff]
    %v3406 = vld [vmem:[#allocation5 + $0xac0] sm:$0xff]
    %v3407 = vld [vmem:[#allocation5 + $0xac8] sm:$0xff]
    %v3408 = vld [vmem:[#allocation5 + $0xad0] sm:$0xff]
    %v3409 = vld [vmem:[#allocation5 + $0xad8] sm:$0xff]
    %v3410 = vld [vmem:[#allocation5 + $0xae0] sm:$0xff]
    %v3411 = vld [vmem:[#allocation5 + $0xae8] sm:$0xff]
    %v3412 = vld [vmem:[#allocation5 + $0xaf0] sm:$0xff]
    %v3413 = vld [vmem:[#allocation5 + $0xaf8] sm:$0xff]
    %v3414 = vld [vmem:[#allocation5 + $0xb00] sm:$0xff]
    %v3415 = vld [vmem:[#allocation5 + $0xb08] sm:$0xff]
    %v3416 = vld [vmem:[#allocation5 + $0xb10] sm:$0xff]
    %v3417 = vld [vmem:[#allocation5 + $0xb18] sm:$0xff]
    %v3418 = vld [vmem:[#allocation5 + $0xb20] sm:$0xff]
    %v3419 = vld [vmem:[#allocation5 + $0xb28] sm:$0xff]
    %v3420 = vld [vmem:[#allocation5 + $0xb30] sm:$0xff]
    %v3421 = vld [vmem:[#allocation5 + $0xb38] sm:$0xff]
    %v3422 = vld [vmem:[#allocation5 + $0xb40] sm:$0xff]
    %v3423 = vld [vmem:[#allocation5 + $0xb48] sm:$0xff]
    %v3424 = vld [vmem:[#allocation5 + $0xb50] sm:$0xff]
    %v3425 = vld [vmem:[#allocation5 + $0xb58] sm:$0xff]
    %v3426 = vld [vmem:[#allocation5 + $0xb60] sm:$0xff]
    %v3427 = vld [vmem:[#allocation5 + $0xb68] sm:$0xff]
    %v3428 = vld [vmem:[#allocation5 + $0xb70] sm:$0xff]
    %v3429 = vld [vmem:[#allocation5 + $0xb78] sm:$0xff]
    %v3430 = vld [vmem:[#allocation5 + $0xb80] sm:$0xff]
    %v3431 = vld [vmem:[#allocation5 + $0xb88] sm:$0xff]
    %v3432 = vld [vmem:[#allocation5 + $0xb90] sm:$0xff]
    %v3433 = vld [vmem:[#allocation5 + $0xb98] sm:$0xff]
    %v3434 = vld [vmem:[#allocation5 + $0xba0] sm:$0xff]
    %v3435 = vld [vmem:[#allocation5 + $0xba8] sm:$0xff]
    %v3436 = vld [vmem:[#allocation5 + $0xbb0] sm:$0xff]
    %v3437 = vld [vmem:[#allocation5 + $0xbb8] sm:$0xff]
    %v3438 = vld [vmem:[#allocation5 + $0xbc0] sm:$0xff]
    %v3439 = vld [vmem:[#allocation5 + $0xbc8] sm:$0xff]
    %v3440 = vld [vmem:[#allocation5 + $0xbd0] sm:$0xff]
    %v3441 = vld [vmem:[#allocation5 + $0xbd8] sm:$0xff]
    %v3442 = vld [vmem:[#allocation5 + $0xbe0] sm:$0xff]
    %v3443 = vld [vmem:[#allocation5 + $0xbe8] sm:$0xff]
    %v3444 = vld [vmem:[#allocation5 + $0xbf0] sm:$0xff]
    %v3445 = vld [vmem:[#allocation5 + $0xbf8] sm:$0xff]
    %v3446 = vld [vmem:[#allocation5 + $0xc00] sm:$0xff]
    %v3447 = vld [vmem:[#allocation5 + $0xc08] sm:$0xff]
    %v3448 = vld [vmem:[#allocation5 + $0xc10] sm:$0xff]
    %v3449 = vld [vmem:[#allocation5 + $0xc18] sm:$0xff]
    %v3450 = vld [vmem:[#allocation5 + $0xc20] sm:$0xff]
    %v3451 = vld [vmem:[#allocation5 + $0xc28] sm:$0xff]
    %v3452 = vld [vmem:[#allocation5 + $0xc30] sm:$0xff]
    %v3453 = vld [vmem:[#allocation5 + $0xc38] sm:$0xff]
    %v3454 = vld [vmem:[#allocation5 + $0xc40] sm:$0xff]
    %v3455 = vld [vmem:[#allocation5 + $0xc48] sm:$0xff]
    %v3456 = vld [vmem:[#allocation5 + $0xc50] sm:$0xff]
    %v3457 = vld [vmem:[#allocation5 + $0xc58] sm:$0xff]
    %v3458 = vld [vmem:[#allocation5 + $0xc60] sm:$0xff]
    %v3459 = vld [vmem:[#allocation5 + $0xc68] sm:$0xff]
    %v3460 = vld [vmem:[#allocation5 + $0xc70] sm:$0xff]
    %v3461 = vld [vmem:[#allocation5 + $0xc78] sm:$0xff]
    %v3462 = vld [vmem:[#allocation5 + $0xc80] sm:$0xff]
    %v3463 = vld [vmem:[#allocation5 + $0xc88] sm:$0xff]
    %v3464 = vld [vmem:[#allocation5 + $0xc90] sm:$0xff]
    %v3465 = vld [vmem:[#allocation5 + $0xc98] sm:$0xff]
    %v3466 = vld [vmem:[#allocation5 + $0xca0] sm:$0xff]
    %v3467 = vld [vmem:[#allocation5 + $0xca8] sm:$0xff]
    %v3468 = vld [vmem:[#allocation5 + $0xcb0] sm:$0xff]
    %v3469 = vld [vmem:[#allocation5 + $0xcb8] sm:$0xff]
    %v3470 = vld [vmem:[#allocation5 + $0xcc0] sm:$0xff]
    %v3471 = vld [vmem:[#allocation5 + $0xcc8] sm:$0xff]
    %v3472 = vld [vmem:[#allocation5 + $0xcd0] sm:$0xff]
    %v3473 = vld [vmem:[#allocation5 + $0xcd8] sm:$0xff]
    %v3474 = vld [vmem:[#allocation5 + $0xce0] sm:$0xff]
    %v3475 = vld [vmem:[#allocation5 + $0xce8] sm:$0xff]
    %v3476 = vld [vmem:[#allocation5 + $0xcf0] sm:$0xff]
    %v3477 = vld [vmem:[#allocation5 + $0xcf8] sm:$0xff]
    %v3478 = vld [vmem:[#allocation5 + $0xd00] sm:$0xff]
    %v3479 = vld [vmem:[#allocation5 + $0xd08] sm:$0xff]
    %v3480 = vld [vmem:[#allocation5 + $0xd10] sm:$0xff]
    %v3481 = vld [vmem:[#allocation5 + $0xd18] sm:$0xff]
    %v3482 = vld [vmem:[#allocation5 + $0xd20] sm:$0xff]
    %v3483 = vld [vmem:[#allocation5 + $0xd28] sm:$0xff]
    %v3484 = vld [vmem:[#allocation5 + $0xd30] sm:$0xff]
    %v3485 = vld [vmem:[#allocation5 + $0xd38] sm:$0xff]
    %v3486 = vld [vmem:[#allocation5 + $0xd40] sm:$0xff]
    %v3487 = vld [vmem:[#allocation5 + $0xd48] sm:$0xff]
    %v3488 = vld [vmem:[#allocation5 + $0xd50] sm:$0xff]
    %v3489 = vld [vmem:[#allocation5 + $0xd58] sm:$0xff]
    %v3490 = vld [vmem:[#allocation5 + $0xd60] sm:$0xff]
    %v3491 = vld [vmem:[#allocation5 + $0xd68] sm:$0xff]
    %v3492 = vld [vmem:[#allocation5 + $0xd70] sm:$0xff]
    %v3493 = vld [vmem:[#allocation5 + $0xd78] sm:$0xff]
    %v3494 = vld [vmem:[#allocation5 + $0xd80] sm:$0xff]
    %v3495 = vld [vmem:[#allocation5 + $0xd88] sm:$0xff]
    %v3496 = vld [vmem:[#allocation5 + $0xd90] sm:$0xff]
    %v3497 = vld [vmem:[#allocation5 + $0xd98] sm:$0xff]
    %v3498 = vld [vmem:[#allocation5 + $0xda0] sm:$0xff]
    %v3499 = vld [vmem:[#allocation5 + $0xda8] sm:$0xff]
    %v3500 = vld [vmem:[#allocation5 + $0xdb0] sm:$0xff]
    %v3501 = vld [vmem:[#allocation5 + $0xdb8] sm:$0xff]
    %v3502 = vld [vmem:[#allocation5 + $0xdc0] sm:$0xff]
    %v3503 = vld [vmem:[#allocation5 + $0xdc8] sm:$0xff]
    %v3504 = vld [vmem:[#allocation5 + $0xdd0] sm:$0xff]
    %v3505 = vld [vmem:[#allocation5 + $0xdd8] sm:$0xff]
    %v3506 = vld [vmem:[#allocation5 + $0xde0] sm:$0xff]
    %v3507 = vld [vmem:[#allocation5 + $0xde8] sm:$0xff]
    %v3508 = vld [vmem:[#allocation5 + $0xdf0] sm:$0xff]
    %v3509 = vld [vmem:[#allocation5 + $0xdf8] sm:$0xff]
    %v3510 = vld [vmem:[#allocation8] sm:$0x3]
    %v3512 = vlaneseq
    %v3513 = vshrl.u32 %v3512, 7
    %v3514 = vsub.s32 0, %v3513
    %v3515 = vrot.slane %v3510, %v3514
    %v3516 = vlaneseq
    %v3517 = vshrl.u32 %v3516, 7
    %v3518 = vsub.s32 1, %v3517
    %v3519 = vrot.slane %v3510, %v3518
    %3522 = vmatprep.subr.mxu0 %v3063
    %3523 = vmatpush1.msra.mxu0 %v3062
    %3524 = vmatprep.subr.mxu0 %v3065
    %3525 = vmatpush1.msra.mxu0 %v3064
    %3526 = vmatprep.subr.mxu0 %v3067
    %3527 = vmatpush1.msra.mxu0 %v3066
    %3528 = vmatprep.subr.mxu0 %v3069
    %3529 = vmatpush1.msra.mxu0 %v3068
    %3530 = vmatprep.subr.mxu0 %v3071
    %3531 = vmatpush1.msra.mxu0 %v3070
    %3532 = vmatprep.subr.mxu0 %v3073
    %3533 = vmatpush1.msra.mxu0 %v3072
    %3534 = vmatprep.subr.mxu0 %v3075
    %3535 = vmatpush1.msra.mxu0 %v3074
    %3536 = vmatprep.subr.mxu0 %v3077
    %3537 = vmatpush1.msra.mxu0 %v3076
    %3538 = vmatprep.subr.mxu0 %v3079
    %3539 = vmatpush1.msra.mxu0 %v3078
    %3540 = vmatprep.subr.mxu0 %v3081
    %3541 = vmatpush1.msra.mxu0 %v3080
    %3542 = vmatprep.subr.mxu0 %v3083
    %3543 = vmatpush1.msra.mxu0 %v3082
    %3544 = vmatprep.subr.mxu0 %v3085
    %3545 = vmatpush1.msra.mxu0 %v3084
    %3546 = vmatprep.subr.mxu0 %v3087
    %3547 = vmatpush1.msra.mxu0 %v3086
    %3548 = vmatprep.subr.mxu0 %v3089
    %3549 = vmatpush1.msra.mxu0 %v3088
    %3550 = vmatprep.subr.mxu0 %v3091
    %3551 = vmatpush1.msra.mxu0 %v3090
    %3552 = vmatprep.subr.mxu0 %v3093
    %3553 = vmatpush1.msra.mxu0 %v3092
    %3554 = vmatprep.subr.mxu0 %v3095
    %3555 = vmatpush1.msra.mxu0 %v3094
    %3556 = vmatprep.subr.mxu0 %v3097
    %3557 = vmatpush1.msra.mxu0 %v3096
    %3558 = vmatprep.subr.mxu0 %v3099
    %3559 = vmatpush1.msra.mxu0 %v3098
    %3560 = vmatprep.subr.mxu0 %v3101
    %3561 = vmatpush1.msra.mxu0 %v3100
    %3562 = vmatprep.subr.mxu0 %v3103
    %3563 = vmatpush1.msra.mxu0 %v3102
    %3564 = vmatprep.subr.mxu0 %v3105
    %3565 = vmatpush1.msra.mxu0 %v3104
    %3566 = vmatprep.subr.mxu0 %v3107
    %3567 = vmatpush1.msra.mxu0 %v3106
    %3568 = vmatprep.subr.mxu0 %v3109
    %3569 = vmatpush1.msra.mxu0 %v3108
    %3570 = vmatprep.subr.mxu0 %v3111
    %3571 = vmatpush1.msra.mxu0 %v3110
    %3572 = vmatprep.subr.mxu0 %v3113
    %3573 = vmatpush1.msra.mxu0 %v3112
    %3574 = vmatprep.subr.mxu0 %v3115
    %3575 = vmatpush1.msra.mxu0 %v3114
    %3576 = vmatprep.subr.mxu0 %v3117
    %3577 = vmatpush1.msra.mxu0 %v3116
    %3578 = vmatprep.subr.mxu0 %v3119
    %3579 = vmatpush1.msra.mxu0 %v3118
    %3580 = vmatprep.subr.mxu0 %v3121
    %3581 = vmatpush1.msra.mxu0 %v3120
    %3582 = vmatprep.subr.mxu0 %v3123
    %3583 = vmatpush1.msra.mxu0 %v3122
    %3584 = vmatprep.subr.mxu0 %v3125
    %3585 = vmatpush1.msra.mxu0 %v3124
    %3586 = vmatprep.mubr.f32.mxu0 %v3007
    %3587 = vmatmul.mubr.f32.gmra.mrb[0].mxu0 %v3006
    %v3588 = vpop.f32.mrb[0].mxu0
    %v3589 = vadd.f32 %v3515, %v3588
    %v3590 = vpop.f32.mrb[0].mxu0
    %v3591 = vadd.f32 %v3519, %v3590
    %3592 = vmatprep.mubr.f32.mxu0 %v3021
    %3593 = vmatmul.mubr.f32.gmra.mrb[0].mxu0 %v3020
    %v3594 = vpop.f32.mrb[0].mxu0
    %v3595 = vadd.f32 %v3515, %v3594
    %v3596 = vpop.f32.mrb[0].mxu0
    %v3597 = vadd.f32 %v3519, %v3596
    %3598 = vmatprep.mubr.f32.mxu0 %v3035
    %3599 = vmatmul.mubr.f32.gmra.mrb[0].mxu0 %v3034
    %v3600 = vpop.f32.mrb[0].mxu0
    %v3601 = vadd.f32 %v3515, %v3600
    %v3602 = vpop.f32.mrb[0].mxu0
    %v3603 = vadd.f32 %v3519, %v3602
    %3604 = vmatprep.mubr.f32.mxu0 %v3049
    %3605 = vmatmul.mubr.f32.gmra.mrb[0].mxu0 %v3048
    %v3606 = vpop.f32.mrb[0].mxu0
    %v3607 = vadd.f32 %v3515, %v3606
    %v3608 = vpop.f32.mrb[0].mxu0
    %v3609 = vadd.f32 %v3519, %v3608
    %3610 = vdwg.mxu0
    %3611 = vmatprep.subr.mxu0 %v3127
    %3612 = vmatpush1.msra.mxu0 %v3126
    %3613 = vmatprep.subr.mxu0 %v3129
    %3614 = vmatpush1.msra.mxu0 %v3128
    %3615 = vmatprep.subr.mxu0 %v3131
    %3616 = vmatpush1.msra.mxu0 %v3130
    %3617 = vmatprep.subr.mxu0 %v3133
    %3618 = vmatpush1.msra.mxu0 %v3132
    %3619 = vmatprep.subr.mxu0 %v3135
    %3620 = vmatpush1.msra.mxu0 %v3134
    %3621 = vmatprep.subr.mxu0 %v3137
    %3622 = vmatpush1.msra.mxu0 %v3136
    %3623 = vmatprep.subr.mxu0 %v3139
    %3624 = vmatpush1.msra.mxu0 %v3138
    %3625 = vmatprep.subr.mxu0 %v3141
    %3626 = vmatpush1.msra.mxu0 %v3140
    %3627 = vmatprep.subr.mxu0 %v3143
    %3628 = vmatpush1.msra.mxu0 %v3142
    %3629 = vmatprep.subr.mxu0 %v3145
    %3630 = vmatpush1.msra.mxu0 %v3144
    %3631 = vmatprep.subr.mxu0 %v3147
    %3632 = vmatpush1.msra.mxu0 %v3146
    %3633 = vmatprep.subr.mxu0 %v3149
    %3634 = vmatpush1.msra.mxu0 %v3148
    %3635 = vmatprep.subr.mxu0 %v3151
    %3636 = vmatpush1.msra.mxu0 %v3150
    %3637 = vmatprep.subr.mxu0 %v3153
    %3638 = vmatpush1.msra.mxu0 %v3152
    %3639 = vmatprep.subr.mxu0 %v3155
    %3640 = vmatpush1.msra.mxu0 %v3154
    %3641 = vmatprep.subr.mxu0 %v3157
    %3642 = vmatpush1.msra.mxu0 %v3156
    %3643 = vmatprep.subr.mxu0 %v3159
    %3644 = vmatpush1.msra.mxu0 %v3158
    %3645 = vmatprep.subr.mxu0 %v3161
    %3646 = vmatpush1.msra.mxu0 %v3160
    %3647 = vmatprep.subr.mxu0 %v3163
    %3648 = vmatpush1.msra.mxu0 %v3162
    %3649 = vmatprep.subr.mxu0 %v3165
    %3650 = vmatpush1.msra.mxu0 %v3164
    %3651 = vmatprep.subr.mxu0 %v3167
    %3652 = vmatpush1.msra.mxu0 %v3166
    %3653 = vmatprep.subr.mxu0 %v3169
    %3654 = vmatpush1.msra.mxu0 %v3168
    %3655 = vmatprep.subr.mxu0 %v3171
    %3656 = vmatpush1.msra.mxu0 %v3170
    %3657 = vmatprep.subr.mxu0 %v3173
    %3658 = vmatpush1.msra.mxu0 %v3172
    %3659 = vmatprep.subr.mxu0 %v3175
    %3660 = vmatpush1.msra.mxu0 %v3174
    %3661 = vmatprep.subr.mxu0 %v3177
    %3662 = vmatpush1.msra.mxu0 %v3176
    %3663 = vmatprep.subr.mxu0 %v3179
    %3664 = vmatpush1.msra.mxu0 %v3178
    %3665 = vmatprep.subr.mxu0 %v3181
    %3666 = vmatpush1.msra.mxu0 %v3180
    %3667 = vmatprep.subr.mxu0 %v3183
    %3668 = vmatpush1.msra.mxu0 %v3182
    %3669 = vmatprep.subr.mxu0 %v3185
    %3670 = vmatpush1.msra.mxu0 %v3184
    %3671 = vmatprep.subr.mxu0 %v3187
    %3672 = vmatpush1.msra.mxu0 %v3186
    %3673 = vmatprep.subr.mxu0 %v3189
    %3674 = vmatpush1.msra.mxu0 %v3188
    %3675 = vmatprep.mubr.f32.mxu0 %v3009
    %3676 = vmatmul.mubr.f32.gmra.mrb[0].mxu0 %v3008
    %v3677 = vpop.f32.mrb[0].mxu0
    %v3678 = vadd.f32 %v3589, %v3677
    %v3679 = vpop.f32.mrb[0].mxu0
    %v3680 = vadd.f32 %v3591, %v3679
    %3681 = vmatprep.mubr.f32.mxu0 %v3023
    %3682 = vmatmul.mubr.f32.gmra.mrb[0].mxu0 %v3022
    %v3683 = vpop.f32.mrb[0].mxu0
    %v3684 = vadd.f32 %v3595, %v3683
    %v3685 = vpop.f32.mrb[0].mxu0
    %v3686 = vadd.f32 %v3597, %v3685
    %3687 = vmatprep.mubr.f32.mxu0 %v3037
    %3688 = vmatmul.mubr.f32.gmra.mrb[0].mxu0 %v3036
    %v3689 = vpop.f32.mrb[0].mxu0
    %v3690 = vadd.f32 %v3601, %v3689
    %v3691 = vpop.f32.mrb[0].mxu0
    %v3692 = vadd.f32 %v3603, %v3691
    %3693 = vmatprep.mubr.f32.mxu0 %v3051
    %3694 = vmatmul.mubr.f32.gmra.mrb[0].mxu0 %v3050
    %v3695 = vpop.f32.mrb[0].mxu0
    %v3696 = vadd.f32 %v3607, %v3695
    %v3697 = vpop.f32.mrb[0].mxu0
    %v3698 = vadd.f32 %v3609, %v3697
    %3699 = vdwg.mxu0
    %3700 = vmatprep.subr.mxu0 %v3191
    %3701 = vmatpush1.msra.mxu0 %v3190
    %3702 = vmatprep.subr.mxu0 %v3193
    %3703 = vmatpush1.msra.mxu0 %v3192
    %3704 = vmatprep.subr.mxu0 %v3195
    %3705 = vmatpush1.msra.mxu0 %v3194
    %3706 = vmatprep.subr.mxu0 %v3197
    %3707 = vmatpush1.msra.mxu0 %v3196
    %3708 = vmatprep.subr.mxu0 %v3199
    %3709 = vmatpush1.msra.mxu0 %v3198
    %3710 = vmatprep.subr.mxu0 %v3201
    %3711 = vmatpush1.msra.mxu0 %v3200
    %3712 = vmatprep.subr.mxu0 %v3203
    %3713 = vmatpush1.msra.mxu0 %v3202
    %3714 = vmatprep.subr.mxu0 %v3205
    %3715 = vmatpush1.msra.mxu0 %v3204
    %3716 = vmatprep.subr.mxu0 %v3207
    %3717 = vmatpush1.msra.mxu0 %v3206
    %3718 = vmatprep.subr.mxu0 %v3209
    %3719 = vmatpush1.msra.mxu0 %v3208
    %3720 = vmatprep.subr.mxu0 %v3211
    %3721 = vmatpush1.msra.mxu0 %v3210
    %3722 = vmatprep.subr.mxu0 %v3213
    %3723 = vmatpush1.msra.mxu0 %v3212
    %3724 = vmatprep.subr.mxu0 %v3215
    %3725 = vmatpush1.msra.mxu0 %v3214
    %3726 = vmatprep.subr.mxu0 %v3217
    %3727 = vmatpush1.msra.mxu0 %v3216
    %3728 = vmatprep.subr.mxu0 %v3219
    %3729 = vmatpush1.msra.mxu0 %v3218
    %3730 = vmatprep.subr.mxu0 %v3221
    %3731 = vmatpush1.msra.mxu0 %v3220
    %3732 = vmatprep.subr.mxu0 %v3223
    %3733 = vmatpush1.msra.mxu0 %v3222
    %3734 = vmatprep.subr.mxu0 %v3225
    %3735 = vmatpush1.msra.mxu0 %v3224
    %3736 = vmatprep.subr.mxu0 %v3227
    %3737 = vmatpush1.msra.mxu0 %v3226
    %3738 = vmatprep.subr.mxu0 %v3229
    %3739 = vmatpush1.msra.mxu0 %v3228
    %3740 = vmatprep.subr.mxu0 %v3231
    %3741 = vmatpush1.msra.mxu0 %v3230
    %3742 = vmatprep.subr.mxu0 %v3233
    %3743 = vmatpush1.msra.mxu0 %v3232
    %3744 = vmatprep.subr.mxu0 %v3235
    %3745 = vmatpush1.msra.mxu0 %v3234
    %3746 = vmatprep.subr.mxu0 %v3237
    %3747 = vmatpush1.msra.mxu0 %v3236
    %3748 = vmatprep.subr.mxu0 %v3239
    %3749 = vmatpush1.msra.mxu0 %v3238
    %3750 = vmatprep.subr.mxu0 %v3241
    %3751 = vmatpush1.msra.mxu0 %v3240
    %3752 = vmatprep.subr.mxu0 %v3243
    %3753 = vmatpush1.msra.mxu0 %v3242
    %3754 = vmatprep.subr.mxu0 %v3245
    %3755 = vmatpush1.msra.mxu0 %v3244
    %3756 = vmatprep.subr.mxu0 %v3247
    %3757 = vmatpush1.msra.mxu0 %v3246
    %3758 = vmatprep.subr.mxu0 %v3249
    %3759 = vmatpush1.msra.mxu0 %v3248
    %3760 = vmatprep.subr.mxu0 %v3251
    %3761 = vmatpush1.msra.mxu0 %v3250
    %3762 = vmatprep.subr.mxu0 %v3253
    %3763 = vmatpush1.msra.mxu0 %v3252
    %3764 = vmatprep.mubr.f32.mxu0 %v3011
    %3765 = vmatmul.mubr.f32.gmra.mrb[0].mxu0 %v3010
    %v3766 = vpop.f32.mrb[0].mxu0
    %v3767 = vadd.f32 %v3678, %v3766
    %v3768 = vpop.f32.mrb[0].mxu0
    %v3769 = vadd.f32 %v3680, %v3768
    %3770 = vmatprep.mubr.f32.mxu0 %v3025
    %3771 = vmatmul.mubr.f32.gmra.mrb[0].mxu0 %v3024
    %v3772 = vpop.f32.mrb[0].mxu0
    %v3773 = vadd.f32 %v3684, %v3772
    %v3774 = vpop.f32.mrb[0].mxu0
    %v3775 = vadd.f32 %v3686, %v3774
    %3776 = vmatprep.mubr.f32.mxu0 %v3039
    %3777 = vmatmul.mubr.f32.gmra.mrb[0].mxu0 %v3038
    %v3778 = vpop.f32.mrb[0].mxu0
    %v3779 = vadd.f32 %v3690, %v3778
    %v3780 = vpop.f32.mrb[0].mxu0
    %v3781 = vadd.f32 %v3692, %v3780
    %3782 = vmatprep.mubr.f32.mxu0 %v3053
    %3783 = vmatmul.mubr.f32.gmra.mrb[0].mxu0 %v3052
    %v3784 = vpop.f32.mrb[0].mxu0
    %v3785 = vadd.f32 %v3696, %v3784
    %v3786 = vpop.f32.mrb[0].mxu0
    %v3787 = vadd.f32 %v3698, %v3786
    %3788 = vdwg.mxu0
    %3789 = vmatprep.subr.mxu0 %v3255
    %3790 = vmatpush1.msra.mxu0 %v3254
    %3791 = vmatprep.subr.mxu0 %v3257
    %3792 = vmatpush1.msra.mxu0 %v3256
    %3793 = vmatprep.subr.mxu0 %v3259
    %3794 = vmatpush1.msra.mxu0 %v3258
    %3795 = vmatprep.subr.mxu0 %v3261
    %3796 = vmatpush1.msra.mxu0 %v3260
    %3797 = vmatprep.subr.mxu0 %v3263
    %3798 = vmatpush1.msra.mxu0 %v3262
    %3799 = vmatprep.subr.mxu0 %v3265
    %3800 = vmatpush1.msra.mxu0 %v3264
    %3801 = vmatprep.subr.mxu0 %v3267
    %3802 = vmatpush1.msra.mxu0 %v3266
    %3803 = vmatprep.subr.mxu0 %v3269
    %3804 = vmatpush1.msra.mxu0 %v3268
    %3805 = vmatprep.subr.mxu0 %v3271
    %3806 = vmatpush1.msra.mxu0 %v3270
    %3807 = vmatprep.subr.mxu0 %v3273
    %3808 = vmatpush1.msra.mxu0 %v3272
    %3809 = vmatprep.subr.mxu0 %v3275
    %3810 = vmatpush1.msra.mxu0 %v3274
    %3811 = vmatprep.subr.mxu0 %v3277
    %3812 = vmatpush1.msra.mxu0 %v3276
    %3813 = vmatprep.subr.mxu0 %v3279
    %3814 = vmatpush1.msra.mxu0 %v3278
    %3815 = vmatprep.subr.mxu0 %v3281
    %3816 = vmatpush1.msra.mxu0 %v3280
    %3817 = vmatprep.subr.mxu0 %v3283
    %3818 = vmatpush1.msra.mxu0 %v3282
    %3819 = vmatprep.subr.mxu0 %v3285
    %3820 = vmatpush1.msra.mxu0 %v3284
    %3821 = vmatprep.subr.mxu0 %v3287
    %3822 = vmatpush1.msra.mxu0 %v3286
    %3823 = vmatprep.subr.mxu0 %v3289
    %3824 = vmatpush1.msra.mxu0 %v3288
    %3825 = vmatprep.subr.mxu0 %v3291
    %3826 = vmatpush1.msra.mxu0 %v3290
    %3827 = vmatprep.subr.mxu0 %v3293
    %3828 = vmatpush1.msra.mxu0 %v3292
    %3829 = vmatprep.subr.mxu0 %v3295
    %3830 = vmatpush1.msra.mxu0 %v3294
    %3831 = vmatprep.subr.mxu0 %v3297
    %3832 = vmatpush1.msra.mxu0 %v3296
    %3833 = vmatprep.subr.mxu0 %v3299
    %3834 = vmatpush1.msra.mxu0 %v3298
    %3835 = vmatprep.subr.mxu0 %v3301
    %3836 = vmatpush1.msra.mxu0 %v3300
    %3837 = vmatprep.subr.mxu0 %v3303
    %3838 = vmatpush1.msra.mxu0 %v3302
    %3839 = vmatprep.subr.mxu0 %v3305
    %3840 = vmatpush1.msra.mxu0 %v3304
    %3841 = vmatprep.subr.mxu0 %v3307
    %3842 = vmatpush1.msra.mxu0 %v3306
    %3843 = vmatprep.subr.mxu0 %v3309
    %3844 = vmatpush1.msra.mxu0 %v3308
    %3845 = vmatprep.subr.mxu0 %v3311
    %3846 = vmatpush1.msra.mxu0 %v3310
    %3847 = vmatprep.subr.mxu0 %v3313
    %3848 = vmatpush1.msra.mxu0 %v3312
    %3849 = vmatprep.subr.mxu0 %v3315
    %3850 = vmatpush1.msra.mxu0 %v3314
    %3851 = vmatprep.subr.mxu0 %v3317
    %3852 = vmatpush1.msra.mxu0 %v3316
    %3853 = vmatprep.mubr.f32.mxu0 %v3013
    %3854 = vmatmul.mubr.f32.gmra.mrb[0].mxu0 %v3012
    %v3855 = vpop.f32.mrb[0].mxu0
    %v3856 = vadd.f32 %v3767, %v3855
    %v3857 = vpop.f32.mrb[0].mxu0
    %v3858 = vadd.f32 %v3769, %v3857
    %3859 = vmatprep.mubr.f32.mxu0 %v3027
    %3860 = vmatmul.mubr.f32.gmra.mrb[0].mxu0 %v3026
    %v3861 = vpop.f32.mrb[0].mxu0
    %v3862 = vadd.f32 %v3773, %v3861
    %v3863 = vpop.f32.mrb[0].mxu0
    %v3864 = vadd.f32 %v3775, %v3863
    %3865 = vmatprep.mubr.f32.mxu0 %v3041
    %3866 = vmatmul.mubr.f32.gmra.mrb[0].mxu0 %v3040
    %v3867 = vpop.f32.mrb[0].mxu0
    %v3868 = vadd.f32 %v3779, %v3867
    %v3869 = vpop.f32.mrb[0].mxu0
    %v3870 = vadd.f32 %v3781, %v3869
    %3871 = vmatprep.mubr.f32.mxu0 %v3055
    %3872 = vmatmul.mubr.f32.gmra.mrb[0].mxu0 %v3054
    %v3873 = vpop.f32.mrb[0].mxu0
    %v3874 = vadd.f32 %v3785, %v3873
    %v3875 = vpop.f32.mrb[0].mxu0
    %v3876 = vadd.f32 %v3787, %v3875
    %3877 = vdwg.mxu0
    %3878 = vmatprep.subr.mxu0 %v3319
    %3879 = vmatpush1.msra.mxu0 %v3318
    %3880 = vmatprep.subr.mxu0 %v3321
    %3881 = vmatpush1.msra.mxu0 %v3320
    %3882 = vmatprep.subr.mxu0 %v3323
    %3883 = vmatpush1.msra.mxu0 %v3322
    %3884 = vmatprep.subr.mxu0 %v3325
    %3885 = vmatpush1.msra.mxu0 %v3324
    %3886 = vmatprep.subr.mxu0 %v3327
    %3887 = vmatpush1.msra.mxu0 %v3326
    %3888 = vmatprep.subr.mxu0 %v3329
    %3889 = vmatpush1.msra.mxu0 %v3328
    %3890 = vmatprep.subr.mxu0 %v3331
    %3891 = vmatpush1.msra.mxu0 %v3330
    %3892 = vmatprep.subr.mxu0 %v3333
    %3893 = vmatpush1.msra.mxu0 %v3332
    %3894 = vmatprep.subr.mxu0 %v3335
    %3895 = vmatpush1.msra.mxu0 %v3334
    %3896 = vmatprep.subr.mxu0 %v3337
    %3897 = vmatpush1.msra.mxu0 %v3336
    %3898 = vmatprep.subr.mxu0 %v3339
    %3899 = vmatpush1.msra.mxu0 %v3338
    %3900 = vmatprep.subr.mxu0 %v3341
    %3901 = vmatpush1.msra.mxu0 %v3340
    %3902 = vmatprep.subr.mxu0 %v3343
    %3903 = vmatpush1.msra.mxu0 %v3342
    %3904 = vmatprep.subr.mxu0 %v3345
    %3905 = vmatpush1.msra.mxu0 %v3344
    %3906 = vmatprep.subr.mxu0 %v3347
    %3907 = vmatpush1.msra.mxu0 %v3346
    %3908 = vmatprep.subr.mxu0 %v3349
    %3909 = vmatpush1.msra.mxu0 %v3348
    %3910 = vmatprep.subr.mxu0 %v3351
    %3911 = vmatpush1.msra.mxu0 %v3350
    %3912 = vmatprep.subr.mxu0 %v3353
    %3913 = vmatpush1.msra.mxu0 %v3352
    %3914 = vmatprep.subr.mxu0 %v3355
    %3915 = vmatpush1.msra.mxu0 %v3354
    %3916 = vmatprep.subr.mxu0 %v3357
    %3917 = vmatpush1.msra.mxu0 %v3356
    %3918 = vmatprep.subr.mxu0 %v3359
    %3919 = vmatpush1.msra.mxu0 %v3358
    %3920 = vmatprep.subr.mxu0 %v3361
    %3921 = vmatpush1.msra.mxu0 %v3360
    %3922 = vmatprep.subr.mxu0 %v3363
    %3923 = vmatpush1.msra.mxu0 %v3362
    %3924 = vmatprep.subr.mxu0 %v3365
    %3925 = vmatpush1.msra.mxu0 %v3364
    %3926 = vmatprep.subr.mxu0 %v3367
    %3927 = vmatpush1.msra.mxu0 %v3366
    %3928 = vmatprep.subr.mxu0 %v3369
    %3929 = vmatpush1.msra.mxu0 %v3368
    %3930 = vmatprep.subr.mxu0 %v3371
    %3931 = vmatpush1.msra.mxu0 %v3370
    %3932 = vmatprep.subr.mxu0 %v3373
    %3933 = vmatpush1.msra.mxu0 %v3372
    %3934 = vmatprep.subr.mxu0 %v3375
    %3935 = vmatpush1.msra.mxu0 %v3374
    %3936 = vmatprep.subr.mxu0 %v3377
    %3937 = vmatpush1.msra.mxu0 %v3376
    %3938 = vmatprep.subr.mxu0 %v3379
    %3939 = vmatpush1.msra.mxu0 %v3378
    %3940 = vmatprep.subr.mxu0 %v3381
    %3941 = vmatpush1.msra.mxu0 %v3380
    %3942 = vmatprep.mubr.f32.mxu0 %v3015
    %3943 = vmatmul.mubr.f32.gmra.mrb[0].mxu0 %v3014
    %v3944 = vpop.f32.mrb[0].mxu0
    %v3945 = vadd.f32 %v3856, %v3944
    %v3946 = vpop.f32.mrb[0].mxu0
    %v3947 = vadd.f32 %v3858, %v3946
    %3948 = vmatprep.mubr.f32.mxu0 %v3029
    %3949 = vmatmul.mubr.f32.gmra.mrb[0].mxu0 %v3028
    %v3950 = vpop.f32.mrb[0].mxu0
    %v3951 = vadd.f32 %v3862, %v3950
    %v3952 = vpop.f32.mrb[0].mxu0
    %v3953 = vadd.f32 %v3864, %v3952
    %3954 = vmatprep.mubr.f32.mxu0 %v3043
    %3955 = vmatmul.mubr.f32.gmra.mrb[0].mxu0 %v3042
    %v3956 = vpop.f32.mrb[0].mxu0
    %v3957 = vadd.f32 %v3868, %v3956
    %v3958 = vpop.f32.mrb[0].mxu0
    %v3959 = vadd.f32 %v3870, %v3958
    %3960 = vmatprep.mubr.f32.mxu0 %v3057
    %3961 = vmatmul.mubr.f32.gmra.mrb[0].mxu0 %v3056
    %v3962 = vpop.f32.mrb[0].mxu0
    %v3963 = vadd.f32 %v3874, %v3962
    %v3964 = vpop.f32.mrb[0].mxu0
    %v3965 = vadd.f32 %v3876, %v3964
    %3966 = vdwg.mxu0
    %3967 = vmatprep.subr.mxu0 %v3383
    %3968 = vmatpush1.msra.mxu0 %v3382
    %3969 = vmatprep.subr.mxu0 %v3385
    %3970 = vmatpush1.msra.mxu0 %v3384
    %3971 = vmatprep.subr.mxu0 %v3387
    %3972 = vmatpush1.msra.mxu0 %v3386
    %3973 = vmatprep.subr.mxu0 %v3389
    %3974 = vmatpush1.msra.mxu0 %v3388
    %3975 = vmatprep.subr.mxu0 %v3391
    %3976 = vmatpush1.msra.mxu0 %v3390
    %3977 = vmatprep.subr.mxu0 %v3393
    %3978 = vmatpush1.msra.mxu0 %v3392
    %3979 = vmatprep.subr.mxu0 %v3395
    %3980 = vmatpush1.msra.mxu0 %v3394
    %3981 = vmatprep.subr.mxu0 %v3397
    %3982 = vmatpush1.msra.mxu0 %v3396
    %3983 = vmatprep.subr.mxu0 %v3399
    %3984 = vmatpush1.msra.mxu0 %v3398
    %3985 = vmatprep.subr.mxu0 %v3401
    %3986 = vmatpush1.msra.mxu0 %v3400
    %3987 = vmatprep.subr.mxu0 %v3403
    %3988 = vmatpush1.msra.mxu0 %v3402
    %3989 = vmatprep.subr.mxu0 %v3405
    %3990 = vmatpush1.msra.mxu0 %v3404
    %3991 = vmatprep.subr.mxu0 %v3407
    %3992 = vmatpush1.msra.mxu0 %v3406
    %3993 = vmatprep.subr.mxu0 %v3409
    %3994 = vmatpush1.msra.mxu0 %v3408
    %3995 = vmatprep.subr.mxu0 %v3411
    %3996 = vmatpush1.msra.mxu0 %v3410
    %3997 = vmatprep.subr.mxu0 %v3413
    %3998 = vmatpush1.msra.mxu0 %v3412
    %3999 = vmatprep.subr.mxu0 %v3415
    %4000 = vmatpush1.msra.mxu0 %v3414
    %4001 = vmatprep.subr.mxu0 %v3417
    %4002 = vmatpush1.msra.mxu0 %v3416
    %4003 = vmatprep.subr.mxu0 %v3419
    %4004 = vmatpush1.msra.mxu0 %v3418
    %4005 = vmatprep.subr.mxu0 %v3421
    %4006 = vmatpush1.msra.mxu0 %v3420
    %4007 = vmatprep.subr.mxu0 %v3423
    %4008 = vmatpush1.msra.mxu0 %v3422
    %4009 = vmatprep.subr.mxu0 %v3425
    %4010 = vmatpush1.msra.mxu0 %v3424
    %4011 = vmatprep.subr.mxu0 %v3427
    %4012 = vmatpush1.msra.mxu0 %v3426
    %4013 = vmatprep.subr.mxu0 %v3429
    %4014 = vmatpush1.msra.mxu0 %v3428
    %4015 = vmatprep.subr.mxu0 %v3431
    %4016 = vmatpush1.msra.mxu0 %v3430
    %4017 = vmatprep.subr.mxu0 %v3433
    %4018 = vmatpush1.msra.mxu0 %v3432
    %4019 = vmatprep.subr.mxu0 %v3435
    %4020 = vmatpush1.msra.mxu0 %v3434
    %4021 = vmatprep.subr.mxu0 %v3437
    %4022 = vmatpush1.msra.mxu0 %v3436
    %4023 = vmatprep.subr.mxu0 %v3439
    %4024 = vmatpush1.msra.mxu0 %v3438
    %4025 = vmatprep.subr.mxu0 %v3441
    %4026 = vmatpush1.msra.mxu0 %v3440
    %4027 = vmatprep.subr.mxu0 %v3443
    %4028 = vmatpush1.msra.mxu0 %v3442
    %4029 = vmatprep.subr.mxu0 %v3445
    %4030 = vmatpush1.msra.mxu0 %v3444
    %4031 = vmatprep.mubr.f32.mxu0 %v3017
    %4032 = vmatmul.mubr.f32.gmra.mrb[0].mxu0 %v3016
    %v4033 = vpop.f32.mrb[0].mxu0
    %v4034 = vadd.f32 %v3945, %v4033
    %v4035 = vpop.f32.mrb[0].mxu0
    %v4036 = vadd.f32 %v3947, %v4035
    %4037 = vmatprep.mubr.f32.mxu0 %v3031
    %4038 = vmatmul.mubr.f32.gmra.mrb[0].mxu0 %v3030
    %v4039 = vpop.f32.mrb[0].mxu0
    %v4040 = vadd.f32 %v3951, %v4039
    %v4041 = vpop.f32.mrb[0].mxu0
    %v4042 = vadd.f32 %v3953, %v4041
    %4043 = vmatprep.mubr.f32.mxu0 %v3045
    %4044 = vmatmul.mubr.f32.gmra.mrb[0].mxu0 %v3044
    %v4045 = vpop.f32.mrb[0].mxu0
    %v4046 = vadd.f32 %v3957, %v4045
    %v4047 = vpop.f32.mrb[0].mxu0
    %v4048 = vadd.f32 %v3959, %v4047
    %4049 = vmatprep.mubr.f32.mxu0 %v3059
    %4050 = vmatmul.mubr.f32.gmra.mrb[0].mxu0 %v3058
    %v4051 = vpop.f32.mrb[0].mxu0
    %v4052 = vadd.f32 %v3963, %v4051
    %v4053 = vpop.f32.mrb[0].mxu0
    %v4054 = vadd.f32 %v3965, %v4053
    %4055 = vdwg.mxu0
    %4056 = vmatprep.subr.mxu0 %v3447
    %4057 = vmatpush1.msra.mxu0 %v3446
    %4058 = vmatprep.subr.mxu0 %v3449
    %4059 = vmatpush1.msra.mxu0 %v3448
    %4060 = vmatprep.subr.mxu0 %v3451
    %4061 = vmatpush1.msra.mxu0 %v3450
    %4062 = vmatprep.subr.mxu0 %v3453
    %4063 = vmatpush1.msra.mxu0 %v3452
    %4064 = vmatprep.subr.mxu0 %v3455
    %4065 = vmatpush1.msra.mxu0 %v3454
    %4066 = vmatprep.subr.mxu0 %v3457
    %4067 = vmatpush1.msra.mxu0 %v3456
    %4068 = vmatprep.subr.mxu0 %v3459
    %4069 = vmatpush1.msra.mxu0 %v3458
    %4070 = vmatprep.subr.mxu0 %v3461
    %4071 = vmatpush1.msra.mxu0 %v3460
    %4072 = vmatprep.subr.mxu0 %v3463
    %4073 = vmatpush1.msra.mxu0 %v3462
    %4074 = vmatprep.subr.mxu0 %v3465
    %4075 = vmatpush1.msra.mxu0 %v3464
    %4076 = vmatprep.subr.mxu0 %v3467
    %4077 = vmatpush1.msra.mxu0 %v3466
    %4078 = vmatprep.subr.mxu0 %v3469
    %4079 = vmatpush1.msra.mxu0 %v3468
    %4080 = vmatprep.subr.mxu0 %v3471
    %4081 = vmatpush1.msra.mxu0 %v3470
    %4082 = vmatprep.subr.mxu0 %v3473
    %4083 = vmatpush1.msra.mxu0 %v3472
    %4084 = vmatprep.subr.mxu0 %v3475
    %4085 = vmatpush1.msra.mxu0 %v3474
    %4086 = vmatprep.subr.mxu0 %v3477
    %4087 = vmatpush1.msra.mxu0 %v3476
    %4088 = vmatprep.subr.mxu0 %v3479
    %4089 = vmatpush1.msra.mxu0 %v3478
    %4090 = vmatprep.subr.mxu0 %v3481
    %4091 = vmatpush1.msra.mxu0 %v3480
    %4092 = vmatprep.subr.mxu0 %v3483
    %4093 = vmatpush1.msra.mxu0 %v3482
    %4094 = vmatprep.subr.mxu0 %v3485
    %4095 = vmatpush1.msra.mxu0 %v3484
    %4096 = vmatprep.subr.mxu0 %v3487
    %4097 = vmatpush1.msra.mxu0 %v3486
    %4098 = vmatprep.subr.mxu0 %v3489
    %4099 = vmatpush1.msra.mxu0 %v3488
    %4100 = vmatprep.subr.mxu0 %v3491
    %4101 = vmatpush1.msra.mxu0 %v3490
    %4102 = vmatprep.subr.mxu0 %v3493
    %4103 = vmatpush1.msra.mxu0 %v3492
    %4104 = vmatprep.subr.mxu0 %v3495
    %4105 = vmatpush1.msra.mxu0 %v3494
    %4106 = vmatprep.subr.mxu0 %v3497
    %4107 = vmatpush1.msra.mxu0 %v3496
    %4108 = vmatprep.subr.mxu0 %v3499
    %4109 = vmatpush1.msra.mxu0 %v3498
    %4110 = vmatprep.subr.mxu0 %v3501
    %4111 = vmatpush1.msra.mxu0 %v3500
    %4112 = vmatprep.subr.mxu0 %v3503
    %4113 = vmatpush1.msra.mxu0 %v3502
    %4114 = vmatprep.subr.mxu0 %v3505
    %4115 = vmatpush1.msra.mxu0 %v3504
    %4116 = vmatprep.subr.mxu0 %v3507
    %4117 = vmatpush1.msra.mxu0 %v3506
    %4118 = vmatprep.subr.mxu0 %v3509
    %4119 = vmatpush1.msra.mxu0 %v3508
    %4120 = vmatprep.mubr.f32.mxu0 %v3019
    %4121 = vmatmul.mubr.f32.gmra.mrb[0].mxu0 %v3018
    %v4122 = vpop.f32.mrb[0].mxu0
    %v4123 = vadd.f32 %v4034, %v4122
    %v4124 = vpop.f32.mrb[0].mxu0
    %v4125 = vadd.f32 %v4036, %v4124
    %4126 = vmatprep.mubr.f32.mxu0 %v3033
    %4127 = vmatmul.mubr.f32.gmra.mrb[0].mxu0 %v3032
    %v4128 = vpop.f32.mrb[0].mxu0
    %v4129 = vadd.f32 %v4040, %v4128
    %v4130 = vpop.f32.mrb[0].mxu0
    %v4131 = vadd.f32 %v4042, %v4130
    %4132 = vmatprep.mubr.f32.mxu0 %v3047
    %4133 = vmatmul.mubr.f32.gmra.mrb[0].mxu0 %v3046
    %v4134 = vpop.f32.mrb[0].mxu0
    %v4135 = vadd.f32 %v4046, %v4134
    %v4136 = vpop.f32.mrb[0].mxu0
    %v4137 = vadd.f32 %v4048, %v4136
    %4138 = vmatprep.mubr.f32.mxu0 %v3061
    %4139 = vmatmul.mubr.f32.gmra.mrb[0].mxu0 %v3060
    %v4140 = vpop.f32.mrb[0].mxu0
    %v4141 = vadd.f32 %v4052, %v4140
    %v4142 = vpop.f32.mrb[0].mxu0
    %v4143 = vadd.f32 %v4054, %v4142
    %4144 = vdwg.mxu0
    %v4145 = vadd.f32 %v4123, %v1445
    %v4146 = vadd.f32 %v4125, %v1447
    %v4147 = vadd.f32 %v4129, %v1451
    %v4148 = vadd.f32 %v4131, %v1453
    %v4149 = vadd.f32 %v4135, %v1457
    %v4150 = vadd.f32 %v4137, %v1459
    %v4151 = vadd.f32 %v4141, %v1463
    %v4152 = vadd.f32 %v4143, %v1465
    %4153 = vst [vmem:[%s6] sm:$0xff] %v4145
    %4154 = vst [vmem:[%s6 + $0x8] sm:$0xff] %v4146
    %4155 = vst [vmem:[%s6 + $0x10] sm:$0xff] %v4147
    %4156 = vst [vmem:[%s6 + $0x18] sm:$0xff] %v4148
    %4157 = vst [vmem:[%s6 + $0x20] sm:$0xff] %v4149
    %4158 = vst [vmem:[%s6 + $0x28] sm:$0xff] %v4150
    %4159 = vst [vmem:[%s6 + $0x30] sm:$0xff] %v4151
    %4160 = vst [vmem:[%s6 + $0x38] sm:$0xff] %v4152
    // Predicated region
    $region42: #{model_forward.1} parent=1 // pred_check
      _
    $region43: #{model_forward.1} parent=1 // pred_check_branch
      %4162 = sbr.rel (0) target = $region45
    $region44: #{model_forward.1} parent=1 // pred_region
      _
    $region45: #{model_forward.1} parent=1 // pred_fallthru
      _
    // Predicated region
    $region46: #{model_forward.1} parent=1 // pred_check
      _
    $region47: #{model_forward.1} parent=1 // pred_check_branch
      %4164 = sbr.rel (0) target = $region49
    $region48: #{model_forward.1} parent=1 // pred_region
      _
    $region49: #{model_forward.1} parent=1 // pred_fallthru
      _
    %4165 = vsyncpa [#allocation4], 1
    %4166 = vsyncpa [#allocation6], 1
    %4167 = vsyncpa [#allocation9], 1

</llo_original>
